<compile_context>
chip_gen: v6e
topology: v6e:2x2x1
jax: 0.10.0
libtpu: 0.0.40
codegen_flags: <defaults>
</compile_context>

<pallas_src>
from functools import partial

import jax
import jax.numpy as jnp
from jax.experimental import pallas as pl
from jax.experimental.pallas import tpu as pltpu


def _lrcn_decoder_kernel(x_ref, wih1_ref, whh1_ref, b1_ref,
                         wih2_ref, whh2_ref, b2_ref, o_ref,
                         gate_s, *, T, BB, H, fusion_mode):
    """One grid step processes one batch tile of BB sequences.

    x_ref   : (BB, T, Din)  natural-layout input block (no wrapper relayout)
    wih1_ref: (Din, 4H)     layer-1 input->gate weights  (i/f/o rows pre-scaled 0.5)
    whh1_ref: (H, 4H)       layer-1 hidden->gate weights (same pre-scale)
    b1_ref  : (1, 4H)       layer-1 combined bias b_ih + b_hh (same pre-scale), f32
    wih2_ref/whh2_ref/b2_ref: layer-2 equivalents
    o_ref   : (BB, H)       fused decoder output for this batch tile
    gate_s  : (BB, T, 4H)   VMEM scratch — fused layer-1 input projection, f32
    """
    G = 4 * H
    cdt = wih1_ref.dtype            # MXU compute dtype (bf16 or f32)

    # ---- Layer-1 input projection for ALL timesteps: one fused MXU matmul ----
    din = x_ref.shape[-1]
    x2 = x_ref[...].reshape(BB * T, din).astype(cdt)
    g1_all = jnp.dot(x2, wih1_ref[...], preferred_element_type=jnp.float32)
    gate_s[...] = (g1_all + b1_ref[...]).reshape(BB, T, G)

    whh1 = whh1_ref[...]
    wih2 = wih2_ref[...]
    whh2 = whh2_ref[...]
    b2 = b2_ref[...]

    def cell(tg, c):
        # tg = tanh(pre-activations); i/f/o rows were pre-scaled by 0.5 in the
        # wrapper, so sigmoid(z) == 0.5 * (1 + tg) exactly.
        i = 0.5 + 0.5 * tg[:, 0 * H:1 * H]
        f = 0.5 + 0.5 * tg[:, 1 * H:2 * H]
        g = tg[:, 2 * H:3 * H]
        o = 0.5 + 0.5 * tg[:, 3 * H:4 * H]
        c = f * c + i * g
        h = o * jnp.tanh(c)
        return h, c

    def step(t, carry):
        h1, c1, h2, c2, acc = carry
        if isinstance(t, int):                       # static (unrolled) path
            g_in = gate_s[:, t, :]
        else:                                        # dynamic (fori_loop) path
            g_in = gate_s[:, pl.ds(t, 1), :].reshape(BB, G)
        # Layer 1: recurrent part only (input part precomputed above).
        g1 = g_in + jnp.dot(h1.astype(cdt), whh1,
                            preferred_element_type=jnp.float32)
        h1, c1 = cell(jnp.tanh(g1), c1)              # one full-width tanh
        # Layer 2 fused into the same step (inter-layer dropout = identity at
        # inference).  The h2 @ whh2 dot does not depend on this step's layer 1,
        # so it overlaps with the layer-1 chain on the MXU.
        g2 = (jnp.dot(h1.astype(cdt), wih2, preferred_element_type=jnp.float32)
              + jnp.dot(h2.astype(cdt), whh2, preferred_element_type=jnp.float32)
              + b2)
        h2, c2 = cell(jnp.tanh(g2), c2)
        acc = acc + h2
        return h1, c1, h2, c2, acc

    z = jnp.zeros((BB, H), jnp.float32)
    carry = (z, z, z, z, z)
    if T <= 32:
        # Short sequences: full unroll, static slices, LLO gets full visibility.
        for t in range(T):
            carry = step(t, carry)
    else:
        # Long sequences: keep code size / compile time bounded.
        carry = jax.lax.fori_loop(0, T, step, carry, unroll=2)
    _, _, h2, _, acc = carry

    if fusion_mode == "sum":
        out = acc
    elif fusion_mode == "avg":
        out = acc * (1.0 / T)
    else:  # "last"
        out = h2
    o_ref[...] = out.astype(o_ref.dtype)


def _prep_params(params, H, compute_dtype):
    """PyTorch nn.LSTM layout -> kernel layout.

    Expects dict with weight_ih_l{0,1} (4H, Din|H), weight_hh_l{0,1} (4H, H),
    bias_ih_l{0,1} (4H,), bias_hh_l{0,1} (4H,); gate order [i|f|g|o].
    Transposes weights to (K, 4H), sums the biases, and folds the 0.5 pre-scale
    of the i/f/o gates (for the tanh-form sigmoid) into weights and bias.
    """
    G = 4 * H
    scale = jnp.concatenate([
        jnp.full((2 * H,), 0.5, jnp.float32),   # i, f
        jnp.ones((H,), jnp.float32),            # g
        jnp.full((H,), 0.5, jnp.float32),       # o
    ])

    def prep(layer, expect_in):
        w_ih = jnp.asarray(params[f"weight_ih_l{layer}"], jnp.float32)
        w_hh = jnp.asarray(params[f"weight_hh_l{layer}"], jnp.float32)
        b_ih = jnp.asarray(params[f"bias_ih_l{layer}"], jnp.float32)
        b_hh = jnp.asarray(params[f"bias_hh_l{layer}"], jnp.float32)
        if w_ih.shape != (G, expect_in) or w_hh.shape != (G, H) \
                or b_ih.shape != (G,) or b_hh.shape != (G,):
            raise ValueError(f"layer {layer} parameter shapes do not match "
                             f"rnn_units={H}")
        w_ih = (w_ih * scale[:, None]).T.astype(compute_dtype)   # (K, 4H)
        w_hh = (w_hh * scale[:, None]).T.astype(compute_dtype)   # (H, 4H)
        b = ((b_ih + b_hh) * scale).reshape(1, G)                 # stays f32
        return w_ih, w_hh, b

    din = params["weight_ih_l0"].shape[1]
    wih1, whh1, b1 = prep(0, din)
    wih2, whh2, b2 = prep(1, H)
    return wih1, whh1, b1, wih2, whh2, b2


def lrcn_decoder(x, params, *, rnn_units, fusion_mode="sum",
                 compute_dtype=jnp.bfloat16, batch_tile=None,
                 vmem_budget_bytes=40 * 1024 * 1024):
    """x: (B, T, input_features) -> (B, rnn_units) f32.

    compute_dtype: dtype of the MXU matmul inputs (bf16 recommended on
    v5e/v6e/v7x; all accumulation and cell state stay f32).
    batch_tile: rows per grid step (multiple of 8).  On v7x pick ~B/2 so the
    'parallel' grid axis is sharded across both TensorCores.
    """
    if fusion_mode not in {"sum", "avg", "last"}:
        # TODO(synk): fusion_mode='attn' (nn.MultiheadAttention) and
        # bidirectional=True are not implemented in this kernel.
        raise NotImplementedError(f"fusion_mode={fusion_mode!r} not supported")

    B, T, Din = x.shape
    H = rnn_units
    G = 4 * H

    wih1, whh1, b1, wih2, whh2, b2 = _prep_params(params, H, compute_dtype)

    def rup(a, m):
        return ((a + m - 1) // m) * m

    # ---- choose the batch tile: as large as useful, within the VMEM budget ----
    BB = 256 if batch_tile is None else int(batch_tile)
    BB = max(8, rup(min(BB, rup(B, 8)), 8))

    w_isz = jnp.finfo(compute_dtype).bits // 8
    x_isz = x.dtype.itemsize

    def vmem_est(bb):
        lane = lambda n: rup(max(int(n), 1), 128)
        x_blk = 2 * bb * T * lane(Din) * x_isz           # double-buffered input
        gate = bb * T * lane(G) * 4                      # gate scratch (f32)
        out = 2 * bb * lane(H) * 4                       # double-buffered output
        wts = 2 * (lane(Din) + 3 * rup(H, 8)) * lane(G) * w_isz
        return x_blk + gate + out + wts + (1 << 20)

    # Keep the working set well under v7x's 64 MiB physical VMEM.
    while BB > 8 and vmem_est(BB) > vmem_budget_bytes:
        BB = max(8, rup(BB // 2, 8))

    B_pad = rup(B, BB)
    nt = B_pad // BB
    xp = x if B_pad == B else jnp.pad(x, ((0, B_pad - B), (0, 0), (0, 0)))

    kernel = partial(_lrcn_decoder_kernel, T=T, BB=BB, H=H,
                     fusion_mode=fusion_mode)

    out = pl.pallas_call(
        kernel,
        out_shape=jax.ShapeDtypeStruct((B_pad, H), jnp.float32),
        grid_spec=pltpu.PrefetchScalarGridSpec(
            num_scalar_prefetch=0,
            grid=(nt,),
            in_specs=[
                pl.BlockSpec((BB, T, Din), lambda i: (i, 0, 0)),
                pl.BlockSpec((Din, G), lambda i: (0, 0)),
                pl.BlockSpec((H, G), lambda i: (0, 0)),
                pl.BlockSpec((1, G), lambda i: (0, 0)),
                pl.BlockSpec((H, G), lambda i: (0, 0)),
                pl.BlockSpec((H, G), lambda i: (0, 0)),
                pl.BlockSpec((1, G), lambda i: (0, 0)),
            ],
            out_specs=pl.BlockSpec((BB, H), lambda i: (i, 0)),
            scratch_shapes=[
                pltpu.VMEM((BB, T, G), jnp.float32),   # fused gate pre-activations
            ],
        ),
        compiler_params=pltpu.CompilerParams(
            dimension_semantics=("parallel",),
            vmem_limit_bytes=int(min(max(2 * vmem_est(BB), 32 << 20), 60 << 20)),
        ),
    )(xp, wih1, whh1, b1, wih2, whh2, b2)

    return out[:B]


# ---------------------------- pure-JAX reference -----------------------------

def _lstm_layer_ref(x, w_ih, w_hh, b_ih, b_hh):
    """PyTorch-semantics LSTM layer (PyTorch weight layout). x: (B,T,K)->(B,T,H)."""
    H = w_hh.shape[1]
    B = x.shape[0]

    def step(carry, x_t):
        h, c = carry
        z = x_t @ w_ih.T + h @ w_hh.T + b_ih + b_hh
        i, f, g, o = jnp.split(z, 4, axis=-1)
        i = jax.nn.sigmoid(i)
        f = jax.nn.sigmoid(f)
        g = jnp.tanh(g)
        o = jax.nn.sigmoid(o)
        c = f * c + i * g
        h = o * jnp.tanh(c)
        return (h, c), h

    init = (jnp.zeros((B, H), jnp.float32), jnp.zeros((B, H), jnp.float32))
    _, hs = jax.lax.scan(step, init, jnp.swapaxes(x, 0, 1))
    return jnp.swapaxes(hs, 0, 1)


def _reference(x, params, *, rnn_units, fusion_mode="sum"):
    del rnn_units
    h1 = _lstm_layer_ref(x, params["weight_ih_l0"], params["weight_hh_l0"],
                         params["bias_ih_l0"], params["bias_hh_l0"])
    h2 = _lstm_layer_ref(h1, params["weight_ih_l1"], params["weight_hh_l1"],
                         params["bias_ih_l1"], params["bias_hh_l1"])
    if fusion_mode == "sum":
        return h2.sum(axis=1)
    if fusion_mode == "avg":
        return h2.mean(axis=1)
    return h2[:, -1]


if __name__ == "__main__":
    # Small shapes consistent with the module's forward:
    #   batch=2, seq=8, input_features=32, rnn_units=32.
    B, T, Din, H = 2, 8, 32, 32
    G = 4 * H

    key = jax.random.PRNGKey(0)
    ks = jax.random.split(key, 9)

    def mk(k, shape):
        return 0.1 * jax.random.normal(k, shape, jnp.float32)

    # Parameters in PyTorch nn.LSTM layout (gate order [i|f|g|o]).
    params = {
        "weight_ih_l0": mk(ks[0], (G, Din)),
        "weight_hh_l0": mk(ks[1], (G, H)),
        "bias_ih_l0": mk(ks[2], (G,)),
        "bias_hh_l0": mk(ks[3], (G,)),
        "weight_ih_l1": mk(ks[4], (G, H)),
        "weight_hh_l1": mk(ks[5], (G, H)),
        "bias_ih_l1": mk(ks[6], (G,)),
        "bias_hh_l1": mk(ks[7], (G,)),
    }
    x = jax.random.normal(ks[8], (B, T, Din), jnp.float32)

    # 1) f32 compute path, tight tolerance, all supported fusion modes.
    for mode in ("sum", "avg", "last"):
        out = jax.block_until_ready(
            lrcn_decoder(x, params, rnn_units=H, fusion_mode=mode,
                         compute_dtype=jnp.float32))
        ref = _reference(x, params, rnn_units=H, fusion_mode=mode)
        assert out.shape == (B, H), out.shape
        err = float(jnp.max(jnp.abs(out - ref)))
        assert err < 1e-3, (mode, err)

    # 2) Larger batch: exercises BB=256 tiles, multi-step grid and batch padding.
    xb = jax.random.normal(jax.random.PRNGKey(1), (300, T, Din), jnp.float32)
    outb = jax.block_until_ready(
        lrcn_decoder(xb, params, rnn_units=H, fusion_mode="sum",
                     compute_dtype=jnp.float32))
    refb = _reference(xb, params, rnn_units=H, fusion_mode="sum")
    assert outb.shape == (300, H), outb.shape
    errb = float(jnp.max(jnp.abs(outb - refb)))
    assert errb < 1e-3, errb

    # 3) bf16 MXU-input performance configuration (f32 accumulation/state).
    outq = jax.block_until_ready(
        lrcn_decoder(xb, params, rnn_units=H, fusion_mode="sum",
                     compute_dtype=jnp.bfloat16))
    errq = float(jnp.max(jnp.abs(outq - refb)))
    assert errq < 1e-1, errq

    # TODO(synk): bidirectional=True, fusion_mode='attn' (MultiheadAttention),
    # and training-mode dropout (p=0.3) are not implemented; inference semantics
    # of the unidirectional 2-layer LSTM with sum/avg/last fusion are covered.
    print("KERNEL_OK")
</pallas_src>

<mosaic_0001>
module attributes {stable_mosaic.version = 11 : i64} {
  func.func @_lrcn_decoder_kernel(%arg0: i32, %arg1: memref<8x8x32xf32, #tpu.memory_space<vmem>>, %arg2: memref<32x128xf32, #tpu.memory_space<vmem>>, %arg3: memref<32x128xf32, #tpu.memory_space<vmem>>, %arg4: memref<1x128xf32, #tpu.memory_space<vmem>>, %arg5: memref<32x128xf32, #tpu.memory_space<vmem>>, %arg6: memref<32x128xf32, #tpu.memory_space<vmem>>, %arg7: memref<1x128xf32, #tpu.memory_space<vmem>>, %arg8: memref<8x32xf32, #tpu.memory_space<vmem>>, %arg9: memref<8x8x128xf32, #tpu.memory_space<vmem>>) attributes {dimension_semantics = [#tpu.dimension_semantics<parallel>], iteration_bounds = array<i64: 1>, scalar_prefetch = 0 : i64, scratch_operands = 1 : i64, tpu.core_type = #tpu.core_type<tc>, window_params = [{transform_indices = @transform_0, window_bounds = array<i64: 8, 8, 32>}, {pipeline_mode = #tpu.pipeline_mode<synchronous>, transform_indices = @transform_1, window_bounds = array<i64: 32, 128>}, {pipeline_mode = #tpu.pipeline_mode<synchronous>, transform_indices = @transform_2, window_bounds = array<i64: 32, 128>}, {pipeline_mode = #tpu.pipeline_mode<synchronous>, transform_indices = @transform_3, window_bounds = array<i64: 1, 128>}, {pipeline_mode = #tpu.pipeline_mode<synchronous>, transform_indices = @transform_4, window_bounds = array<i64: 32, 128>}, {pipeline_mode = #tpu.pipeline_mode<synchronous>, transform_indices = @transform_5, window_bounds = array<i64: 32, 128>}, {pipeline_mode = #tpu.pipeline_mode<synchronous>, transform_indices = @transform_6, window_bounds = array<i64: 1, 128>}, {transform_indices = @transform_7, window_bounds = array<i64: 8, 32>}]} {
    %c0 = arith.constant 0 : index
    %c0_0 = arith.constant 0 : index
    %c0_1 = arith.constant 0 : index
    %0 = vector.load %arg1[%c0, %c0_0, %c0_1] : memref<8x8x32xf32, #tpu.memory_space<vmem>>, vector<8x8x32xf32>
    %1 = vector.shape_cast %0 : vector<8x8x32xf32> to vector<64x32xf32>
    %c0_2 = arith.constant 0 : index
    %c0_3 = arith.constant 0 : index
    %2 = vector.load %arg2[%c0_2, %c0_3] : memref<32x128xf32, #tpu.memory_space<vmem>>, vector<32x128xf32>
    %cst = arith.constant dense<0.000000e+00> : vector<64x128xf32>
    %3 = tpu.matmul %1, %2, %cst {dimension_numbers = #tpu.dot_dimension_numbers<[1], [0], [0], [1], [0, 0, 1, 1], [], []>} : vector<64x32xf32>, vector<32x128xf32>, vector<64x128xf32> -> vector<64x128xf32>
    %c0_4 = arith.constant 0 : index
    %c0_5 = arith.constant 0 : index
    %4 = vector.load %arg4[%c0_4, %c0_5] : memref<1x128xf32, #tpu.memory_space<vmem>>, vector<1x128xf32>
    %5 = vector.broadcast %4 : vector<1x128xf32> to vector<64x128xf32>
    %6 = arith.addf %3, %5 : vector<64x128xf32>
    %7 = vector.shape_cast %6 : vector<64x128xf32> to vector<8x8x128xf32>
    %c0_6 = arith.constant 0 : index
    %c0_7 = arith.constant 0 : index
    %c0_8 = arith.constant 0 : index
    %8 = vector.load %arg9[%c0_6, %c0_7, %c0_8] : memref<8x8x128xf32, #tpu.memory_space<vmem>>, vector<8x8x128xf32>
    tpu.vector_store %arg9[%c0_6, %c0_7, %c0_8], %7 {strides = array<i32>} : memref<8x8x128xf32, #tpu.memory_space<vmem>>, vector<8x8x128xf32>,
    %c0_9 = arith.constant 0 : index
    %c0_10 = arith.constant 0 : index
    %9 = vector.load %arg3[%c0_9, %c0_10] : memref<32x128xf32, #tpu.memory_space<vmem>>, vector<32x128xf32>
    %c0_11 = arith.constant 0 : index
    %c0_12 = arith.constant 0 : index
    %10 = vector.load %arg5[%c0_11, %c0_12] : memref<32x128xf32, #tpu.memory_space<vmem>>, vector<32x128xf32>
    %c0_13 = arith.constant 0 : index
    %c0_14 = arith.constant 0 : index
    %11 = vector.load %arg6[%c0_13, %c0_14] : memref<32x128xf32, #tpu.memory_space<vmem>>, vector<32x128xf32>
    %c0_15 = arith.constant 0 : index
    %c0_16 = arith.constant 0 : index
    %12 = vector.load %arg7[%c0_15, %c0_16] : memref<1x128xf32, #tpu.memory_space<vmem>>, vector<1x128xf32>
    %cst_17 = arith.constant 0.000000e+00 : f32
    %13 = vector.broadcast %cst_17 : f32 to vector<8x32xf32>
    %c0_18 = arith.constant 0 : index
    %c0_19 = arith.constant 0 : index
    %c0_20 = arith.constant 0 : index
    %14 = vector.load %arg9[%c0_18, %c0_19, %c0_20] : memref<8x8x128xf32, #tpu.memory_space<vmem>>, vector<8x1x128xf32>
    %15 = vector.shape_cast %14 : vector<8x1x128xf32> to vector<8x128xf32>
    %cst_21 = arith.constant dense<0.000000e+00> : vector<8x128xf32>
    %16 = tpu.matmul %13, %9, %cst_21 {dimension_numbers = #tpu.dot_dimension_numbers<[1], [0], [0], [1], [0, 0, 1, 1], [], []>} : vector<8x32xf32>, vector<32x128xf32>, vector<8x128xf32> -> vector<8x128xf32>
    %17 = arith.addf %15, %16 : vector<8x128xf32>
    %18 = math.tanh %17 : vector<8x128xf32>
    %19 = vector.extract_strided_slice %18 {offsets = [0, 0], sizes = [8, 32], strides = [1, 1]} : vector<8x128xf32> to vector<8x32xf32>
    %cst_22 = arith.constant 5.000000e-01 : f32
    %20 = vector.broadcast %cst_22 : f32 to vector<8x32xf32>
    %21 = arith.mulf %20, %19 : vector<8x32xf32>
    %cst_23 = arith.constant 5.000000e-01 : f32
    %22 = vector.broadcast %cst_23 : f32 to vector<8x32xf32>
    %23 = arith.addf %22, %21 : vector<8x32xf32>
    %24 = vector.extract_strided_slice %18 {offsets = [0, 32], sizes = [8, 32], strides = [1, 1]} : vector<8x128xf32> to vector<8x32xf32>
    %cst_24 = arith.constant 5.000000e-01 : f32
    %25 = vector.broadcast %cst_24 : f32 to vector<8x32xf32>
    %26 = arith.mulf %25, %24 : vector<8x32xf32>
    %cst_25 = arith.constant 5.000000e-01 : f32
    %27 = vector.broadcast %cst_25 : f32 to vector<8x32xf32>
    %28 = arith.addf %27, %26 : vector<8x32xf32>
    %29 = vector.extract_strided_slice %18 {offsets = [0, 64], sizes = [8, 32], strides = [1, 1]} : vector<8x128xf32> to vector<8x32xf32>
    %30 = vector.extract_strided_slice %18 {offsets = [0, 96], sizes = [8, 32], strides = [1, 1]} : vector<8x128xf32> to vector<8x32xf32>
    %cst_26 = arith.constant 5.000000e-01 : f32
    %31 = vector.broadcast %cst_26 : f32 to vector<8x32xf32>
    %32 = arith.mulf %31, %30 : vector<8x32xf32>
    %cst_27 = arith.constant 5.000000e-01 : f32
    %33 = vector.broadcast %cst_27 : f32 to vector<8x32xf32>
    %34 = arith.addf %33, %32 : vector<8x32xf32>
    %35 = arith.mulf %28, %13 : vector<8x32xf32>
    %36 = arith.mulf %23, %29 : vector<8x32xf32>
    %37 = arith.addf %35, %36 : vector<8x32xf32>
    %38 = math.tanh %37 : vector<8x32xf32>
    %39 = arith.mulf %34, %38 : vector<8x32xf32>
    %cst_28 = arith.constant dense<0.000000e+00> : vector<8x128xf32>
    %40 = tpu.matmul %39, %10, %cst_28 {dimension_numbers = #tpu.dot_dimension_numbers<[1], [0], [0], [1], [0, 0, 1, 1], [], []>} : vector<8x32xf32>, vector<32x128xf32>, vector<8x128xf32> -> vector<8x128xf32>
    %cst_29 = arith.constant dense<0.000000e+00> : vector<8x128xf32>
    %41 = tpu.matmul %13, %11, %cst_29 {dimension_numbers = #tpu.dot_dimension_numbers<[1], [0], [0], [1], [0, 0, 1, 1], [], []>} : vector<8x32xf32>, vector<32x128xf32>, vector<8x128xf32> -> vector<8x128xf32>
    %42 = arith.addf %40, %41 : vector<8x128xf32>
    %43 = vector.broadcast %12 : vector<1x128xf32> to vector<8x128xf32>
    %44 = arith.addf %42, %43 : vector<8x128xf32>
    %45 = math.tanh %44 : vector<8x128xf32>
    %46 = vector.extract_strided_slice %45 {offsets = [0, 0], sizes = [8, 32], strides = [1, 1]} : vector<8x128xf32> to vector<8x32xf32>
    %cst_30 = arith.constant 5.000000e-01 : f32
    %47 = vector.broadcast %cst_30 : f32 to vector<8x32xf32>
    %48 = arith.mulf %47, %46 : vector<8x32xf32>
    %cst_31 = arith.constant 5.000000e-01 : f32
    %49 = vector.broadcast %cst_31 : f32 to vector<8x32xf32>
    %50 = arith.addf %49, %48 : vector<8x32xf32>
    %51 = vector.extract_strided_slice %45 {offsets = [0, 32], sizes = [8, 32], strides = [1, 1]} : vector<8x128xf32> to vector<8x32xf32>
    %cst_32 = arith.constant 5.000000e-01 : f32
    %52 = vector.broadcast %cst_32 : f32 to vector<8x32xf32>
    %53 = arith.mulf %52, %51 : vector<8x32xf32>
    %cst_33 = arith.constant 5.000000e-01 : f32
    %54 = vector.broadcast %cst_33 : f32 to vector<8x32xf32>
    %55 = arith.addf %54, %53 : vector<8x32xf32>
    %56 = vector.extract_strided_slice %45 {offsets = [0, 64], sizes = [8, 32], strides = [1, 1]} : vector<8x128xf32> to vector<8x32xf32>
    %57 = vector.extract_strided_slice %45 {offsets = [0, 96], sizes = [8, 32], strides = [1, 1]} : vector<8x128xf32> to vector<8x32xf32>
    %cst_34 = arith.constant 5.000000e-01 : f32
    %58 = vector.broadcast %cst_34 : f32 to vector<8x32xf32>
    %59 = arith.mulf %58, %57 : vector<8x32xf32>
    %cst_35 = arith.constant 5.000000e-01 : f32
    %60 = vector.broadcast %cst_35 : f32 to vector<8x32xf32>
    %61 = arith.addf %60, %59 : vector<8x32xf32>
    %62 = arith.mulf %55, %13 : vector<8x32xf32>
    %63 = arith.mulf %50, %56 : vector<8x32xf32>
    %64 = arith.addf %62, %63 : vector<8x32xf32>
    %65 = math.tanh %64 : vector<8x32xf32>
    %66 = arith.mulf %61, %65 : vector<8x32xf32>
    %67 = arith.addf %13, %66 : vector<8x32xf32>
    %c0_36 = arith.constant 0 : index
    %c1 = arith.constant 1 : index
    %c0_37 = arith.constant 0 : index
    %68 = vector.load %arg9[%c0_36, %c1, %c0_37] : memref<8x8x128xf32, #tpu.memory_space<vmem>>, vector<8x1x128xf32>
    %69 = vector.shape_cast %68 : vector<8x1x128xf32> to vector<8x128xf32>
    %cst_38 = arith.constant dense<0.000000e+00> : vector<8x128xf32>
    %70 = tpu.matmul %39, %9, %cst_38 {dimension_numbers = #tpu.dot_dimension_numbers<[1], [0], [0], [1], [0, 0, 1, 1], [], []>} : vector<8x32xf32>, vector<32x128xf32>, vector<8x128xf32> -> vector<8x128xf32>
    %71 = arith.addf %69, %70 : vector<8x128xf32>
    %72 = math.tanh %71 : vector<8x128xf32>
    %73 = vector.extract_strided_slice %72 {offsets = [0, 0], sizes = [8, 32], strides = [1, 1]} : vector<8x128xf32> to vector<8x32xf32>
    %cst_39 = arith.constant 5.000000e-01 : f32
    %74 = vector.broadcast %cst_39 : f32 to vector<8x32xf32>
    %75 = arith.mulf %74, %73 : vector<8x32xf32>
    %cst_40 = arith.constant 5.000000e-01 : f32
    %76 = vector.broadcast %cst_40 : f32 to vector<8x32xf32>
    %77 = arith.addf %76, %75 : vector<8x32xf32>
    %78 = vector.extract_strided_slice %72 {offsets = [0, 32], sizes = [8, 32], strides = [1, 1]} : vector<8x128xf32> to vector<8x32xf32>
    %cst_41 = arith.constant 5.000000e-01 : f32
    %79 = vector.broadcast %cst_41 : f32 to vector<8x32xf32>
    %80 = arith.mulf %79, %78 : vector<8x32xf32>
    %cst_42 = arith.constant 5.000000e-01 : f32
    %81 = vector.broadcast %cst_42 : f32 to vector<8x32xf32>
    %82 = arith.addf %81, %80 : vector<8x32xf32>
    %83 = vector.extract_strided_slice %72 {offsets = [0, 64], sizes = [8, 32], strides = [1, 1]} : vector<8x128xf32> to vector<8x32xf32>
    %84 = vector.extract_strided_slice %72 {offsets = [0, 96], sizes = [8, 32], strides = [1, 1]} : vector<8x128xf32> to vector<8x32xf32>
    %cst_43 = arith.constant 5.000000e-01 : f32
    %85 = vector.broadcast %cst_43 : f32 to vector<8x32xf32>
    %86 = arith.mulf %85, %84 : vector<8x32xf32>
    %cst_44 = arith.constant 5.000000e-01 : f32
    %87 = vector.broadcast %cst_44 : f32 to vector<8x32xf32>
    %88 = arith.addf %87, %86 : vector<8x32xf32>
    %89 = arith.mulf %82, %37 : vector<8x32xf32>
    %90 = arith.mulf %77, %83 : vector<8x32xf32>
    %91 = arith.addf %89, %90 : vector<8x32xf32>
    %92 = math.tanh %91 : vector<8x32xf32>
    %93 = arith.mulf %88, %92 : vector<8x32xf32>
    %cst_45 = arith.constant dense<0.000000e+00> : vector<8x128xf32>
    %94 = tpu.matmul %93, %10, %cst_45 {dimension_numbers = #tpu.dot_dimension_numbers<[1], [0], [0], [1], [0, 0, 1, 1], [], []>} : vector<8x32xf32>, vector<32x128xf32>, vector<8x128xf32> -> vector<8x128xf32>
    %cst_46 = arith.constant dense<0.000000e+00> : vector<8x128xf32>
    %95 = tpu.matmul %66, %11, %cst_46 {dimension_numbers = #tpu.dot_dimension_numbers<[1], [0], [0], [1], [0, 0, 1, 1], [], []>} : vector<8x32xf32>, vector<32x128xf32>, vector<8x128xf32> -> vector<8x128xf32>
    %96 = arith.addf %94, %95 : vector<8x128xf32>
    %97 = vector.broadcast %12 : vector<1x128xf32> to vector<8x128xf32>
    %98 = arith.addf %96, %97 : vector<8x128xf32>
    %99 = math.tanh %98 : vector<8x128xf32>
    %100 = vector.extract_strided_slice %99 {offsets = [0, 0], sizes = [8, 32], strides = [1, 1]} : vector<8x128xf32> to vector<8x32xf32>
    %cst_47 = arith.constant 5.000000e-01 : f32
    %101 = vector.broadcast %cst_47 : f32 to vector<8x32xf32>
    %102 = arith.mulf %101, %100 : vector<8x32xf32>
    %cst_48 = arith.constant 5.000000e-01 : f32
    %103 = vector.broadcast %cst_48 : f32 to vector<8x32xf32>
    %104 = arith.addf %103, %102 : vector<8x32xf32>
    %105 = vector.extract_strided_slice %99 {offsets = [0, 32], sizes = [8, 32], strides = [1, 1]} : vector<8x128xf32> to vector<8x32xf32>
    %cst_49 = arith.constant 5.000000e-01 : f32
    %106 = vector.broadcast %cst_49 : f32 to vector<8x32xf32>
    %107 = arith.mulf %106, %105 : vector<8x32xf32>
    %cst_50 = arith.constant 5.000000e-01 : f32
    %108 = vector.broadcast %cst_50 : f32 to vector<8x32xf32>
    %109 = arith.addf %108, %107 : vector<8x32xf32>
    %110 = vector.extract_strided_slice %99 {offsets = [0, 64], sizes = [8, 32], strides = [1, 1]} : vector<8x128xf32> to vector<8x32xf32>
    %111 = vector.extract_strided_slice %99 {offsets = [0, 96], sizes = [8, 32], strides = [1, 1]} : vector<8x128xf32> to vector<8x32xf32>
    %cst_51 = arith.constant 5.000000e-01 : f32
    %112 = vector.broadcast %cst_51 : f32 to vector<8x32xf32>
    %113 = arith.mulf %112, %111 : vector<8x32xf32>
    %cst_52 = arith.constant 5.000000e-01 : f32
    %114 = vector.broadcast %cst_52 : f32 to vector<8x32xf32>
    %115 = arith.addf %114, %113 : vector<8x32xf32>
    %116 = arith.mulf %109, %64 : vector<8x32xf32>
    %117 = arith.mulf %104, %110 : vector<8x32xf32>
    %118 = arith.addf %116, %117 : vector<8x32xf32>
    %119 = math.tanh %118 : vector<8x32xf32>
    %120 = arith.mulf %115, %119 : vector<8x32xf32>
    %121 = arith.addf %67, %120 : vector<8x32xf32>
    %c0_53 = arith.constant 0 : index
    %c2 = arith.constant 2 : index
    %c0_54 = arith.constant 0 : index
    %122 = vector.load %arg9[%c0_53, %c2, %c0_54] : memref<8x8x128xf32, #tpu.memory_space<vmem>>, vector<8x1x128xf32>
    %123 = vector.shape_cast %122 : vector<8x1x128xf32> to vector<8x128xf32>
    %cst_55 = arith.constant dense<0.000000e+00> : vector<8x128xf32>
    %124 = tpu.matmul %93, %9, %cst_55 {dimension_numbers = #tpu.dot_dimension_numbers<[1], [0], [0], [1], [0, 0, 1, 1], [], []>} : vector<8x32xf32>, vector<32x128xf32>, vector<8x128xf32> -> vector<8x128xf32>
    %125 = arith.addf %123, %124 : vector<8x128xf32>
    %126 = math.tanh %125 : vector<8x128xf32>
    %127 = vector.extract_strided_slice %126 {offsets = [0, 0], sizes = [8, 32], strides = [1, 1]} : vector<8x128xf32> to vector<8x32xf32>
    %cst_56 = arith.constant 5.000000e-01 : f32
    %128 = vector.broadcast %cst_56 : f32 to vector<8x32xf32>
    %129 = arith.mulf %128, %127 : vector<8x32xf32>
    %cst_57 = arith.constant 5.000000e-01 : f32
    %130 = vector.broadcast %cst_57 : f32 to vector<8x32xf32>
    %131 = arith.addf %130, %129 : vector<8x32xf32>
    %132 = vector.extract_strided_slice %126 {offsets = [0, 32], sizes = [8, 32], strides = [1, 1]} : vector<8x128xf32> to vector<8x32xf32>
    %cst_58 = arith.constant 5.000000e-01 : f32
    %133 = vector.broadcast %cst_58 : f32 to vector<8x32xf32>
    %134 = arith.mulf %133, %132 : vector<8x32xf32>
    %cst_59 = arith.constant 5.000000e-01 : f32
    %135 = vector.broadcast %cst_59 : f32 to vector<8x32xf32>
    %136 = arith.addf %135, %134 : vector<8x32xf32>
    %137 = vector.extract_strided_slice %126 {offsets = [0, 64], sizes = [8, 32], strides = [1, 1]} : vector<8x128xf32> to vector<8x32xf32>
    %138 = vector.extract_strided_slice %126 {offsets = [0, 96], sizes = [8, 32], strides = [1, 1]} : vector<8x128xf32> to vector<8x32xf32>
    %cst_60 = arith.constant 5.000000e-01 : f32
    %139 = vector.broadcast %cst_60 : f32 to vector<8x32xf32>
    %140 = arith.mulf %139, %138 : vector<8x32xf32>
    %cst_61 = arith.constant 5.000000e-01 : f32
    %141 = vector.broadcast %cst_61 : f32 to vector<8x32xf32>
    %142 = arith.addf %141, %140 : vector<8x32xf32>
    %143 = arith.mulf %136, %91 : vector<8x32xf32>
    %144 = arith.mulf %131, %137 : vector<8x32xf32>
    %145 = arith.addf %143, %144 : vector<8x32xf32>
    %146 = math.tanh %145 : vector<8x32xf32>
    %147 = arith.mulf %142, %146 : vector<8x32xf32>
    %cst_62 = arith.constant dense<0.000000e+00> : vector<8x128xf32>
    %148 = tpu.matmul %147, %10, %cst_62 {dimension_numbers = #tpu.dot_dimension_numbers<[1], [0], [0], [1], [0, 0, 1, 1], [], []>} : vector<8x32xf32>, vector<32x128xf32>, vector<8x128xf32> -> vector<8x128xf32>
    %cst_63 = arith.constant dense<0.000000e+00> : vector<8x128xf32>
    %149 = tpu.matmul %120, %11, %cst_63 {dimension_numbers = #tpu.dot_dimension_numbers<[1], [0], [0], [1], [0, 0, 1, 1], [], []>} : vector<8x32xf32>, vector<32x128xf32>, vector<8x128xf32> -> vector<8x128xf32>
    %150 = arith.addf %148, %149 : vector<8x128xf32>
    %151 = vector.broadcast %12 : vector<1x128xf32> to vector<8x128xf32>
    %152 = arith.addf %150, %151 : vector<8x128xf32>
    %153 = math.tanh %152 : vector<8x128xf32>
    %154 = vector.extract_strided_slice %153 {offsets = [0, 0], sizes = [8, 32], strides = [1, 1]} : vector<8x128xf32> to vector<8x32xf32>
    %cst_64 = arith.constant 5.000000e-01 : f32
    %155 = vector.broadcast %cst_64 : f32 to vector<8x32xf32>
    %156 = arith.mulf %155, %154 : vector<8x32xf32>
    %cst_65 = arith.constant 5.000000e-01 : f32
    %157 = vector.broadcast %cst_65 : f32 to vector<8x32xf32>
    %158 = arith.addf %157, %156 : vector<8x32xf32>
    %159 = vector.extract_strided_slice %153 {offsets = [0, 32], sizes = [8, 32], strides = [1, 1]} : vector<8x128xf32> to vector<8x32xf32>
    %cst_66 = arith.constant 5.000000e-01 : f32
    %160 = vector.broadcast %cst_66 : f32 to vector<8x32xf32>
    %161 = arith.mulf %160, %159 : vector<8x32xf32>
    %cst_67 = arith.constant 5.000000e-01 : f32
    %162 = vector.broadcast %cst_67 : f32 to vector<8x32xf32>
    %163 = arith.addf %162, %161 : vector<8x32xf32>
    %164 = vector.extract_strided_slice %153 {offsets = [0, 64], sizes = [8, 32], strides = [1, 1]} : vector<8x128xf32> to vector<8x32xf32>
    %165 = vector.extract_strided_slice %153 {offsets = [0, 96], sizes = [8, 32], strides = [1, 1]} : vector<8x128xf32> to vector<8x32xf32>
    %cst_68 = arith.constant 5.000000e-01 : f32
    %166 = vector.broadcast %cst_68 : f32 to vector<8x32xf32>
    %167 = arith.mulf %166, %165 : vector<8x32xf32>
    %cst_69 = arith.constant 5.000000e-01 : f32
    %168 = vector.broadcast %cst_69 : f32 to vector<8x32xf32>
    %169 = arith.addf %168, %167 : vector<8x32xf32>
    %170 = arith.mulf %163, %118 : vector<8x32xf32>
    %171 = arith.mulf %158, %164 : vector<8x32xf32>
    %172 = arith.addf %170, %171 : vector<8x32xf32>
    %173 = math.tanh %172 : vector<8x32xf32>
    %174 = arith.mulf %169, %173 : vector<8x32xf32>
    %175 = arith.addf %121, %174 : vector<8x32xf32>
    %c0_70 = arith.constant 0 : index
    %c3 = arith.constant 3 : index
    %c0_71 = arith.constant 0 : index
    %176 = vector.load %arg9[%c0_70, %c3, %c0_71] : memref<8x8x128xf32, #tpu.memory_space<vmem>>, vector<8x1x128xf32>
    %177 = vector.shape_cast %176 : vector<8x1x128xf32> to vector<8x128xf32>
    %cst_72 = arith.constant dense<0.000000e+00> : vector<8x128xf32>
    %178 = tpu.matmul %147, %9, %cst_72 {dimension_numbers = #tpu.dot_dimension_numbers<[1], [0], [0], [1], [0, 0, 1, 1], [], []>} : vector<8x32xf32>, vector<32x128xf32>, vector<8x128xf32> -> vector<8x128xf32>
    %179 = arith.addf %177, %178 : vector<8x128xf32>
    %180 = math.tanh %179 : vector<8x128xf32>
    %181 = vector.extract_strided_slice %180 {offsets = [0, 0], sizes = [8, 32], strides = [1, 1]} : vector<8x128xf32> to vector<8x32xf32>
    %cst_73 = arith.constant 5.000000e-01 : f32
    %182 = vector.broadcast %cst_73 : f32 to vector<8x32xf32>
    %183 = arith.mulf %182, %181 : vector<8x32xf32>
    %cst_74 = arith.constant 5.000000e-01 : f32
    %184 = vector.broadcast %cst_74 : f32 to vector<8x32xf32>
    %185 = arith.addf %184, %183 : vector<8x32xf32>
    %186 = vector.extract_strided_slice %180 {offsets = [0, 32], sizes = [8, 32], strides = [1, 1]} : vector<8x128xf32> to vector<8x32xf32>
    %cst_75 = arith.constant 5.000000e-01 : f32
    %187 = vector.broadcast %cst_75 : f32 to vector<8x32xf32>
    %188 = arith.mulf %187, %186 : vector<8x32xf32>
    %cst_76 = arith.constant 5.000000e-01 : f32
    %189 = vector.broadcast %cst_76 : f32 to vector<8x32xf32>
    %190 = arith.addf %189, %188 : vector<8x32xf32>
    %191 = vector.extract_strided_slice %180 {offsets = [0, 64], sizes = [8, 32], strides = [1, 1]} : vector<8x128xf32> to vector<8x32xf32>
    %192 = vector.extract_strided_slice %180 {offsets = [0, 96], sizes = [8, 32], strides = [1, 1]} : vector<8x128xf32> to vector<8x32xf32>
    %cst_77 = arith.constant 5.000000e-01 : f32
    %193 = vector.broadcast %cst_77 : f32 to vector<8x32xf32>
    %194 = arith.mulf %193, %192 : vector<8x32xf32>
    %cst_78 = arith.constant 5.000000e-01 : f32
    %195 = vector.broadcast %cst_78 : f32 to vector<8x32xf32>
    %196 = arith.addf %195, %194 : vector<8x32xf32>
    %197 = arith.mulf %190, %145 : vector<8x32xf32>
    %198 = arith.mulf %185, %191 : vector<8x32xf32>
    %199 = arith.addf %197, %198 : vector<8x32xf32>
    %200 = math.tanh %199 : vector<8x32xf32>
    %201 = arith.mulf %196, %200 : vector<8x32xf32>
    %cst_79 = arith.constant dense<0.000000e+00> : vector<8x128xf32>
    %202 = tpu.matmul %201, %10, %cst_79 {dimension_numbers = #tpu.dot_dimension_numbers<[1], [0], [0], [1], [0, 0, 1, 1], [], []>} : vector<8x32xf32>, vector<32x128xf32>, vector<8x128xf32> -> vector<8x128xf32>
    %cst_80 = arith.constant dense<0.000000e+00> : vector<8x128xf32>
    %203 = tpu.matmul %174, %11, %cst_80 {dimension_numbers = #tpu.dot_dimension_numbers<[1], [0], [0], [1], [0, 0, 1, 1], [], []>} : vector<8x32xf32>, vector<32x128xf32>, vector<8x128xf32> -> vector<8x128xf32>
    %204 = arith.addf %202, %203 : vector<8x128xf32>
    %205 = vector.broadcast %12 : vector<1x128xf32> to vector<8x128xf32>
    %206 = arith.addf %204, %205 : vector<8x128xf32>
    %207 = math.tanh %206 : vector<8x128xf32>
    %208 = vector.extract_strided_slice %207 {offsets = [0, 0], sizes = [8, 32], strides = [1, 1]} : vector<8x128xf32> to vector<8x32xf32>
    %cst_81 = arith.constant 5.000000e-01 : f32
    %209 = vector.broadcast %cst_81 : f32 to vector<8x32xf32>
    %210 = arith.mulf %209, %208 : vector<8x32xf32>
    %cst_82 = arith.constant 5.000000e-01 : f32
    %211 = vector.broadcast %cst_82 : f32 to vector<8x32xf32>
    %212 = arith.addf %211, %210 : vector<8x32xf32>
    %213 = vector.extract_strided_slice %207 {offsets = [0, 32], sizes = [8, 32], strides = [1, 1]} : vector<8x128xf32> to vector<8x32xf32>
    %cst_83 = arith.constant 5.000000e-01 : f32
    %214 = vector.broadcast %cst_83 : f32 to vector<8x32xf32>
    %215 = arith.mulf %214, %213 : vector<8x32xf32>
    %cst_84 = arith.constant 5.000000e-01 : f32
    %216 = vector.broadcast %cst_84 : f32 to vector<8x32xf32>
    %217 = arith.addf %216, %215 : vector<8x32xf32>
    %218 = vector.extract_strided_slice %207 {offsets = [0, 64], sizes = [8, 32], strides = [1, 1]} : vector<8x128xf32> to vector<8x32xf32>
    %219 = vector.extract_strided_slice %207 {offsets = [0, 96], sizes = [8, 32], strides = [1, 1]} : vector<8x128xf32> to vector<8x32xf32>
    %cst_85 = arith.constant 5.000000e-01 : f32
    %220 = vector.broadcast %cst_85 : f32 to vector<8x32xf32>
    %221 = arith.mulf %220, %219 : vector<8x32xf32>
    %cst_86 = arith.constant 5.000000e-01 : f32
    %222 = vector.broadcast %cst_86 : f32 to vector<8x32xf32>
    %223 = arith.addf %222, %221 : vector<8x32xf32>
    %224 = arith.mulf %217, %172 : vector<8x32xf32>
    %225 = arith.mulf %212, %218 : vector<8x32xf32>
    %226 = arith.addf %224, %225 : vector<8x32xf32>
    %227 = math.tanh %226 : vector<8x32xf32>
    %228 = arith.mulf %223, %227 : vector<8x32xf32>
    %229 = arith.addf %175, %228 : vector<8x32xf32>
    %c0_87 = arith.constant 0 : index
    %c4 = arith.constant 4 : index
    %c0_88 = arith.constant 0 : index
    %230 = vector.load %arg9[%c0_87, %c4, %c0_88] : memref<8x8x128xf32, #tpu.memory_space<vmem>>, vector<8x1x128xf32>
    %231 = vector.shape_cast %230 : vector<8x1x128xf32> to vector<8x128xf32>
    %cst_89 = arith.constant dense<0.000000e+00> : vector<8x128xf32>
    %232 = tpu.matmul %201, %9, %cst_89 {dimension_numbers = #tpu.dot_dimension_numbers<[1], [0], [0], [1], [0, 0, 1, 1], [], []>} : vector<8x32xf32>, vector<32x128xf32>, vector<8x128xf32> -> vector<8x128xf32>
    %233 = arith.addf %231, %232 : vector<8x128xf32>
    %234 = math.tanh %233 : vector<8x128xf32>
    %235 = vector.extract_strided_slice %234 {offsets = [0, 0], sizes = [8, 32], strides = [1, 1]} : vector<8x128xf32> to vector<8x32xf32>
    %cst_90 = arith.constant 5.000000e-01 : f32
    %236 = vector.broadcast %cst_90 : f32 to vector<8x32xf32>
    %237 = arith.mulf %236, %235 : vector<8x32xf32>
    %cst_91 = arith.constant 5.000000e-01 : f32
    %238 = vector.broadcast %cst_91 : f32 to vector<8x32xf32>
    %239 = arith.addf %238, %237 : vector<8x32xf32>
    %240 = vector.extract_strided_slice %234 {offsets = [0, 32], sizes = [8, 32], strides = [1, 1]} : vector<8x128xf32> to vector<8x32xf32>
    %cst_92 = arith.constant 5.000000e-01 : f32
    %241 = vector.broadcast %cst_92 : f32 to vector<8x32xf32>
    %242 = arith.mulf %241, %240 : vector<8x32xf32>
    %cst_93 = arith.constant 5.000000e-01 : f32
    %243 = vector.broadcast %cst_93 : f32 to vector<8x32xf32>
    %244 = arith.addf %243, %242 : vector<8x32xf32>
    %245 = vector.extract_strided_slice %234 {offsets = [0, 64], sizes = [8, 32], strides = [1, 1]} : vector<8x128xf32> to vector<8x32xf32>
    %246 = vector.extract_strided_slice %234 {offsets = [0, 96], sizes = [8, 32], strides = [1, 1]} : vector<8x128xf32> to vector<8x32xf32>
    %cst_94 = arith.constant 5.000000e-01 : f32
    %247 = vector.broadcast %cst_94 : f32 to vector<8x32xf32>
    %248 = arith.mulf %247, %246 : vector<8x32xf32>
    %cst_95 = arith.constant 5.000000e-01 : f32
    %249 = vector.broadcast %cst_95 : f32 to vector<8x32xf32>
    %250 = arith.addf %249, %248 : vector<8x32xf32>
    %251 = arith.mulf %244, %199 : vector<8x32xf32>
    %252 = arith.mulf %239, %245 : vector<8x32xf32>
    %253 = arith.addf %251, %252 : vector<8x32xf32>
    %254 = math.tanh %253 : vector<8x32xf32>
    %255 = arith.mulf %250, %254 : vector<8x32xf32>
    %cst_96 = arith.constant dense<0.000000e+00> : vector<8x128xf32>
    %256 = tpu.matmul %255, %10, %cst_96 {dimension_numbers = #tpu.dot_dimension_numbers<[1], [0], [0], [1], [0, 0, 1, 1], [], []>} : vector<8x32xf32>, vector<32x128xf32>, vector<8x128xf32> -> vector<8x128xf32>
    %cst_97 = arith.constant dense<0.000000e+00> : vector<8x128xf32>
    %257 = tpu.matmul %228, %11, %cst_97 {dimension_numbers = #tpu.dot_dimension_numbers<[1], [0], [0], [1], [0, 0, 1, 1], [], []>} : vector<8x32xf32>, vector<32x128xf32>, vector<8x128xf32> -> vector<8x128xf32>
    %258 = arith.addf %256, %257 : vector<8x128xf32>
    %259 = vector.broadcast %12 : vector<1x128xf32> to vector<8x128xf32>
    %260 = arith.addf %258, %259 : vector<8x128xf32>
    %261 = math.tanh %260 : vector<8x128xf32>
    %262 = vector.extract_strided_slice %261 {offsets = [0, 0], sizes = [8, 32], strides = [1, 1]} : vector<8x128xf32> to vector<8x32xf32>
    %cst_98 = arith.constant 5.000000e-01 : f32
    %263 = vector.broadcast %cst_98 : f32 to vector<8x32xf32>
    %264 = arith.mulf %263, %262 : vector<8x32xf32>
    %cst_99 = arith.constant 5.000000e-01 : f32
    %265 = vector.broadcast %cst_99 : f32 to vector<8x32xf32>
    %266 = arith.addf %265, %264 : vector<8x32xf32>
    %267 = vector.extract_strided_slice %261 {offsets = [0, 32], sizes = [8, 32], strides = [1, 1]} : vector<8x128xf32> to vector<8x32xf32>
    %cst_100 = arith.constant 5.000000e-01 : f32
    %268 = vector.broadcast %cst_100 : f32 to vector<8x32xf32>
    %269 = arith.mulf %268, %267 : vector<8x32xf32>
    %cst_101 = arith.constant 5.000000e-01 : f32
    %270 = vector.broadcast %cst_101 : f32 to vector<8x32xf32>
    %271 = arith.addf %270, %269 : vector<8x32xf32>
    %272 = vector.extract_strided_slice %261 {offsets = [0, 64], sizes = [8, 32], strides = [1, 1]} : vector<8x128xf32> to vector<8x32xf32>
    %273 = vector.extract_strided_slice %261 {offsets = [0, 96], sizes = [8, 32], strides = [1, 1]} : vector<8x128xf32> to vector<8x32xf32>
    %cst_102 = arith.constant 5.000000e-01 : f32
    %274 = vector.broadcast %cst_102 : f32 to vector<8x32xf32>
    %275 = arith.mulf %274, %273 : vector<8x32xf32>
    %cst_103 = arith.constant 5.000000e-01 : f32
    %276 = vector.broadcast %cst_103 : f32 to vector<8x32xf32>
    %277 = arith.addf %276, %275 : vector<8x32xf32>
    %278 = arith.mulf %271, %226 : vector<8x32xf32>
    %279 = arith.mulf %266, %272 : vector<8x32xf32>
    %280 = arith.addf %278, %279 : vector<8x32xf32>
    %281 = math.tanh %280 : vector<8x32xf32>
    %282 = arith.mulf %277, %281 : vector<8x32xf32>
    %283 = arith.addf %229, %282 : vector<8x32xf32>
    %c0_104 = arith.constant 0 : index
    %c5 = arith.constant 5 : index
    %c0_105 = arith.constant 0 : index
    %284 = vector.load %arg9[%c0_104, %c5, %c0_105] : memref<8x8x128xf32, #tpu.memory_space<vmem>>, vector<8x1x128xf32>
    %285 = vector.shape_cast %284 : vector<8x1x128xf32> to vector<8x128xf32>
    %cst_106 = arith.constant dense<0.000000e+00> : vector<8x128xf32>
    %286 = tpu.matmul %255, %9, %cst_106 {dimension_numbers = #tpu.dot_dimension_numbers<[1], [0], [0], [1], [0, 0, 1, 1], [], []>} : vector<8x32xf32>, vector<32x128xf32>, vector<8x128xf32> -> vector<8x128xf32>
    %287 = arith.addf %285, %286 : vector<8x128xf32>
    %288 = math.tanh %287 : vector<8x128xf32>
    %289 = vector.extract_strided_slice %288 {offsets = [0, 0], sizes = [8, 32], strides = [1, 1]} : vector<8x128xf32> to vector<8x32xf32>
    %cst_107 = arith.constant 5.000000e-01 : f32
    %290 = vector.broadcast %cst_107 : f32 to vector<8x32xf32>
    %291 = arith.mulf %290, %289 : vector<8x32xf32>
    %cst_108 = arith.constant 5.000000e-01 : f32
    %292 = vector.broadcast %cst_108 : f32 to vector<8x32xf32>
    %293 = arith.addf %292, %291 : vector<8x32xf32>
    %294 = vector.extract_strided_slice %288 {offsets = [0, 32], sizes = [8, 32], strides = [1, 1]} : vector<8x128xf32> to vector<8x32xf32>
    %cst_109 = arith.constant 5.000000e-01 : f32
    %295 = vector.broadcast %cst_109 : f32 to vector<8x32xf32>
    %296 = arith.mulf %295, %294 : vector<8x32xf32>
    %cst_110 = arith.constant 5.000000e-01 : f32
    %297 = vector.broadcast %cst_110 : f32 to vector<8x32xf32>
    %298 = arith.addf %297, %296 : vector<8x32xf32>
    %299 = vector.extract_strided_slice %288 {offsets = [0, 64], sizes = [8, 32], strides = [1, 1]} : vector<8x128xf32> to vector<8x32xf32>
    %300 = vector.extract_strided_slice %288 {offsets = [0, 96], sizes = [8, 32], strides = [1, 1]} : vector<8x128xf32> to vector<8x32xf32>
    %cst_111 = arith.constant 5.000000e-01 : f32
    %301 = vector.broadcast %cst_111 : f32 to vector<8x32xf32>
    %302 = arith.mulf %301, %300 : vector<8x32xf32>
    %cst_112 = arith.constant 5.000000e-01 : f32
    %303 = vector.broadcast %cst_112 : f32 to vector<8x32xf32>
    %304 = arith.addf %303, %302 : vector<8x32xf32>
    %305 = arith.mulf %298, %253 : vector<8x32xf32>
    %306 = arith.mulf %293, %299 : vector<8x32xf32>
    %307 = arith.addf %305, %306 : vector<8x32xf32>
    %308 = math.tanh %307 : vector<8x32xf32>
    %309 = arith.mulf %304, %308 : vector<8x32xf32>
    %cst_113 = arith.constant dense<0.000000e+00> : vector<8x128xf32>
    %310 = tpu.matmul %309, %10, %cst_113 {dimension_numbers = #tpu.dot_dimension_numbers<[1], [0], [0], [1], [0, 0, 1, 1], [], []>} : vector<8x32xf32>, vector<32x128xf32>, vector<8x128xf32> -> vector<8x128xf32>
    %cst_114 = arith.constant dense<0.000000e+00> : vector<8x128xf32>
    %311 = tpu.matmul %282, %11, %cst_114 {dimension_numbers = #tpu.dot_dimension_numbers<[1], [0], [0], [1], [0, 0, 1, 1], [], []>} : vector<8x32xf32>, vector<32x128xf32>, vector<8x128xf32> -> vector<8x128xf32>
    %312 = arith.addf %310, %311 : vector<8x128xf32>
    %313 = vector.broadcast %12 : vector<1x128xf32> to vector<8x128xf32>
    %314 = arith.addf %312, %313 : vector<8x128xf32>
    %315 = math.tanh %314 : vector<8x128xf32>
    %316 = vector.extract_strided_slice %315 {offsets = [0, 0], sizes = [8, 32], strides = [1, 1]} : vector<8x128xf32> to vector<8x32xf32>
    %cst_115 = arith.constant 5.000000e-01 : f32
    %317 = vector.broadcast %cst_115 : f32 to vector<8x32xf32>
    %318 = arith.mulf %317, %316 : vector<8x32xf32>
    %cst_116 = arith.constant 5.000000e-01 : f32
    %319 = vector.broadcast %cst_116 : f32 to vector<8x32xf32>
    %320 = arith.addf %319, %318 : vector<8x32xf32>
    %321 = vector.extract_strided_slice %315 {offsets = [0, 32], sizes = [8, 32], strides = [1, 1]} : vector<8x128xf32> to vector<8x32xf32>
    %cst_117 = arith.constant 5.000000e-01 : f32
    %322 = vector.broadcast %cst_117 : f32 to vector<8x32xf32>
    %323 = arith.mulf %322, %321 : vector<8x32xf32>
    %cst_118 = arith.constant 5.000000e-01 : f32
    %324 = vector.broadcast %cst_118 : f32 to vector<8x32xf32>
    %325 = arith.addf %324, %323 : vector<8x32xf32>
    %326 = vector.extract_strided_slice %315 {offsets = [0, 64], sizes = [8, 32], strides = [1, 1]} : vector<8x128xf32> to vector<8x32xf32>
    %327 = vector.extract_strided_slice %315 {offsets = [0, 96], sizes = [8, 32], strides = [1, 1]} : vector<8x128xf32> to vector<8x32xf32>
    %cst_119 = arith.constant 5.000000e-01 : f32
    %328 = vector.broadcast %cst_119 : f32 to vector<8x32xf32>
    %329 = arith.mulf %328, %327 : vector<8x32xf32>
    %cst_120 = arith.constant 5.000000e-01 : f32
    %330 = vector.broadcast %cst_120 : f32 to vector<8x32xf32>
    %331 = arith.addf %330, %329 : vector<8x32xf32>
    %332 = arith.mulf %325, %280 : vector<8x32xf32>
    %333 = arith.mulf %320, %326 : vector<8x32xf32>
    %334 = arith.addf %332, %333 : vector<8x32xf32>
    %335 = math.tanh %334 : vector<8x32xf32>
    %336 = arith.mulf %331, %335 : vector<8x32xf32>
    %337 = arith.addf %283, %336 : vector<8x32xf32>
    %c0_121 = arith.constant 0 : index
    %c6 = arith.constant 6 : index
    %c0_122 = arith.constant 0 : index
    %338 = vector.load %arg9[%c0_121, %c6, %c0_122] : memref<8x8x128xf32, #tpu.memory_space<vmem>>, vector<8x1x128xf32>
    %339 = vector.shape_cast %338 : vector<8x1x128xf32> to vector<8x128xf32>
    %cst_123 = arith.constant dense<0.000000e+00> : vector<8x128xf32>
    %340 = tpu.matmul %309, %9, %cst_123 {dimension_numbers = #tpu.dot_dimension_numbers<[1], [0], [0], [1], [0, 0, 1, 1], [], []>} : vector<8x32xf32>, vector<32x128xf32>, vector<8x128xf32> -> vector<8x128xf32>
    %341 = arith.addf %339, %340 : vector<8x128xf32>
    %342 = math.tanh %341 : vector<8x128xf32>
    %343 = vector.extract_strided_slice %342 {offsets = [0, 0], sizes = [8, 32], strides = [1, 1]} : vector<8x128xf32> to vector<8x32xf32>
    %cst_124 = arith.constant 5.000000e-01 : f32
    %344 = vector.broadcast %cst_124 : f32 to vector<8x32xf32>
    %345 = arith.mulf %344, %343 : vector<8x32xf32>
    %cst_125 = arith.constant 5.000000e-01 : f32
    %346 = vector.broadcast %cst_125 : f32 to vector<8x32xf32>
    %347 = arith.addf %346, %345 : vector<8x32xf32>
    %348 = vector.extract_strided_slice %342 {offsets = [0, 32], sizes = [8, 32], strides = [1, 1]} : vector<8x128xf32> to vector<8x32xf32>
    %cst_126 = arith.constant 5.000000e-01 : f32
    %349 = vector.broadcast %cst_126 : f32 to vector<8x32xf32>
    %350 = arith.mulf %349, %348 : vector<8x32xf32>
    %cst_127 = arith.constant 5.000000e-01 : f32
    %351 = vector.broadcast %cst_127 : f32 to vector<8x32xf32>
    %352 = arith.addf %351, %350 : vector<8x32xf32>
    %353 = vector.extract_strided_slice %342 {offsets = [0, 64], sizes = [8, 32], strides = [1, 1]} : vector<8x128xf32> to vector<8x32xf32>
    %354 = vector.extract_strided_slice %342 {offsets = [0, 96], sizes = [8, 32], strides = [1, 1]} : vector<8x128xf32> to vector<8x32xf32>
    %cst_128 = arith.constant 5.000000e-01 : f32
    %355 = vector.broadcast %cst_128 : f32 to vector<8x32xf32>
    %356 = arith.mulf %355, %354 : vector<8x32xf32>
    %cst_129 = arith.constant 5.000000e-01 : f32
    %357 = vector.broadcast %cst_129 : f32 to vector<8x32xf32>
    %358 = arith.addf %357, %356 : vector<8x32xf32>
    %359 = arith.mulf %352, %307 : vector<8x32xf32>
    %360 = arith.mulf %347, %353 : vector<8x32xf32>
    %361 = arith.addf %359, %360 : vector<8x32xf32>
    %362 = math.tanh %361 : vector<8x32xf32>
    %363 = arith.mulf %358, %362 : vector<8x32xf32>
    %cst_130 = arith.constant dense<0.000000e+00> : vector<8x128xf32>
    %364 = tpu.matmul %363, %10, %cst_130 {dimension_numbers = #tpu.dot_dimension_numbers<[1], [0], [0], [1], [0, 0, 1, 1], [], []>} : vector<8x32xf32>, vector<32x128xf32>, vector<8x128xf32> -> vector<8x128xf32>
    %cst_131 = arith.constant dense<0.000000e+00> : vector<8x128xf32>
    %365 = tpu.matmul %336, %11, %cst_131 {dimension_numbers = #tpu.dot_dimension_numbers<[1], [0], [0], [1], [0, 0, 1, 1], [], []>} : vector<8x32xf32>, vector<32x128xf32>, vector<8x128xf32> -> vector<8x128xf32>
    %366 = arith.addf %364, %365 : vector<8x128xf32>
    %367 = vector.broadcast %12 : vector<1x128xf32> to vector<8x128xf32>
    %368 = arith.addf %366, %367 : vector<8x128xf32>
    %369 = math.tanh %368 : vector<8x128xf32>
    %370 = vector.extract_strided_slice %369 {offsets = [0, 0], sizes = [8, 32], strides = [1, 1]} : vector<8x128xf32> to vector<8x32xf32>
    %cst_132 = arith.constant 5.000000e-01 : f32
    %371 = vector.broadcast %cst_132 : f32 to vector<8x32xf32>
    %372 = arith.mulf %371, %370 : vector<8x32xf32>
    %cst_133 = arith.constant 5.000000e-01 : f32
    %373 = vector.broadcast %cst_133 : f32 to vector<8x32xf32>
    %374 = arith.addf %373, %372 : vector<8x32xf32>
    %375 = vector.extract_strided_slice %369 {offsets = [0, 32], sizes = [8, 32], strides = [1, 1]} : vector<8x128xf32> to vector<8x32xf32>
    %cst_134 = arith.constant 5.000000e-01 : f32
    %376 = vector.broadcast %cst_134 : f32 to vector<8x32xf32>
    %377 = arith.mulf %376, %375 : vector<8x32xf32>
    %cst_135 = arith.constant 5.000000e-01 : f32
    %378 = vector.broadcast %cst_135 : f32 to vector<8x32xf32>
    %379 = arith.addf %378, %377 : vector<8x32xf32>
    %380 = vector.extract_strided_slice %369 {offsets = [0, 64], sizes = [8, 32], strides = [1, 1]} : vector<8x128xf32> to vector<8x32xf32>
    %381 = vector.extract_strided_slice %369 {offsets = [0, 96], sizes = [8, 32], strides = [1, 1]} : vector<8x128xf32> to vector<8x32xf32>
    %cst_136 = arith.constant 5.000000e-01 : f32
    %382 = vector.broadcast %cst_136 : f32 to vector<8x32xf32>
    %383 = arith.mulf %382, %381 : vector<8x32xf32>
    %cst_137 = arith.constant 5.000000e-01 : f32
    %384 = vector.broadcast %cst_137 : f32 to vector<8x32xf32>
    %385 = arith.addf %384, %383 : vector<8x32xf32>
    %386 = arith.mulf %379, %334 : vector<8x32xf32>
    %387 = arith.mulf %374, %380 : vector<8x32xf32>
    %388 = arith.addf %386, %387 : vector<8x32xf32>
    %389 = math.tanh %388 : vector<8x32xf32>
    %390 = arith.mulf %385, %389 : vector<8x32xf32>
    %391 = arith.addf %337, %390 : vector<8x32xf32>
    %c0_138 = arith.constant 0 : index
    %c7 = arith.constant 7 : index
    %c0_139 = arith.constant 0 : index
    %392 = vector.load %arg9[%c0_138, %c7, %c0_139] : memref<8x8x128xf32, #tpu.memory_space<vmem>>, vector<8x1x128xf32>
    %393 = vector.shape_cast %392 : vector<8x1x128xf32> to vector<8x128xf32>
    %cst_140 = arith.constant dense<0.000000e+00> : vector<8x128xf32>
    %394 = tpu.matmul %363, %9, %cst_140 {dimension_numbers = #tpu.dot_dimension_numbers<[1], [0], [0], [1], [0, 0, 1, 1], [], []>} : vector<8x32xf32>, vector<32x128xf32>, vector<8x128xf32> -> vector<8x128xf32>
    %395 = arith.addf %393, %394 : vector<8x128xf32>
    %396 = math.tanh %395 : vector<8x128xf32>
    %397 = vector.extract_strided_slice %396 {offsets = [0, 0], sizes = [8, 32], strides = [1, 1]} : vector<8x128xf32> to vector<8x32xf32>
    %cst_141 = arith.constant 5.000000e-01 : f32
    %398 = vector.broadcast %cst_141 : f32 to vector<8x32xf32>
    %399 = arith.mulf %398, %397 : vector<8x32xf32>
    %cst_142 = arith.constant 5.000000e-01 : f32
    %400 = vector.broadcast %cst_142 : f32 to vector<8x32xf32>
    %401 = arith.addf %400, %399 : vector<8x32xf32>
    %402 = vector.extract_strided_slice %396 {offsets = [0, 32], sizes = [8, 32], strides = [1, 1]} : vector<8x128xf32> to vector<8x32xf32>
    %cst_143 = arith.constant 5.000000e-01 : f32
    %403 = vector.broadcast %cst_143 : f32 to vector<8x32xf32>
    %404 = arith.mulf %403, %402 : vector<8x32xf32>
    %cst_144 = arith.constant 5.000000e-01 : f32
    %405 = vector.broadcast %cst_144 : f32 to vector<8x32xf32>
    %406 = arith.addf %405, %404 : vector<8x32xf32>
    %407 = vector.extract_strided_slice %396 {offsets = [0, 64], sizes = [8, 32], strides = [1, 1]} : vector<8x128xf32> to vector<8x32xf32>
    %408 = vector.extract_strided_slice %396 {offsets = [0, 96], sizes = [8, 32], strides = [1, 1]} : vector<8x128xf32> to vector<8x32xf32>
    %cst_145 = arith.constant 5.000000e-01 : f32
    %409 = vector.broadcast %cst_145 : f32 to vector<8x32xf32>
    %410 = arith.mulf %409, %408 : vector<8x32xf32>
    %cst_146 = arith.constant 5.000000e-01 : f32
    %411 = vector.broadcast %cst_146 : f32 to vector<8x32xf32>
    %412 = arith.addf %411, %410 : vector<8x32xf32>
    %413 = arith.mulf %406, %361 : vector<8x32xf32>
    %414 = arith.mulf %401, %407 : vector<8x32xf32>
    %415 = arith.addf %413, %414 : vector<8x32xf32>
    %416 = math.tanh %415 : vector<8x32xf32>
    %417 = arith.mulf %412, %416 : vector<8x32xf32>
    %cst_147 = arith.constant dense<0.000000e+00> : vector<8x128xf32>
    %418 = tpu.matmul %417, %10, %cst_147 {dimension_numbers = #tpu.dot_dimension_numbers<[1], [0], [0], [1], [0, 0, 1, 1], [], []>} : vector<8x32xf32>, vector<32x128xf32>, vector<8x128xf32> -> vector<8x128xf32>
    %cst_148 = arith.constant dense<0.000000e+00> : vector<8x128xf32>
    %419 = tpu.matmul %390, %11, %cst_148 {dimension_numbers = #tpu.dot_dimension_numbers<[1], [0], [0], [1], [0, 0, 1, 1], [], []>} : vector<8x32xf32>, vector<32x128xf32>, vector<8x128xf32> -> vector<8x128xf32>
    %420 = arith.addf %418, %419 : vector<8x128xf32>
    %421 = vector.broadcast %12 : vector<1x128xf32> to vector<8x128xf32>
    %422 = arith.addf %420, %421 : vector<8x128xf32>
    %423 = math.tanh %422 : vector<8x128xf32>
    %424 = vector.extract_strided_slice %423 {offsets = [0, 0], sizes = [8, 32], strides = [1, 1]} : vector<8x128xf32> to vector<8x32xf32>
    %cst_149 = arith.constant 5.000000e-01 : f32
    %425 = vector.broadcast %cst_149 : f32 to vector<8x32xf32>
    %426 = arith.mulf %425, %424 : vector<8x32xf32>
    %cst_150 = arith.constant 5.000000e-01 : f32
    %427 = vector.broadcast %cst_150 : f32 to vector<8x32xf32>
    %428 = arith.addf %427, %426 : vector<8x32xf32>
    %429 = vector.extract_strided_slice %423 {offsets = [0, 32], sizes = [8, 32], strides = [1, 1]} : vector<8x128xf32> to vector<8x32xf32>
    %cst_151 = arith.constant 5.000000e-01 : f32
    %430 = vector.broadcast %cst_151 : f32 to vector<8x32xf32>
    %431 = arith.mulf %430, %429 : vector<8x32xf32>
    %cst_152 = arith.constant 5.000000e-01 : f32
    %432 = vector.broadcast %cst_152 : f32 to vector<8x32xf32>
    %433 = arith.addf %432, %431 : vector<8x32xf32>
    %434 = vector.extract_strided_slice %423 {offsets = [0, 64], sizes = [8, 32], strides = [1, 1]} : vector<8x128xf32> to vector<8x32xf32>
    %435 = vector.extract_strided_slice %423 {offsets = [0, 96], sizes = [8, 32], strides = [1, 1]} : vector<8x128xf32> to vector<8x32xf32>
    %cst_153 = arith.constant 5.000000e-01 : f32
    %436 = vector.broadcast %cst_153 : f32 to vector<8x32xf32>
    %437 = arith.mulf %436, %435 : vector<8x32xf32>
    %cst_154 = arith.constant 5.000000e-01 : f32
    %438 = vector.broadcast %cst_154 : f32 to vector<8x32xf32>
    %439 = arith.addf %438, %437 : vector<8x32xf32>
    %440 = arith.mulf %433, %388 : vector<8x32xf32>
    %441 = arith.mulf %428, %434 : vector<8x32xf32>
    %442 = arith.addf %440, %441 : vector<8x32xf32>
    %443 = math.tanh %442 : vector<8x32xf32>
    %444 = arith.mulf %439, %443 : vector<8x32xf32>
    %445 = arith.addf %391, %444 : vector<8x32xf32>
    %c0_155 = arith.constant 0 : index
    %c0_156 = arith.constant 0 : index
    %446 = vector.load %arg8[%c0_155, %c0_156] : memref<8x32xf32, #tpu.memory_space<vmem>>, vector<8x32xf32>
    tpu.vector_store %arg8[%c0_155, %c0_156], %445 {strides = array<i32>} : memref<8x32xf32, #tpu.memory_space<vmem>>, vector<8x32xf32>,
    return
  }
  func.func @transform_0(%arg0: i32) -> (i32, i32, i32) {
    %c0_i32 = arith.constant 0 : i32
    %c0_i32_0 = arith.constant 0 : i32
    %c0_i32_1 = arith.constant 0 : i32
    return %arg0, %c0_i32, %c0_i32_0 : i32, i32, i32
  }
  func.func @transform_1(%arg0: i32) -> (i32, i32) {
    %c0_i32 = arith.constant 0 : i32
    %c0_i32_0 = arith.constant 0 : i32
    %c0_i32_1 = arith.constant 0 : i32
    return %c0_i32, %c0_i32_0 : i32, i32
  }
  func.func @transform_2(%arg0: i32) -> (i32, i32) {
    %c0_i32 = arith.constant 0 : i32
    %c0_i32_0 = arith.constant 0 : i32
    %c0_i32_1 = arith.constant 0 : i32
    return %c0_i32, %c0_i32_0 : i32, i32
  }
  func.func @transform_3(%arg0: i32) -> (i32, i32) {
    %c0_i32 = arith.constant 0 : i32
    %c0_i32_0 = arith.constant 0 : i32
    %c0_i32_1 = arith.constant 0 : i32
    return %c0_i32, %c0_i32_0 : i32, i32
  }
  func.func @transform_4(%arg0: i32) -> (i32, i32) {
    %c0_i32 = arith.constant 0 : i32
    %c0_i32_0 = arith.constant 0 : i32
    %c0_i32_1 = arith.constant 0 : i32
    return %c0_i32, %c0_i32_0 : i32, i32
  }
  func.func @transform_5(%arg0: i32) -> (i32, i32) {
    %c0_i32 = arith.constant 0 : i32
    %c0_i32_0 = arith.constant 0 : i32
    %c0_i32_1 = arith.constant 0 : i32
    return %c0_i32, %c0_i32_0 : i32, i32
  }
  func.func @transform_6(%arg0: i32) -> (i32, i32) {
    %c0_i32 = arith.constant 0 : i32
    %c0_i32_0 = arith.constant 0 : i32
    %c0_i32_1 = arith.constant 0 : i32
    return %c0_i32, %c0_i32_0 : i32, i32
  }
  func.func @transform_7(%arg0: i32) -> (i32, i32) {
    %c0_i32 = arith.constant 0 : i32
    %c0_i32_0 = arith.constant 0 : i32
    return %arg0, %c0_i32 : i32, i32
  }
}

</mosaic_0001>

<llo_original>
// kernel: tpu_custom_call.1
$region0: #{tpu_custom_call.1}
  #allocation0 [shape = 'u32[]', space=smem, size = 0x4, offset = 0x4, fixed_abs, tag = 'smem constant byte address 0x4 - core index']
  #allocation1 [shape = 'u32[144,128]{1,0:T(1,128)}', space=vmem, size = 0x12000, scoped, tag = 'internal scratch']
  #allocation2 [shape = 'f32[8,8,128]{2,1,0:T(8,128)}', space=vmem, size = 0x8000, scoped, tag = 'scratch operand']
  %s0 = inlined_call_operand.hbm [shape: f32[8,8,32], index: 0, kind: input, shape index: {}]
  %s1 = inlined_call_operand.hbm [shape: f32[32,128], index: 1, kind: input, shape index: {}]
  %s2 = inlined_call_operand.hbm [shape: f32[32,128], index: 2, kind: input, shape index: {}]
  %s3 = inlined_call_operand.vmem [shape: f32[1,128], index: 3, kind: input, shape index: {}]
  %s4 = inlined_call_operand.hbm [shape: f32[32,128], index: 4, kind: input, shape index: {}]
  %s5 = inlined_call_operand.hbm [shape: f32[32,128], index: 5, kind: input, shape index: {}]
  %s6 = inlined_call_operand.vmem [shape: f32[1,128], index: 6, kind: input, shape index: {}]
  %s7 = inlined_call_operand.hbm [shape: f32[8,32], index: 7, kind: output, shape index: {}]
  %s8 = sld [smem:[#allocation0]]
  $region58: #{tpu_custom_call.1} parent=0
    _
  %s10 = ssub.s32 1, %s8
  %s11 = scalar_select 0, %s10, %s8
  $region1: #{tpu_custom_call.1} parent=0
    #allocation3 [shape = 'u8[32768]{0}', space=vmem, size = 0x8000, scoped, tag = 'input window, operand 0, single buffered']
    #allocation4 [shape = 's32[1]{0}', space=sflag, size = 0x4, scoped, tag = 'scoped memory for tpu_custom_call.1']
    #allocation5 [shape = 's32[1]{0}', space=sflag, size = 0x4, scoped, tag = 'scoped memory for tpu_custom_call.1']
    #allocation6 [shape = 'u8[16384]{0}', space=vmem, size = 0x4000, scoped, tag = 'input window, operand 1, single buffered']
    #allocation7 [shape = 's32[1]{0}', space=sflag, size = 0x4, scoped, tag = 'scoped memory for tpu_custom_call.1']
    #allocation8 [shape = 'u8[16384]{0}', space=vmem, size = 0x4000, scoped, tag = 'input window, operand 2, single buffered']
    #allocation9 [shape = 'u8[16384]{0}', space=vmem, size = 0x4000, scoped, tag = 'input window, operand 4, single buffered']
    #allocation10 [shape = 's32[1]{0}', space=sflag, size = 0x4, scoped, tag = 'scoped memory for tpu_custom_call.1']
    #allocation11 [shape = 'u8[16384]{0}', space=vmem, size = 0x4000, scoped, tag = 'input window, operand 5, single buffered']
    #allocation12 [shape = 'u8[4096]{0}', space=vmem, size = 0x1000, scoped, tag = 'output window, operand 0, single buffered']
    %12 = vsyncpa [#allocation4], 0
    %13 = vsyncpa [#allocation7], 0
    %14 = vsyncpa [#allocation10], 0
    %15 = vsyncpa [#allocation5], 0
    // Predicated region
    $region2: #{tpu_custom_call.1} parent=1 // pred_check
      _
    $region3: #{tpu_custom_call.1} parent=1 // pred_check_branch
      %17 = sbr.rel (0) target = $region5
    $region4: #{tpu_custom_call.1} parent=1 // pred_region
      %s19 = ssub.s32 1024, 1024
      %20 = vsyncadd [#allocation4], %s19
      %s21 = sshll.u32 [#allocation3], 4
      %s22 = int_to_ptr.vmem [resolvable:$true] %s21
      %27 = dma.hbm_to_vmem [thread:$0]  %s0, 1024, %s22, [#allocation4], 128, 128, 8
    $region5: #{tpu_custom_call.1} parent=1 // pred_fallthru
      _
    // Predicated region
    $region6: #{tpu_custom_call.1} parent=1 // pred_check
      _
    $region7: #{tpu_custom_call.1} parent=1 // pred_check_branch
      %29 = sbr.rel (0) target = $region9
    $region8: #{tpu_custom_call.1} parent=1 // pred_region
      %s31 = ssub.s32 512, 512
      %32 = vsyncadd [#allocation7], %s31
      %s33 = sshll.u32 [#allocation6], 4
      %s34 = int_to_ptr.vmem [resolvable:$true] %s33
      %39 = dma.hbm_to_vmem [thread:$0]  %s1, 512, %s34, [#allocation7], 128, 128, 8
    $region9: #{tpu_custom_call.1} parent=1 // pred_fallthru
      _
    // Predicated region
    $region10: #{tpu_custom_call.1} parent=1 // pred_check
      _
    $region11: #{tpu_custom_call.1} parent=1 // pred_check_branch
      %41 = sbr.rel (0) target = $region13
    $region12: #{tpu_custom_call.1} parent=1 // pred_region
      %s43 = ssub.s32 512, 512
      %44 = vsyncadd [#allocation7], %s43
      %s45 = sshll.u32 [#allocation8], 4
      %s46 = int_to_ptr.vmem [resolvable:$true] %s45
      %51 = dma.hbm_to_vmem [thread:$0]  %s2, 512, %s46, [#allocation7], 128, 128, 8
    $region13: #{tpu_custom_call.1} parent=1 // pred_fallthru
      _
    // Predicated region
    $region14: #{tpu_custom_call.1} parent=1 // pred_check
      _
    $region15: #{tpu_custom_call.1} parent=1 // pred_check_branch
      %53 = sbr.rel (0) target = $region17
    $region16: #{tpu_custom_call.1} parent=1 // pred_region
      _
    $region17: #{tpu_custom_call.1} parent=1 // pred_fallthru
      _
    // Predicated region
    $region18: #{tpu_custom_call.1} parent=1 // pred_check
      _
    $region19: #{tpu_custom_call.1} parent=1 // pred_check_branch
      %55 = sbr.rel (0) target = $region21
    $region20: #{tpu_custom_call.1} parent=1 // pred_region
      %s57 = ssub.s32 512, 512
      %58 = vsyncadd [#allocation10], %s57
      %s59 = sshll.u32 [#allocation9], 4
      %s60 = int_to_ptr.vmem [resolvable:$true] %s59
      %65 = dma.hbm_to_vmem [thread:$0]  %s4, 512, %s60, [#allocation10], 128, 128, 8
    $region21: #{tpu_custom_call.1} parent=1 // pred_fallthru
      _
    // Predicated region
    $region22: #{tpu_custom_call.1} parent=1 // pred_check
      _
    $region23: #{tpu_custom_call.1} parent=1 // pred_check_branch
      %67 = sbr.rel (0) target = $region25
    $region24: #{tpu_custom_call.1} parent=1 // pred_region
      %s69 = ssub.s32 512, 512
      %70 = vsyncadd [#allocation10], %s69
      %s71 = sshll.u32 [#allocation11], 4
      %s72 = int_to_ptr.vmem [resolvable:$true] %s71
      %77 = dma.hbm_to_vmem [thread:$0]  %s5, 512, %s72, [#allocation10], 128, 128, 8
    $region25: #{tpu_custom_call.1} parent=1 // pred_fallthru
      _
    // Predicated region
    $region26: #{tpu_custom_call.1} parent=1 // pred_check
      _
    $region27: #{tpu_custom_call.1} parent=1 // pred_check_branch
      %79 = sbr.rel (0) target = $region29
    $region28: #{tpu_custom_call.1} parent=1 // pred_region
      _
    $region29: #{tpu_custom_call.1} parent=1 // pred_fallthru
      _
    // Predicated region
    $region30: #{tpu_custom_call.1} parent=1 // pred_check
      _
    $region31: #{tpu_custom_call.1} parent=1 // pred_check_branch
      %81 = sbr.rel (0) target = $region33
    $region32: #{tpu_custom_call.1} parent=1 // pred_region
      %82 = dma.done [#allocation4], 1024
    $region33: #{tpu_custom_call.1} parent=1 // pred_fallthru
      _
    // Predicated region
    $region34: #{tpu_custom_call.1} parent=1 // pred_check
      _
    $region35: #{tpu_custom_call.1} parent=1 // pred_check_branch
      %84 = sbr.rel (0) target = $region37
    $region36: #{tpu_custom_call.1} parent=1 // pred_region
      %85 = dma.done [#allocation7], 512
    $region37: #{tpu_custom_call.1} parent=1 // pred_fallthru
      _
    // Predicated region
    $region38: #{tpu_custom_call.1} parent=1 // pred_check
      _
    $region39: #{tpu_custom_call.1} parent=1 // pred_check_branch
      %87 = sbr.rel (0) target = $region41
    $region40: #{tpu_custom_call.1} parent=1 // pred_region
      %88 = dma.done [#allocation7], 512
    $region41: #{tpu_custom_call.1} parent=1 // pred_fallthru
      _
    // Predicated region
    $region42: #{tpu_custom_call.1} parent=1 // pred_check
      _
    $region43: #{tpu_custom_call.1} parent=1 // pred_check_branch
      %90 = sbr.rel (0) target = $region45
    $region44: #{tpu_custom_call.1} parent=1 // pred_region
      %91 = dma.done [#allocation10], 512
    $region45: #{tpu_custom_call.1} parent=1 // pred_fallthru
      _
    // Predicated region
    $region46: #{tpu_custom_call.1} parent=1 // pred_check
      _
    $region47: #{tpu_custom_call.1} parent=1 // pred_check_branch
      %93 = sbr.rel (0) target = $region49
    $region48: #{tpu_custom_call.1} parent=1 // pred_region
      %94 = dma.done [#allocation10], 512
    $region49: #{tpu_custom_call.1} parent=1 // pred_fallthru
      _
    %v95 = vld [vmem:[#allocation3] sm:$0xff]
    %v96 = vld [vmem:[#allocation3 + $0x8] sm:$0xff]
    %v97 = vld [vmem:[#allocation3 + $0x10] sm:$0xff]
    %v98 = vld [vmem:[#allocation3 + $0x18] sm:$0xff]
    %v99 = vld [vmem:[#allocation3 + $0x20] sm:$0xff]
    %v100 = vld [vmem:[#allocation3 + $0x28] sm:$0xff]
    %v101 = vld [vmem:[#allocation3 + $0x30] sm:$0xff]
    %v102 = vld [vmem:[#allocation3 + $0x38] sm:$0xff]
    %v103 = vld [vmem:[#allocation6] sm:$0xff]
    %v104 = vld [vmem:[#allocation6 + $0x8] sm:$0xff]
    %v105 = vld [vmem:[#allocation6 + $0x10] sm:$0xff]
    %v106 = vld [vmem:[#allocation6 + $0x18] sm:$0xff]
    %v107 = vld [vmem:[%s3] sm:$0x1]
    %v109 = vlaneseq
    %v110 = vshrl.u32 %v109, 7
    %v111 = vsub.s32 0, %v110
    %v112 = vrot.slane %v107, %v111
    %vm114 = vcmask 261120
    %v116 = vsel %vm114, %v95, 0
    %v119 = vsel %vm114, %v96, 0
    %v122 = vsel %vm114, %v97, 0
    %v125 = vsel %vm114, %v98, 0
    %v128 = vsel %vm114, %v99, 0
    %v131 = vsel %vm114, %v100, 0
    %v134 = vsel %vm114, %v101, 0
    %v137 = vsel %vm114, %v102, 0
    %139 = vmatprep.subr.mxu0 0.0
    %140 = vmatpush1.msra.mxu0 0.0
    %141 = vmatprep.subr.mxu0 0.0
    %142 = vmatpush1.msra.mxu0 0.0
    %143 = vmatprep.subr.mxu0 0.0
    %144 = vmatpush1.msra.mxu0 0.0
    %145 = vmatprep.subr.mxu0 0.0
    %146 = vmatpush1.msra.mxu0 0.0
    %147 = vmatprep.subr.mxu0 0.0
    %148 = vmatpush1.msra.mxu0 0.0
    %149 = vmatprep.subr.mxu0 0.0
    %150 = vmatpush1.msra.mxu0 0.0
    %151 = vmatprep.subr.mxu0 0.0
    %152 = vmatpush1.msra.mxu0 0.0
    %153 = vmatprep.subr.mxu0 0.0
    %154 = vmatpush1.msra.mxu0 0.0
    %155 = vmatprep.subr.mxu0 0.0
    %156 = vmatpush1.msra.mxu0 0.0
    %157 = vmatprep.subr.mxu0 0.0
    %158 = vmatpush1.msra.mxu0 0.0
    %159 = vmatprep.subr.mxu0 0.0
    %160 = vmatpush1.msra.mxu0 0.0
    %161 = vmatprep.subr.mxu0 0.0
    %162 = vmatpush1.msra.mxu0 0.0
    %163 = vmatprep.subr.mxu0 0.0
    %164 = vmatpush1.msra.mxu0 %v106
    %165 = vmatprep.subr.mxu0 0.0
    %166 = vmatpush1.msra.mxu0 %v105
    %167 = vmatprep.subr.mxu0 0.0
    %168 = vmatpush1.msra.mxu0 %v104
    %169 = vmatprep.subr.mxu0 0.0
    %170 = vmatpush1.msra.mxu0 %v103
    %171 = vmatprep.subr.mxu0 0.0
    %172 = vmatpush2.msra.mxu0 0.0
    %173 = vmatprep.subr.mxu0 0.0
    %174 = vmatpush2.msra.mxu0 0.0
    %175 = vmatprep.subr.mxu0 0.0
    %176 = vmatpush2.msra.mxu0 0.0
    %177 = vmatprep.subr.mxu0 0.0
    %178 = vmatpush2.msra.mxu0 0.0
    %179 = vmatprep.subr.mxu0 0.0
    %180 = vmatpush2.msra.mxu0 0.0
    %181 = vmatprep.subr.mxu0 0.0
    %182 = vmatpush2.msra.mxu0 0.0
    %183 = vmatprep.subr.mxu0 0.0
    %184 = vmatpush2.msra.mxu0 0.0
    %185 = vmatprep.subr.mxu0 0.0
    %186 = vmatpush2.msra.mxu0 0.0
    %187 = vmatprep.subr.mxu0 0.0
    %188 = vmatpush2.msra.mxu0 0.0
    %189 = vmatprep.subr.mxu0 0.0
    %190 = vmatpush2.msra.mxu0 0.0
    %191 = vmatprep.subr.mxu0 0.0
    %192 = vmatpush2.msra.mxu0 0.0
    %193 = vmatprep.subr.mxu0 0.0
    %194 = vmatpush2.msra.mxu0 0.0
    %195 = vmatprep.subr.mxu0 0.0
    %196 = vmatpush2.msra.mxu0 0.0
    %197 = vmatprep.subr.mxu0 0.0
    %198 = vmatpush2.msra.mxu0 0.0
    %199 = vmatprep.subr.mxu0 0.0
    %200 = vmatpush2.msra.mxu0 0.0
    %201 = vmatprep.subr.mxu0 0.0
    %202 = vmatpush2.msra.mxu0 0.0
    %203 = vmatprep.mubr.f32.mxu0 0.0
    %204 = vmatmul.mubr.f32.gmra.mxu0 %v116
    %v205 = vpop.f32.mrf.mxu0
    %v206 = vadd.f32 %v112, %v205
    %v207 = vpop.f32.mrf.mxu0
    %208 = vmatprep.mubr.f32.mxu0 0.0
    %209 = vmatmul.mubr.f32.gmra.mxu0 %v119
    %v210 = vpop.f32.mrf.mxu0
    %v211 = vadd.f32 %v112, %v210
    %v212 = vpop.f32.mrf.mxu0
    %213 = vmatprep.mubr.f32.mxu0 0.0
    %214 = vmatmul.mubr.f32.gmra.mxu0 %v122
    %v215 = vpop.f32.mrf.mxu0
    %v216 = vadd.f32 %v112, %v215
    %v217 = vpop.f32.mrf.mxu0
    %218 = vmatprep.mubr.f32.mxu0 0.0
    %219 = vmatmul.mubr.f32.gmra.mxu0 %v125
    %v220 = vpop.f32.mrf.mxu0
    %v221 = vadd.f32 %v112, %v220
    %v222 = vpop.f32.mrf.mxu0
    %223 = vmatprep.mubr.f32.mxu0 0.0
    %224 = vmatmul.mubr.f32.gmra.mxu0 %v128
    %v225 = vpop.f32.mrf.mxu0
    %v226 = vadd.f32 %v112, %v225
    %v227 = vpop.f32.mrf.mxu0
    %228 = vmatprep.mubr.f32.mxu0 0.0
    %229 = vmatmul.mubr.f32.gmra.mxu0 %v131
    %v230 = vpop.f32.mrf.mxu0
    %v231 = vadd.f32 %v112, %v230
    %v232 = vpop.f32.mrf.mxu0
    %233 = vmatprep.mubr.f32.mxu0 0.0
    %234 = vmatmul.mubr.f32.gmra.mxu0 %v134
    %v235 = vpop.f32.mrf.mxu0
    %v236 = vadd.f32 %v112, %v235
    %v237 = vpop.f32.mrf.mxu0
    %238 = vmatprep.mubr.f32.mxu0 0.0
    %239 = vmatmul.mubr.f32.gmra.mxu0 %v137
    %v240 = vpop.f32.mrf.mxu0
    %v241 = vadd.f32 %v112, %v240
    %v242 = vpop.f32.mrf.mxu0
    %243 = vdwg.mxu0
    %244 = vst [vmem:[#allocation2] sm:$0xff] %v206
    %245 = vst [vmem:[#allocation2 + $0x8] sm:$0xff] %v211
    %246 = vst [vmem:[#allocation2 + $0x10] sm:$0xff] %v216
    %247 = vst [vmem:[#allocation2 + $0x18] sm:$0xff] %v221
    %248 = vst [vmem:[#allocation2 + $0x20] sm:$0xff] %v226
    %249 = vst [vmem:[#allocation2 + $0x28] sm:$0xff] %v231
    %250 = vst [vmem:[#allocation2 + $0x30] sm:$0xff] %v236
    %251 = vst [vmem:[#allocation2 + $0x38] sm:$0xff] %v241
    %v252 = vld [vmem:[#allocation8] sm:$0xff]
    %v253 = vld [vmem:[#allocation8 + $0x8] sm:$0xff]
    %v254 = vld [vmem:[#allocation8 + $0x10] sm:$0xff]
    %v255 = vld [vmem:[#allocation8 + $0x18] sm:$0xff]
    %v256 = vld [vmem:[#allocation9] sm:$0xff]
    %v257 = vld [vmem:[#allocation9 + $0x8] sm:$0xff]
    %v258 = vld [vmem:[#allocation9 + $0x10] sm:$0xff]
    %v259 = vld [vmem:[#allocation9 + $0x18] sm:$0xff]
    %v260 = vld [vmem:[#allocation11] sm:$0xff]
    %v261 = vld [vmem:[#allocation11 + $0x8] sm:$0xff]
    %v262 = vld [vmem:[#allocation11 + $0x10] sm:$0xff]
    %v263 = vld [vmem:[#allocation11 + $0x18] sm:$0xff]
    %v264 = vld [vmem:[%s6] sm:$0x1]
    %v265 = vld [vmem:[#allocation2] sm:$0x1]
    %v266 = vld [vmem:[#allocation2 + $0x8] sm:$0x1]
    %v267 = vld [vmem:[#allocation2 + $0x10] sm:$0x1]
    %v268 = vld [vmem:[#allocation2 + $0x18] sm:$0x1]
    %v269 = vld [vmem:[#allocation2 + $0x20] sm:$0x1]
    %v270 = vld [vmem:[#allocation2 + $0x28] sm:$0x1]
    %v271 = vld [vmem:[#allocation2 + $0x30] sm:$0x1]
    %v272 = vld [vmem:[#allocation2 + $0x38] sm:$0x1]
    %v274 = vsel %vm114, 0.0, 0
    %276 = vmatprep.subr.mxu0 0.0
    %277 = vmatpush1.msra.mxu0 0.0
    %278 = vmatprep.subr.mxu0 0.0
    %279 = vmatpush1.msra.mxu0 0.0
    %280 = vmatprep.subr.mxu0 0.0
    %281 = vmatpush1.msra.mxu0 0.0
    %282 = vmatprep.subr.mxu0 0.0
    %283 = vmatpush1.msra.mxu0 0.0
    %284 = vmatprep.subr.mxu0 0.0
    %285 = vmatpush1.msra.mxu0 0.0
    %286 = vmatprep.subr.mxu0 0.0
    %287 = vmatpush1.msra.mxu0 0.0
    %288 = vmatprep.subr.mxu0 0.0
    %289 = vmatpush1.msra.mxu0 0.0
    %290 = vmatprep.subr.mxu0 0.0
    %291 = vmatpush1.msra.mxu0 0.0
    %292 = vmatprep.subr.mxu0 0.0
    %293 = vmatpush1.msra.mxu0 0.0
    %294 = vmatprep.subr.mxu0 0.0
    %295 = vmatpush1.msra.mxu0 0.0
    %296 = vmatprep.subr.mxu0 0.0
    %297 = vmatpush1.msra.mxu0 0.0
    %298 = vmatprep.subr.mxu0 0.0
    %299 = vmatpush1.msra.mxu0 0.0
    %300 = vmatprep.subr.mxu0 0.0
    %301 = vmatpush1.msra.mxu0 %v255
    %302 = vmatprep.subr.mxu0 0.0
    %303 = vmatpush1.msra.mxu0 %v254
    %304 = vmatprep.subr.mxu0 0.0
    %305 = vmatpush1.msra.mxu0 %v253
    %306 = vmatprep.subr.mxu0 0.0
    %307 = vmatpush1.msra.mxu0 %v252
    %308 = vmatprep.subr.mxu0 0.0
    %309 = vmatpush2.msra.mxu0 0.0
    %310 = vmatprep.subr.mxu0 0.0
    %311 = vmatpush2.msra.mxu0 0.0
    %312 = vmatprep.subr.mxu0 0.0
    %313 = vmatpush2.msra.mxu0 0.0
    %314 = vmatprep.subr.mxu0 0.0
    %315 = vmatpush2.msra.mxu0 0.0
    %316 = vmatprep.subr.mxu0 0.0
    %317 = vmatpush2.msra.mxu0 0.0
    %318 = vmatprep.subr.mxu0 0.0
    %319 = vmatpush2.msra.mxu0 0.0
    %320 = vmatprep.subr.mxu0 0.0
    %321 = vmatpush2.msra.mxu0 0.0
    %322 = vmatprep.subr.mxu0 0.0
    %323 = vmatpush2.msra.mxu0 0.0
    %324 = vmatprep.subr.mxu0 0.0
    %325 = vmatpush2.msra.mxu0 0.0
    %326 = vmatprep.subr.mxu0 0.0
    %327 = vmatpush2.msra.mxu0 0.0
    %328 = vmatprep.subr.mxu0 0.0
    %329 = vmatpush2.msra.mxu0 0.0
    %330 = vmatprep.subr.mxu0 0.0
    %331 = vmatpush2.msra.mxu0 0.0
    %332 = vmatprep.subr.mxu0 0.0
    %333 = vmatpush2.msra.mxu0 0.0
    %334 = vmatprep.subr.mxu0 0.0
    %335 = vmatpush2.msra.mxu0 0.0
    %336 = vmatprep.subr.mxu0 0.0
    %337 = vmatpush2.msra.mxu0 0.0
    %338 = vmatprep.subr.mxu0 0.0
    %339 = vmatpush2.msra.mxu0 0.0
    %340 = vmatprep.mubr.f32.mxu0 0.0
    %341 = vmatmul.mubr.f32.gmra.mxu0 %v274
    %v342 = vpop.f32.mrf.mxu0
    %v343 = vadd.f32 0.0, %v342
    %v344 = vpop.f32.mrf.mxu0
    %345 = vdwg.mxu0
    %v347 = vrot.slane %v343, 1
    %v348 = vrot.slane %v343, 2
    %v349 = vrot.slane %v343, 3
    %v350 = vrot.slane %v343, 4
    %v351 = vrot.slane %v343, 5
    %v352 = vrot.slane %v343, 6
    %v353 = vrot.slane %v343, 7
    %v362 = vadd.f32 %v265, %v343
    %v363 = vadd.f32 %v266, %v347
    %v364 = vadd.f32 %v267, %v348
    %v365 = vadd.f32 %v268, %v349
    %v366 = vadd.f32 %v269, %v350
    %v367 = vadd.f32 %v270, %v351
    %v368 = vadd.f32 %v271, %v352
    %v369 = vadd.f32 %v272, %v353
    %v370 = vtanh.pop %v362
    %v371 = vtanh.pop %v363
    %v372 = vtanh.pop %v364
    %v373 = vtanh.pop %v365
    %v374 = vtanh.pop %v366
    %v375 = vtanh.pop %v367
    %v376 = vtanh.pop %v368
    %v377 = vtanh.pop %v369
    %v378 = vmul.f32 %v370, 0.5
    %v379 = vmul.f32 %v371, 0.5
    %v380 = vmul.f32 %v372, 0.5
    %v381 = vmul.f32 %v373, 0.5
    %v382 = vmul.f32 %v374, 0.5
    %v383 = vmul.f32 %v375, 0.5
    %v384 = vmul.f32 %v376, 0.5
    %v385 = vmul.f32 %v377, 0.5
    %v386 = vadd.f32 %v378, 0.5
    %v387 = vadd.f32 %v379, 0.5
    %v388 = vadd.f32 %v380, 0.5
    %v389 = vadd.f32 %v381, 0.5
    %v390 = vadd.f32 %v382, 0.5
    %v391 = vadd.f32 %v383, 0.5
    %v392 = vadd.f32 %v384, 0.5
    %v393 = vadd.f32 %v385, 0.5
    %v394 = vmul.f32 %v386, 0.0
    %v395 = vmul.f32 %v387, 0.0
    %v396 = vmul.f32 %v388, 0.0
    %v397 = vmul.f32 %v389, 0.0
    %v398 = vmul.f32 %v390, 0.0
    %v399 = vmul.f32 %v391, 0.0
    %v400 = vmul.f32 %v392, 0.0
    %v401 = vmul.f32 %v393, 0.0
    %410 = vrot.lane.b32.xlu0 %v370, 64
    %v411 = vpop.permute.xlu0 %410
    %412 = vrot.lane.b32.xlu0 %v371, 64
    %v413 = vpop.permute.xlu0 %412
    %414 = vrot.lane.b32.xlu0 %v372, 64
    %v415 = vpop.permute.xlu0 %414
    %416 = vrot.lane.b32.xlu0 %v373, 64
    %v417 = vpop.permute.xlu0 %416
    %418 = vrot.lane.b32.xlu0 %v374, 64
    %v419 = vpop.permute.xlu0 %418
    %420 = vrot.lane.b32.xlu0 %v375, 64
    %v421 = vpop.permute.xlu0 %420
    %422 = vrot.lane.b32.xlu0 %v376, 64
    %v423 = vpop.permute.xlu0 %422
    %424 = vrot.lane.b32.xlu0 %v377, 64
    %v425 = vpop.permute.xlu0 %424
    %v434 = vmul.f32 %v386, %v411
    %v435 = vmul.f32 %v387, %v413
    %v436 = vmul.f32 %v388, %v415
    %v437 = vmul.f32 %v389, %v417
    %v438 = vmul.f32 %v390, %v419
    %v439 = vmul.f32 %v391, %v421
    %v440 = vmul.f32 %v392, %v423
    %v441 = vmul.f32 %v393, %v425
    %450 = vrot.lane.b32.xlu0 %v434, 32
    %v451 = vpop.permute.xlu0 %450
    %452 = vrot.lane.b32.xlu0 %v435, 32
    %v453 = vpop.permute.xlu0 %452
    %454 = vrot.lane.b32.xlu0 %v436, 32
    %v455 = vpop.permute.xlu0 %454
    %456 = vrot.lane.b32.xlu0 %v437, 32
    %v457 = vpop.permute.xlu0 %456
    %458 = vrot.lane.b32.xlu0 %v438, 32
    %v459 = vpop.permute.xlu0 %458
    %460 = vrot.lane.b32.xlu0 %v439, 32
    %v461 = vpop.permute.xlu0 %460
    %462 = vrot.lane.b32.xlu0 %v440, 32
    %v463 = vpop.permute.xlu0 %462
    %464 = vrot.lane.b32.xlu0 %v441, 32
    %v465 = vpop.permute.xlu0 %464
    %v474 = vadd.f32 %v394, %v451
    %v475 = vadd.f32 %v395, %v453
    %v476 = vadd.f32 %v396, %v455
    %v477 = vadd.f32 %v397, %v457
    %v478 = vadd.f32 %v398, %v459
    %v479 = vadd.f32 %v399, %v461
    %v480 = vadd.f32 %v400, %v463
    %v481 = vadd.f32 %v401, %v465
    %v482 = vtanh.pop %v474
    %v483 = vtanh.pop %v475
    %v484 = vtanh.pop %v476
    %v485 = vtanh.pop %v477
    %v486 = vtanh.pop %v478
    %v487 = vtanh.pop %v479
    %v488 = vtanh.pop %v480
    %v489 = vtanh.pop %v481
    %498 = vrot.lane.b32.xlu0 %v482, 64
    %v499 = vpop.permute.xlu0 %498
    %500 = vrot.lane.b32.xlu0 %v483, 64
    %v501 = vpop.permute.xlu0 %500
    %502 = vrot.lane.b32.xlu0 %v484, 64
    %v503 = vpop.permute.xlu0 %502
    %504 = vrot.lane.b32.xlu0 %v485, 64
    %v505 = vpop.permute.xlu0 %504
    %506 = vrot.lane.b32.xlu0 %v486, 64
    %v507 = vpop.permute.xlu0 %506
    %508 = vrot.lane.b32.xlu0 %v487, 64
    %v509 = vpop.permute.xlu0 %508
    %510 = vrot.lane.b32.xlu0 %v488, 64
    %v511 = vpop.permute.xlu0 %510
    %512 = vrot.lane.b32.xlu0 %v489, 64
    %v513 = vpop.permute.xlu0 %512
    %v522 = vmul.f32 %v386, %v499
    %v523 = vmul.f32 %v387, %v501
    %v524 = vmul.f32 %v388, %v503
    %v525 = vmul.f32 %v389, %v505
    %v526 = vmul.f32 %v390, %v507
    %v527 = vmul.f32 %v391, %v509
    %v528 = vmul.f32 %v392, %v511
    %v529 = vmul.f32 %v393, %v513
    %530 = vmatprep.subr.mxu0 0.0
    %531 = vmatpush1.msra.mxu0 0.0
    %532 = vmatprep.subr.mxu0 0.0
    %533 = vmatpush1.msra.mxu0 0.0
    %534 = vmatprep.subr.mxu0 0.0
    %535 = vmatpush1.msra.mxu0 0.0
    %536 = vmatprep.subr.mxu0 0.0
    %537 = vmatpush1.msra.mxu0 0.0
    %538 = vmatprep.subr.mxu0 0.0
    %539 = vmatpush1.msra.mxu0 0.0
    %540 = vmatprep.subr.mxu0 0.0
    %541 = vmatpush1.msra.mxu0 0.0
    %542 = vmatprep.subr.mxu0 0.0
    %543 = vmatpush1.msra.mxu0 0.0
    %544 = vmatprep.subr.mxu0 0.0
    %545 = vmatpush1.msra.mxu0 0.0
    %546 = vmatprep.subr.mxu0 0.0
    %547 = vmatpush1.msra.mxu0 0.0
    %548 = vmatprep.subr.mxu0 0.0
    %549 = vmatpush1.msra.mxu0 0.0
    %550 = vmatprep.subr.mxu0 0.0
    %551 = vmatpush1.msra.mxu0 0.0
    %552 = vmatprep.subr.mxu0 0.0
    %553 = vmatpush1.msra.mxu0 0.0
    %554 = vmatprep.subr.mxu0 0.0
    %555 = vmatpush1.msra.mxu0 %v263
    %556 = vmatprep.subr.mxu0 0.0
    %557 = vmatpush1.msra.mxu0 %v262
    %558 = vmatprep.subr.mxu0 0.0
    %559 = vmatpush1.msra.mxu0 %v261
    %560 = vmatprep.subr.mxu0 0.0
    %561 = vmatpush1.msra.mxu0 %v260
    %562 = vmatprep.subr.mxu0 0.0
    %563 = vmatpush2.msra.mxu0 0.0
    %564 = vmatprep.subr.mxu0 0.0
    %565 = vmatpush2.msra.mxu0 0.0
    %566 = vmatprep.subr.mxu0 0.0
    %567 = vmatpush2.msra.mxu0 0.0
    %568 = vmatprep.subr.mxu0 0.0
    %569 = vmatpush2.msra.mxu0 0.0
    %570 = vmatprep.subr.mxu0 0.0
    %571 = vmatpush2.msra.mxu0 0.0
    %572 = vmatprep.subr.mxu0 0.0
    %573 = vmatpush2.msra.mxu0 0.0
    %574 = vmatprep.subr.mxu0 0.0
    %575 = vmatpush2.msra.mxu0 0.0
    %576 = vmatprep.subr.mxu0 0.0
    %577 = vmatpush2.msra.mxu0 0.0
    %578 = vmatprep.subr.mxu0 0.0
    %579 = vmatpush2.msra.mxu0 0.0
    %580 = vmatprep.subr.mxu0 0.0
    %581 = vmatpush2.msra.mxu0 0.0
    %582 = vmatprep.subr.mxu0 0.0
    %583 = vmatpush2.msra.mxu0 0.0
    %584 = vmatprep.subr.mxu0 0.0
    %585 = vmatpush2.msra.mxu0 0.0
    %586 = vmatprep.subr.mxu0 0.0
    %587 = vmatpush2.msra.mxu0 0.0
    %588 = vmatprep.subr.mxu0 0.0
    %589 = vmatpush2.msra.mxu0 0.0
    %590 = vmatprep.subr.mxu0 0.0
    %591 = vmatpush2.msra.mxu0 0.0
    %592 = vmatprep.subr.mxu0 0.0
    %593 = vmatpush2.msra.mxu0 0.0
    %594 = vmatprep.mubr.f32.mxu0 0.0
    %595 = vmatmul.mubr.f32.gmra.mxu0 %v274
    %v596 = vpop.f32.mrf.mxu0
    %v597 = vadd.f32 0.0, %v596
    %v598 = vpop.f32.mrf.mxu0
    %599 = vdwg.mxu0
    %v608 = vrot.slane %v523, 7
    %vm609 = vcmask 1041409
    %v610 = vsel %vm609, %v608, %v522
    %v611 = vrot.slane %v524, 6
    %vm612 = vcmask 1042434
    %v613 = vsel %vm612, %v611, %v610
    %v614 = vrot.slane %v525, 5
    %vm615 = vcmask 1043459
    %v616 = vsel %vm615, %v614, %v613
    %v617 = vrot.slane %v526, 4
    %vm618 = vcmask 1044484
    %v619 = vsel %vm618, %v617, %v616
    %v620 = vrot.slane %v527, 3
    %vm621 = vcmask 1045509
    %v622 = vsel %vm621, %v620, %v619
    %v623 = vrot.slane %v528, 2
    %vm624 = vcmask 1046534
    %v625 = vsel %vm624, %v623, %v622
    %v626 = vrot.slane %v529, 1
    %vm627 = vcmask 1047559
    %v628 = vsel %vm627, %v626, %v625
    %629 = vrot.lane.b32.xlu0 %v628, 32
    %v630 = vpop.permute.xlu0 %629
    %v631 = vsel %vm114, %v630, 0
    %633 = vmatprep.subr.mxu0 0.0
    %634 = vmatpush1.msra.mxu0 0.0
    %635 = vmatprep.subr.mxu0 0.0
    %636 = vmatpush1.msra.mxu0 0.0
    %637 = vmatprep.subr.mxu0 0.0
    %638 = vmatpush1.msra.mxu0 0.0
    %639 = vmatprep.subr.mxu0 0.0
    %640 = vmatpush1.msra.mxu0 0.0
    %641 = vmatprep.subr.mxu0 0.0
    %642 = vmatpush1.msra.mxu0 0.0
    %643 = vmatprep.subr.mxu0 0.0
    %644 = vmatpush1.msra.mxu0 0.0
    %645 = vmatprep.subr.mxu0 0.0
    %646 = vmatpush1.msra.mxu0 0.0
    %647 = vmatprep.subr.mxu0 0.0
    %648 = vmatpush1.msra.mxu0 0.0
    %649 = vmatprep.subr.mxu0 0.0
    %650 = vmatpush1.msra.mxu0 0.0
    %651 = vmatprep.subr.mxu0 0.0
    %652 = vmatpush1.msra.mxu0 0.0
    %653 = vmatprep.subr.mxu0 0.0
    %654 = vmatpush1.msra.mxu0 0.0
    %655 = vmatprep.subr.mxu0 0.0
    %656 = vmatpush1.msra.mxu0 0.0
    %657 = vmatprep.subr.mxu0 0.0
    %658 = vmatpush1.msra.mxu0 %v259
    %659 = vmatprep.subr.mxu0 0.0
    %660 = vmatpush1.msra.mxu0 %v258
    %661 = vmatprep.subr.mxu0 0.0
    %662 = vmatpush1.msra.mxu0 %v257
    %663 = vmatprep.subr.mxu0 0.0
    %664 = vmatpush1.msra.mxu0 %v256
    %665 = vmatprep.subr.mxu0 0.0
    %666 = vmatpush2.msra.mxu0 0.0
    %667 = vmatprep.subr.mxu0 0.0
    %668 = vmatpush2.msra.mxu0 0.0
    %669 = vmatprep.subr.mxu0 0.0
    %670 = vmatpush2.msra.mxu0 0.0
    %671 = vmatprep.subr.mxu0 0.0
    %672 = vmatpush2.msra.mxu0 0.0
    %673 = vmatprep.subr.mxu0 0.0
    %674 = vmatpush2.msra.mxu0 0.0
    %675 = vmatprep.subr.mxu0 0.0
    %676 = vmatpush2.msra.mxu0 0.0
    %677 = vmatprep.subr.mxu0 0.0
    %678 = vmatpush2.msra.mxu0 0.0
    %679 = vmatprep.subr.mxu0 0.0
    %680 = vmatpush2.msra.mxu0 0.0
    %681 = vmatprep.subr.mxu0 0.0
    %682 = vmatpush2.msra.mxu0 0.0
    %683 = vmatprep.subr.mxu0 0.0
    %684 = vmatpush2.msra.mxu0 0.0
    %685 = vmatprep.subr.mxu0 0.0
    %686 = vmatpush2.msra.mxu0 0.0
    %687 = vmatprep.subr.mxu0 0.0
    %688 = vmatpush2.msra.mxu0 0.0
    %689 = vmatprep.subr.mxu0 0.0
    %690 = vmatpush2.msra.mxu0 0.0
    %691 = vmatprep.subr.mxu0 0.0
    %692 = vmatpush2.msra.mxu0 0.0
    %693 = vmatprep.subr.mxu0 0.0
    %694 = vmatpush2.msra.mxu0 0.0
    %695 = vmatprep.subr.mxu0 0.0
    %696 = vmatpush2.msra.mxu0 0.0
    %697 = vmatprep.mubr.f32.mxu0 0.0
    %698 = vmatmul.mubr.f32.gmra.mxu0 %v631
    %v699 = vpop.f32.mrf.mxu0
    %v700 = vadd.f32 %v597, %v699
    %v701 = vpop.f32.mrf.mxu0
    %702 = vdwg.mxu0
    %v704 = vlaneseq
    %v705 = vshrl.u32 %v704, 7
    %v706 = vsub.s32 0, %v705
    %v707 = vrot.slane %v264, %v706
    %v709 = vadd.f32 %v700, %v707
    %v710 = vtanh.pop %v709
    %v711 = vmul.f32 %v710, 0.5
    %v712 = vadd.f32 %v711, 0.5
    %v713 = vmul.f32 %v712, 0.0
    %715 = vrot.lane.b32.xlu0 %v710, 64
    %v716 = vpop.permute.xlu0 %715
    %v718 = vmul.f32 %v712, %v716
    %720 = vrot.lane.b32.xlu0 %v718, 32
    %v721 = vpop.permute.xlu0 %720
    %v723 = vadd.f32 %v713, %v721
    %v724 = vtanh.pop %v723
    %726 = vrot.lane.b32.xlu0 %v724, 64
    %v727 = vpop.permute.xlu0 %726
    %v729 = vmul.f32 %v712, %v727
    %v730 = vadd.f32 %v729, 0.0
    %v731 = vld [vmem:[#allocation2 + $0x1] sm:$0x1]
    %v732 = vld [vmem:[#allocation2 + $0x9] sm:$0x1]
    %v733 = vld [vmem:[#allocation2 + $0x11] sm:$0x1]
    %v734 = vld [vmem:[#allocation2 + $0x19] sm:$0x1]
    %v735 = vld [vmem:[#allocation2 + $0x21] sm:$0x1]
    %v736 = vld [vmem:[#allocation2 + $0x29] sm:$0x1]
    %v737 = vld [vmem:[#allocation2 + $0x31] sm:$0x1]
    %v738 = vld [vmem:[#allocation2 + $0x39] sm:$0x1]
    %739 = vmatprep.subr.mxu0 0.0
    %740 = vmatpush1.msra.mxu0 0.0
    %741 = vmatprep.subr.mxu0 0.0
    %742 = vmatpush1.msra.mxu0 0.0
    %743 = vmatprep.subr.mxu0 0.0
    %744 = vmatpush1.msra.mxu0 0.0
    %745 = vmatprep.subr.mxu0 0.0
    %746 = vmatpush1.msra.mxu0 0.0
    %747 = vmatprep.subr.mxu0 0.0
    %748 = vmatpush1.msra.mxu0 0.0
    %749 = vmatprep.subr.mxu0 0.0
    %750 = vmatpush1.msra.mxu0 0.0
    %751 = vmatprep.subr.mxu0 0.0
    %752 = vmatpush1.msra.mxu0 0.0
    %753 = vmatprep.subr.mxu0 0.0
    %754 = vmatpush1.msra.mxu0 0.0
    %755 = vmatprep.subr.mxu0 0.0
    %756 = vmatpush1.msra.mxu0 0.0
    %757 = vmatprep.subr.mxu0 0.0
    %758 = vmatpush1.msra.mxu0 0.0
    %759 = vmatprep.subr.mxu0 0.0
    %760 = vmatpush1.msra.mxu0 0.0
    %761 = vmatprep.subr.mxu0 0.0
    %762 = vmatpush1.msra.mxu0 0.0
    %763 = vmatprep.subr.mxu0 0.0
    %764 = vmatpush1.msra.mxu0 %v255
    %765 = vmatprep.subr.mxu0 0.0
    %766 = vmatpush1.msra.mxu0 %v254
    %767 = vmatprep.subr.mxu0 0.0
    %768 = vmatpush1.msra.mxu0 %v253
    %769 = vmatprep.subr.mxu0 0.0
    %770 = vmatpush1.msra.mxu0 %v252
    %771 = vmatprep.subr.mxu0 0.0
    %772 = vmatpush2.msra.mxu0 0.0
    %773 = vmatprep.subr.mxu0 0.0
    %774 = vmatpush2.msra.mxu0 0.0
    %775 = vmatprep.subr.mxu0 0.0
    %776 = vmatpush2.msra.mxu0 0.0
    %777 = vmatprep.subr.mxu0 0.0
    %778 = vmatpush2.msra.mxu0 0.0
    %779 = vmatprep.subr.mxu0 0.0
    %780 = vmatpush2.msra.mxu0 0.0
    %781 = vmatprep.subr.mxu0 0.0
    %782 = vmatpush2.msra.mxu0 0.0
    %783 = vmatprep.subr.mxu0 0.0
    %784 = vmatpush2.msra.mxu0 0.0
    %785 = vmatprep.subr.mxu0 0.0
    %786 = vmatpush2.msra.mxu0 0.0
    %787 = vmatprep.subr.mxu0 0.0
    %788 = vmatpush2.msra.mxu0 0.0
    %789 = vmatprep.subr.mxu0 0.0
    %790 = vmatpush2.msra.mxu0 0.0
    %791 = vmatprep.subr.mxu0 0.0
    %792 = vmatpush2.msra.mxu0 0.0
    %793 = vmatprep.subr.mxu0 0.0
    %794 = vmatpush2.msra.mxu0 0.0
    %795 = vmatprep.subr.mxu0 0.0
    %796 = vmatpush2.msra.mxu0 0.0
    %797 = vmatprep.subr.mxu0 0.0
    %798 = vmatpush2.msra.mxu0 0.0
    %799 = vmatprep.subr.mxu0 0.0
    %800 = vmatpush2.msra.mxu0 0.0
    %801 = vmatprep.subr.mxu0 0.0
    %802 = vmatpush2.msra.mxu0 0.0
    %803 = vmatprep.mubr.f32.mxu0 0.0
    %804 = vmatmul.mubr.f32.gmra.mxu0 %v631
    %v805 = vpop.f32.mrf.mxu0
    %v806 = vadd.f32 0.0, %v805
    %v807 = vpop.f32.mrf.mxu0
    %808 = vdwg.mxu0
    %v810 = vrot.slane %v806, 1
    %v811 = vrot.slane %v806, 2
    %v812 = vrot.slane %v806, 3
    %v813 = vrot.slane %v806, 4
    %v814 = vrot.slane %v806, 5
    %v815 = vrot.slane %v806, 6
    %v816 = vrot.slane %v806, 7
    %v825 = vadd.f32 %v731, %v806
    %v826 = vadd.f32 %v732, %v810
    %v827 = vadd.f32 %v733, %v811
    %v828 = vadd.f32 %v734, %v812
    %v829 = vadd.f32 %v735, %v813
    %v830 = vadd.f32 %v736, %v814
    %v831 = vadd.f32 %v737, %v815
    %v832 = vadd.f32 %v738, %v816
    %v833 = vtanh.pop %v825
    %v834 = vtanh.pop %v826
    %v835 = vtanh.pop %v827
    %v836 = vtanh.pop %v828
    %v837 = vtanh.pop %v829
    %v838 = vtanh.pop %v830
    %v839 = vtanh.pop %v831
    %v840 = vtanh.pop %v832
    %v841 = vmul.f32 %v833, 0.5
    %v842 = vmul.f32 %v834, 0.5
    %v843 = vmul.f32 %v835, 0.5
    %v844 = vmul.f32 %v836, 0.5
    %v845 = vmul.f32 %v837, 0.5
    %v846 = vmul.f32 %v838, 0.5
    %v847 = vmul.f32 %v839, 0.5
    %v848 = vmul.f32 %v840, 0.5
    %v849 = vadd.f32 %v841, 0.5
    %v850 = vadd.f32 %v842, 0.5
    %v851 = vadd.f32 %v843, 0.5
    %v852 = vadd.f32 %v844, 0.5
    %v853 = vadd.f32 %v845, 0.5
    %v854 = vadd.f32 %v846, 0.5
    %v855 = vadd.f32 %v847, 0.5
    %v856 = vadd.f32 %v848, 0.5
    %v857 = vmul.f32 %v849, %v474
    %v858 = vmul.f32 %v850, %v475
    %v859 = vmul.f32 %v851, %v476
    %v860 = vmul.f32 %v852, %v477
    %v861 = vmul.f32 %v853, %v478
    %v862 = vmul.f32 %v854, %v479
    %v863 = vmul.f32 %v855, %v480
    %v864 = vmul.f32 %v856, %v481
    %873 = vrot.lane.b32.xlu0 %v833, 64
    %v874 = vpop.permute.xlu0 %873
    %875 = vrot.lane.b32.xlu0 %v834, 64
    %v876 = vpop.permute.xlu0 %875
    %877 = vrot.lane.b32.xlu0 %v835, 64
    %v878 = vpop.permute.xlu0 %877
    %879 = vrot.lane.b32.xlu0 %v836, 64
    %v880 = vpop.permute.xlu0 %879
    %881 = vrot.lane.b32.xlu0 %v837, 64
    %v882 = vpop.permute.xlu0 %881
    %883 = vrot.lane.b32.xlu0 %v838, 64
    %v884 = vpop.permute.xlu0 %883
    %885 = vrot.lane.b32.xlu0 %v839, 64
    %v886 = vpop.permute.xlu0 %885
    %887 = vrot.lane.b32.xlu0 %v840, 64
    %v888 = vpop.permute.xlu0 %887
    %v897 = vmul.f32 %v849, %v874
    %v898 = vmul.f32 %v850, %v876
    %v899 = vmul.f32 %v851, %v878
    %v900 = vmul.f32 %v852, %v880
    %v901 = vmul.f32 %v853, %v882
    %v902 = vmul.f32 %v854, %v884
    %v903 = vmul.f32 %v855, %v886
    %v904 = vmul.f32 %v856, %v888
    %913 = vrot.lane.b32.xlu0 %v897, 32
    %v914 = vpop.permute.xlu0 %913
    %915 = vrot.lane.b32.xlu0 %v898, 32
    %v916 = vpop.permute.xlu0 %915
    %917 = vrot.lane.b32.xlu0 %v899, 32
    %v918 = vpop.permute.xlu0 %917
    %919 = vrot.lane.b32.xlu0 %v900, 32
    %v920 = vpop.permute.xlu0 %919
    %921 = vrot.lane.b32.xlu0 %v901, 32
    %v922 = vpop.permute.xlu0 %921
    %923 = vrot.lane.b32.xlu0 %v902, 32
    %v924 = vpop.permute.xlu0 %923
    %925 = vrot.lane.b32.xlu0 %v903, 32
    %v926 = vpop.permute.xlu0 %925
    %927 = vrot.lane.b32.xlu0 %v904, 32
    %v928 = vpop.permute.xlu0 %927
    %v937 = vadd.f32 %v857, %v914
    %v938 = vadd.f32 %v858, %v916
    %v939 = vadd.f32 %v859, %v918
    %v940 = vadd.f32 %v860, %v920
    %v941 = vadd.f32 %v861, %v922
    %v942 = vadd.f32 %v862, %v924
    %v943 = vadd.f32 %v863, %v926
    %v944 = vadd.f32 %v864, %v928
    %v945 = vtanh.pop %v937
    %v946 = vtanh.pop %v938
    %v947 = vtanh.pop %v939
    %v948 = vtanh.pop %v940
    %v949 = vtanh.pop %v941
    %v950 = vtanh.pop %v942
    %v951 = vtanh.pop %v943
    %v952 = vtanh.pop %v944
    %961 = vrot.lane.b32.xlu0 %v945, 64
    %v962 = vpop.permute.xlu0 %961
    %963 = vrot.lane.b32.xlu0 %v946, 64
    %v964 = vpop.permute.xlu0 %963
    %965 = vrot.lane.b32.xlu0 %v947, 64
    %v966 = vpop.permute.xlu0 %965
    %967 = vrot.lane.b32.xlu0 %v948, 64
    %v968 = vpop.permute.xlu0 %967
    %969 = vrot.lane.b32.xlu0 %v949, 64
    %v970 = vpop.permute.xlu0 %969
    %971 = vrot.lane.b32.xlu0 %v950, 64
    %v972 = vpop.permute.xlu0 %971
    %973 = vrot.lane.b32.xlu0 %v951, 64
    %v974 = vpop.permute.xlu0 %973
    %975 = vrot.lane.b32.xlu0 %v952, 64
    %v976 = vpop.permute.xlu0 %975
    %v985 = vmul.f32 %v849, %v962
    %v986 = vmul.f32 %v850, %v964
    %v987 = vmul.f32 %v851, %v966
    %v988 = vmul.f32 %v852, %v968
    %v989 = vmul.f32 %v853, %v970
    %v990 = vmul.f32 %v854, %v972
    %v991 = vmul.f32 %v855, %v974
    %v992 = vmul.f32 %v856, %v976
    %994 = vrot.lane.b32.xlu0 %v729, 32
    %v995 = vpop.permute.xlu0 %994
    %v996 = vsel %vm114, %v995, 0
    %998 = vmatprep.subr.mxu0 0.0
    %999 = vmatpush1.msra.mxu0 0.0
    %1000 = vmatprep.subr.mxu0 0.0
    %1001 = vmatpush1.msra.mxu0 0.0
    %1002 = vmatprep.subr.mxu0 0.0
    %1003 = vmatpush1.msra.mxu0 0.0
    %1004 = vmatprep.subr.mxu0 0.0
    %1005 = vmatpush1.msra.mxu0 0.0
    %1006 = vmatprep.subr.mxu0 0.0
    %1007 = vmatpush1.msra.mxu0 0.0
    %1008 = vmatprep.subr.mxu0 0.0
    %1009 = vmatpush1.msra.mxu0 0.0
    %1010 = vmatprep.subr.mxu0 0.0
    %1011 = vmatpush1.msra.mxu0 0.0
    %1012 = vmatprep.subr.mxu0 0.0
    %1013 = vmatpush1.msra.mxu0 0.0
    %1014 = vmatprep.subr.mxu0 0.0
    %1015 = vmatpush1.msra.mxu0 0.0
    %1016 = vmatprep.subr.mxu0 0.0
    %1017 = vmatpush1.msra.mxu0 0.0
    %1018 = vmatprep.subr.mxu0 0.0
    %1019 = vmatpush1.msra.mxu0 0.0
    %1020 = vmatprep.subr.mxu0 0.0
    %1021 = vmatpush1.msra.mxu0 0.0
    %1022 = vmatprep.subr.mxu0 0.0
    %1023 = vmatpush1.msra.mxu0 %v263
    %1024 = vmatprep.subr.mxu0 0.0
    %1025 = vmatpush1.msra.mxu0 %v262
    %1026 = vmatprep.subr.mxu0 0.0
    %1027 = vmatpush1.msra.mxu0 %v261
    %1028 = vmatprep.subr.mxu0 0.0
    %1029 = vmatpush1.msra.mxu0 %v260
    %1030 = vmatprep.subr.mxu0 0.0
    %1031 = vmatpush2.msra.mxu0 0.0
    %1032 = vmatprep.subr.mxu0 0.0
    %1033 = vmatpush2.msra.mxu0 0.0
    %1034 = vmatprep.subr.mxu0 0.0
    %1035 = vmatpush2.msra.mxu0 0.0
    %1036 = vmatprep.subr.mxu0 0.0
    %1037 = vmatpush2.msra.mxu0 0.0
    %1038 = vmatprep.subr.mxu0 0.0
    %1039 = vmatpush2.msra.mxu0 0.0
    %1040 = vmatprep.subr.mxu0 0.0
    %1041 = vmatpush2.msra.mxu0 0.0
    %1042 = vmatprep.subr.mxu0 0.0
    %1043 = vmatpush2.msra.mxu0 0.0
    %1044 = vmatprep.subr.mxu0 0.0
    %1045 = vmatpush2.msra.mxu0 0.0
    %1046 = vmatprep.subr.mxu0 0.0
    %1047 = vmatpush2.msra.mxu0 0.0
    %1048 = vmatprep.subr.mxu0 0.0
    %1049 = vmatpush2.msra.mxu0 0.0
    %1050 = vmatprep.subr.mxu0 0.0
    %1051 = vmatpush2.msra.mxu0 0.0
    %1052 = vmatprep.subr.mxu0 0.0
    %1053 = vmatpush2.msra.mxu0 0.0
    %1054 = vmatprep.subr.mxu0 0.0
    %1055 = vmatpush2.msra.mxu0 0.0
    %1056 = vmatprep.subr.mxu0 0.0
    %1057 = vmatpush2.msra.mxu0 0.0
    %1058 = vmatprep.subr.mxu0 0.0
    %1059 = vmatpush2.msra.mxu0 0.0
    %1060 = vmatprep.subr.mxu0 0.0
    %1061 = vmatpush2.msra.mxu0 0.0
    %1062 = vmatprep.mubr.f32.mxu0 0.0
    %1063 = vmatmul.mubr.f32.gmra.mxu0 %v996
    %v1064 = vpop.f32.mrf.mxu0
    %v1065 = vadd.f32 0.0, %v1064
    %v1066 = vpop.f32.mrf.mxu0
    %1067 = vdwg.mxu0
    %v1076 = vrot.slane %v986, 7
    %v1077 = vsel %vm609, %v1076, %v985
    %v1078 = vrot.slane %v987, 6
    %v1079 = vsel %vm612, %v1078, %v1077
    %v1080 = vrot.slane %v988, 5
    %v1081 = vsel %vm615, %v1080, %v1079
    %v1082 = vrot.slane %v989, 4
    %v1083 = vsel %vm618, %v1082, %v1081
    %v1084 = vrot.slane %v990, 3
    %v1085 = vsel %vm621, %v1084, %v1083
    %v1086 = vrot.slane %v991, 2
    %v1087 = vsel %vm624, %v1086, %v1085
    %v1088 = vrot.slane %v992, 1
    %v1089 = vsel %vm627, %v1088, %v1087
    %1090 = vrot.lane.b32.xlu0 %v1089, 32
    %v1091 = vpop.permute.xlu0 %1090
    %v1092 = vsel %vm114, %v1091, 0
    %1094 = vmatprep.subr.mxu0 0.0
    %1095 = vmatpush1.msra.mxu0 0.0
    %1096 = vmatprep.subr.mxu0 0.0
    %1097 = vmatpush1.msra.mxu0 0.0
    %1098 = vmatprep.subr.mxu0 0.0
    %1099 = vmatpush1.msra.mxu0 0.0
    %1100 = vmatprep.subr.mxu0 0.0
    %1101 = vmatpush1.msra.mxu0 0.0
    %1102 = vmatprep.subr.mxu0 0.0
    %1103 = vmatpush1.msra.mxu0 0.0
    %1104 = vmatprep.subr.mxu0 0.0
    %1105 = vmatpush1.msra.mxu0 0.0
    %1106 = vmatprep.subr.mxu0 0.0
    %1107 = vmatpush1.msra.mxu0 0.0
    %1108 = vmatprep.subr.mxu0 0.0
    %1109 = vmatpush1.msra.mxu0 0.0
    %1110 = vmatprep.subr.mxu0 0.0
    %1111 = vmatpush1.msra.mxu0 0.0
    %1112 = vmatprep.subr.mxu0 0.0
    %1113 = vmatpush1.msra.mxu0 0.0
    %1114 = vmatprep.subr.mxu0 0.0
    %1115 = vmatpush1.msra.mxu0 0.0
    %1116 = vmatprep.subr.mxu0 0.0
    %1117 = vmatpush1.msra.mxu0 0.0
    %1118 = vmatprep.subr.mxu0 0.0
    %1119 = vmatpush1.msra.mxu0 %v259
    %1120 = vmatprep.subr.mxu0 0.0
    %1121 = vmatpush1.msra.mxu0 %v258
    %1122 = vmatprep.subr.mxu0 0.0
    %1123 = vmatpush1.msra.mxu0 %v257
    %1124 = vmatprep.subr.mxu0 0.0
    %1125 = vmatpush1.msra.mxu0 %v256
    %1126 = vmatprep.subr.mxu0 0.0
    %1127 = vmatpush2.msra.mxu0 0.0
    %1128 = vmatprep.subr.mxu0 0.0
    %1129 = vmatpush2.msra.mxu0 0.0
    %1130 = vmatprep.subr.mxu0 0.0
    %1131 = vmatpush2.msra.mxu0 0.0
    %1132 = vmatprep.subr.mxu0 0.0
    %1133 = vmatpush2.msra.mxu0 0.0
    %1134 = vmatprep.subr.mxu0 0.0
    %1135 = vmatpush2.msra.mxu0 0.0
    %1136 = vmatprep.subr.mxu0 0.0
    %1137 = vmatpush2.msra.mxu0 0.0
    %1138 = vmatprep.subr.mxu0 0.0
    %1139 = vmatpush2.msra.mxu0 0.0
    %1140 = vmatprep.subr.mxu0 0.0
    %1141 = vmatpush2.msra.mxu0 0.0
    %1142 = vmatprep.subr.mxu0 0.0
    %1143 = vmatpush2.msra.mxu0 0.0
    %1144 = vmatprep.subr.mxu0 0.0
    %1145 = vmatpush2.msra.mxu0 0.0
    %1146 = vmatprep.subr.mxu0 0.0
    %1147 = vmatpush2.msra.mxu0 0.0
    %1148 = vmatprep.subr.mxu0 0.0
    %1149 = vmatpush2.msra.mxu0 0.0
    %1150 = vmatprep.subr.mxu0 0.0
    %1151 = vmatpush2.msra.mxu0 0.0
    %1152 = vmatprep.subr.mxu0 0.0
    %1153 = vmatpush2.msra.mxu0 0.0
    %1154 = vmatprep.subr.mxu0 0.0
    %1155 = vmatpush2.msra.mxu0 0.0
    %1156 = vmatprep.subr.mxu0 0.0
    %1157 = vmatpush2.msra.mxu0 0.0
    %1158 = vmatprep.mubr.f32.mxu0 0.0
    %1159 = vmatmul.mubr.f32.gmra.mxu0 %v1092
    %v1160 = vpop.f32.mrf.mxu0
    %v1161 = vadd.f32 %v1065, %v1160
    %v1162 = vpop.f32.mrf.mxu0
    %1163 = vdwg.mxu0
    %v1164 = vadd.f32 %v1161, %v707
    %v1165 = vtanh.pop %v1164
    %v1166 = vmul.f32 %v1165, 0.5
    %v1167 = vadd.f32 %v1166, 0.5
    %v1168 = vmul.f32 %v1167, %v723
    %1170 = vrot.lane.b32.xlu0 %v1165, 64
    %v1171 = vpop.permute.xlu0 %1170
    %v1173 = vmul.f32 %v1167, %v1171
    %1175 = vrot.lane.b32.xlu0 %v1173, 32
    %v1176 = vpop.permute.xlu0 %1175
    %v1178 = vadd.f32 %v1168, %v1176
    %v1179 = vtanh.pop %v1178
    %1181 = vrot.lane.b32.xlu0 %v1179, 64
    %v1182 = vpop.permute.xlu0 %1181
    %v1184 = vmul.f32 %v1167, %v1182
    %v1185 = vadd.f32 %v730, %v1184
    %v1186 = vld [vmem:[#allocation2 + $0x2] sm:$0x1]
    %v1187 = vld [vmem:[#allocation2 + $0xa] sm:$0x1]
    %v1188 = vld [vmem:[#allocation2 + $0x12] sm:$0x1]
    %v1189 = vld [vmem:[#allocation2 + $0x1a] sm:$0x1]
    %v1190 = vld [vmem:[#allocation2 + $0x22] sm:$0x1]
    %v1191 = vld [vmem:[#allocation2 + $0x2a] sm:$0x1]
    %v1192 = vld [vmem:[#allocation2 + $0x32] sm:$0x1]
    %v1193 = vld [vmem:[#allocation2 + $0x3a] sm:$0x1]
    %1194 = vmatprep.subr.mxu0 0.0
    %1195 = vmatpush1.msra.mxu0 0.0
    %1196 = vmatprep.subr.mxu0 0.0
    %1197 = vmatpush1.msra.mxu0 0.0
    %1198 = vmatprep.subr.mxu0 0.0
    %1199 = vmatpush1.msra.mxu0 0.0
    %1200 = vmatprep.subr.mxu0 0.0
    %1201 = vmatpush1.msra.mxu0 0.0
    %1202 = vmatprep.subr.mxu0 0.0
    %1203 = vmatpush1.msra.mxu0 0.0
    %1204 = vmatprep.subr.mxu0 0.0
    %1205 = vmatpush1.msra.mxu0 0.0
    %1206 = vmatprep.subr.mxu0 0.0
    %1207 = vmatpush1.msra.mxu0 0.0
    %1208 = vmatprep.subr.mxu0 0.0
    %1209 = vmatpush1.msra.mxu0 0.0
    %1210 = vmatprep.subr.mxu0 0.0
    %1211 = vmatpush1.msra.mxu0 0.0
    %1212 = vmatprep.subr.mxu0 0.0
    %1213 = vmatpush1.msra.mxu0 0.0
    %1214 = vmatprep.subr.mxu0 0.0
    %1215 = vmatpush1.msra.mxu0 0.0
    %1216 = vmatprep.subr.mxu0 0.0
    %1217 = vmatpush1.msra.mxu0 0.0
    %1218 = vmatprep.subr.mxu0 0.0
    %1219 = vmatpush1.msra.mxu0 %v255
    %1220 = vmatprep.subr.mxu0 0.0
    %1221 = vmatpush1.msra.mxu0 %v254
    %1222 = vmatprep.subr.mxu0 0.0
    %1223 = vmatpush1.msra.mxu0 %v253
    %1224 = vmatprep.subr.mxu0 0.0
    %1225 = vmatpush1.msra.mxu0 %v252
    %1226 = vmatprep.subr.mxu0 0.0
    %1227 = vmatpush2.msra.mxu0 0.0
    %1228 = vmatprep.subr.mxu0 0.0
    %1229 = vmatpush2.msra.mxu0 0.0
    %1230 = vmatprep.subr.mxu0 0.0
    %1231 = vmatpush2.msra.mxu0 0.0
    %1232 = vmatprep.subr.mxu0 0.0
    %1233 = vmatpush2.msra.mxu0 0.0
    %1234 = vmatprep.subr.mxu0 0.0
    %1235 = vmatpush2.msra.mxu0 0.0
    %1236 = vmatprep.subr.mxu0 0.0
    %1237 = vmatpush2.msra.mxu0 0.0
    %1238 = vmatprep.subr.mxu0 0.0
    %1239 = vmatpush2.msra.mxu0 0.0
    %1240 = vmatprep.subr.mxu0 0.0
    %1241 = vmatpush2.msra.mxu0 0.0
    %1242 = vmatprep.subr.mxu0 0.0
    %1243 = vmatpush2.msra.mxu0 0.0
    %1244 = vmatprep.subr.mxu0 0.0
    %1245 = vmatpush2.msra.mxu0 0.0
    %1246 = vmatprep.subr.mxu0 0.0
    %1247 = vmatpush2.msra.mxu0 0.0
    %1248 = vmatprep.subr.mxu0 0.0
    %1249 = vmatpush2.msra.mxu0 0.0
    %1250 = vmatprep.subr.mxu0 0.0
    %1251 = vmatpush2.msra.mxu0 0.0
    %1252 = vmatprep.subr.mxu0 0.0
    %1253 = vmatpush2.msra.mxu0 0.0
    %1254 = vmatprep.subr.mxu0 0.0
    %1255 = vmatpush2.msra.mxu0 0.0
    %1256 = vmatprep.subr.mxu0 0.0
    %1257 = vmatpush2.msra.mxu0 0.0
    %1258 = vmatprep.mubr.f32.mxu0 0.0
    %1259 = vmatmul.mubr.f32.gmra.mxu0 %v1092
    %v1260 = vpop.f32.mrf.mxu0
    %v1261 = vadd.f32 0.0, %v1260
    %v1262 = vpop.f32.mrf.mxu0
    %1263 = vdwg.mxu0
    %v1265 = vrot.slane %v1261, 1
    %v1266 = vrot.slane %v1261, 2
    %v1267 = vrot.slane %v1261, 3
    %v1268 = vrot.slane %v1261, 4
    %v1269 = vrot.slane %v1261, 5
    %v1270 = vrot.slane %v1261, 6
    %v1271 = vrot.slane %v1261, 7
    %v1280 = vadd.f32 %v1186, %v1261
    %v1281 = vadd.f32 %v1187, %v1265
    %v1282 = vadd.f32 %v1188, %v1266
    %v1283 = vadd.f32 %v1189, %v1267
    %v1284 = vadd.f32 %v1190, %v1268
    %v1285 = vadd.f32 %v1191, %v1269
    %v1286 = vadd.f32 %v1192, %v1270
    %v1287 = vadd.f32 %v1193, %v1271
    %v1288 = vtanh.pop %v1280
    %v1289 = vtanh.pop %v1281
    %v1290 = vtanh.pop %v1282
    %v1291 = vtanh.pop %v1283
    %v1292 = vtanh.pop %v1284
    %v1293 = vtanh.pop %v1285
    %v1294 = vtanh.pop %v1286
    %v1295 = vtanh.pop %v1287
    %v1296 = vmul.f32 %v1288, 0.5
    %v1297 = vmul.f32 %v1289, 0.5
    %v1298 = vmul.f32 %v1290, 0.5
    %v1299 = vmul.f32 %v1291, 0.5
    %v1300 = vmul.f32 %v1292, 0.5
    %v1301 = vmul.f32 %v1293, 0.5
    %v1302 = vmul.f32 %v1294, 0.5
    %v1303 = vmul.f32 %v1295, 0.5
    %v1304 = vadd.f32 %v1296, 0.5
    %v1305 = vadd.f32 %v1297, 0.5
    %v1306 = vadd.f32 %v1298, 0.5
    %v1307 = vadd.f32 %v1299, 0.5
    %v1308 = vadd.f32 %v1300, 0.5
    %v1309 = vadd.f32 %v1301, 0.5
    %v1310 = vadd.f32 %v1302, 0.5
    %v1311 = vadd.f32 %v1303, 0.5
    %v1312 = vmul.f32 %v1304, %v937
    %v1313 = vmul.f32 %v1305, %v938
    %v1314 = vmul.f32 %v1306, %v939
    %v1315 = vmul.f32 %v1307, %v940
    %v1316 = vmul.f32 %v1308, %v941
    %v1317 = vmul.f32 %v1309, %v942
    %v1318 = vmul.f32 %v1310, %v943
    %v1319 = vmul.f32 %v1311, %v944
    %1328 = vrot.lane.b32.xlu0 %v1288, 64
    %v1329 = vpop.permute.xlu0 %1328
    %1330 = vrot.lane.b32.xlu0 %v1289, 64
    %v1331 = vpop.permute.xlu0 %1330
    %1332 = vrot.lane.b32.xlu0 %v1290, 64
    %v1333 = vpop.permute.xlu0 %1332
    %1334 = vrot.lane.b32.xlu0 %v1291, 64
    %v1335 = vpop.permute.xlu0 %1334
    %1336 = vrot.lane.b32.xlu0 %v1292, 64
    %v1337 = vpop.permute.xlu0 %1336
    %1338 = vrot.lane.b32.xlu0 %v1293, 64
    %v1339 = vpop.permute.xlu0 %1338
    %1340 = vrot.lane.b32.xlu0 %v1294, 64
    %v1341 = vpop.permute.xlu0 %1340
    %1342 = vrot.lane.b32.xlu0 %v1295, 64
    %v1343 = vpop.permute.xlu0 %1342
    %v1352 = vmul.f32 %v1304, %v1329
    %v1353 = vmul.f32 %v1305, %v1331
    %v1354 = vmul.f32 %v1306, %v1333
    %v1355 = vmul.f32 %v1307, %v1335
    %v1356 = vmul.f32 %v1308, %v1337
    %v1357 = vmul.f32 %v1309, %v1339
    %v1358 = vmul.f32 %v1310, %v1341
    %v1359 = vmul.f32 %v1311, %v1343
    %1368 = vrot.lane.b32.xlu0 %v1352, 32
    %v1369 = vpop.permute.xlu0 %1368
    %1370 = vrot.lane.b32.xlu0 %v1353, 32
    %v1371 = vpop.permute.xlu0 %1370
    %1372 = vrot.lane.b32.xlu0 %v1354, 32
    %v1373 = vpop.permute.xlu0 %1372
    %1374 = vrot.lane.b32.xlu0 %v1355, 32
    %v1375 = vpop.permute.xlu0 %1374
    %1376 = vrot.lane.b32.xlu0 %v1356, 32
    %v1377 = vpop.permute.xlu0 %1376
    %1378 = vrot.lane.b32.xlu0 %v1357, 32
    %v1379 = vpop.permute.xlu0 %1378
    %1380 = vrot.lane.b32.xlu0 %v1358, 32
    %v1381 = vpop.permute.xlu0 %1380
    %1382 = vrot.lane.b32.xlu0 %v1359, 32
    %v1383 = vpop.permute.xlu0 %1382
    %v1392 = vadd.f32 %v1312, %v1369
    %v1393 = vadd.f32 %v1313, %v1371
    %v1394 = vadd.f32 %v1314, %v1373
    %v1395 = vadd.f32 %v1315, %v1375
    %v1396 = vadd.f32 %v1316, %v1377
    %v1397 = vadd.f32 %v1317, %v1379
    %v1398 = vadd.f32 %v1318, %v1381
    %v1399 = vadd.f32 %v1319, %v1383
    %v1400 = vtanh.pop %v1392
    %v1401 = vtanh.pop %v1393
    %v1402 = vtanh.pop %v1394
    %v1403 = vtanh.pop %v1395
    %v1404 = vtanh.pop %v1396
    %v1405 = vtanh.pop %v1397
    %v1406 = vtanh.pop %v1398
    %v1407 = vtanh.pop %v1399
    %1416 = vrot.lane.b32.xlu0 %v1400, 64
    %v1417 = vpop.permute.xlu0 %1416
    %1418 = vrot.lane.b32.xlu0 %v1401, 64
    %v1419 = vpop.permute.xlu0 %1418
    %1420 = vrot.lane.b32.xlu0 %v1402, 64
    %v1421 = vpop.permute.xlu0 %1420
    %1422 = vrot.lane.b32.xlu0 %v1403, 64
    %v1423 = vpop.permute.xlu0 %1422
    %1424 = vrot.lane.b32.xlu0 %v1404, 64
    %v1425 = vpop.permute.xlu0 %1424
    %1426 = vrot.lane.b32.xlu0 %v1405, 64
    %v1427 = vpop.permute.xlu0 %1426
    %1428 = vrot.lane.b32.xlu0 %v1406, 64
    %v1429 = vpop.permute.xlu0 %1428
    %1430 = vrot.lane.b32.xlu0 %v1407, 64
    %v1431 = vpop.permute.xlu0 %1430
    %v1440 = vmul.f32 %v1304, %v1417
    %v1441 = vmul.f32 %v1305, %v1419
    %v1442 = vmul.f32 %v1306, %v1421
    %v1443 = vmul.f32 %v1307, %v1423
    %v1444 = vmul.f32 %v1308, %v1425
    %v1445 = vmul.f32 %v1309, %v1427
    %v1446 = vmul.f32 %v1310, %v1429
    %v1447 = vmul.f32 %v1311, %v1431
    %1449 = vrot.lane.b32.xlu0 %v1184, 32
    %v1450 = vpop.permute.xlu0 %1449
    %v1451 = vsel %vm114, %v1450, 0
    %1453 = vmatprep.subr.mxu0 0.0
    %1454 = vmatpush1.msra.mxu0 0.0
    %1455 = vmatprep.subr.mxu0 0.0
    %1456 = vmatpush1.msra.mxu0 0.0
    %1457 = vmatprep.subr.mxu0 0.0
    %1458 = vmatpush1.msra.mxu0 0.0
    %1459 = vmatprep.subr.mxu0 0.0
    %1460 = vmatpush1.msra.mxu0 0.0
    %1461 = vmatprep.subr.mxu0 0.0
    %1462 = vmatpush1.msra.mxu0 0.0
    %1463 = vmatprep.subr.mxu0 0.0
    %1464 = vmatpush1.msra.mxu0 0.0
    %1465 = vmatprep.subr.mxu0 0.0
    %1466 = vmatpush1.msra.mxu0 0.0
    %1467 = vmatprep.subr.mxu0 0.0
    %1468 = vmatpush1.msra.mxu0 0.0
    %1469 = vmatprep.subr.mxu0 0.0
    %1470 = vmatpush1.msra.mxu0 0.0
    %1471 = vmatprep.subr.mxu0 0.0
    %1472 = vmatpush1.msra.mxu0 0.0
    %1473 = vmatprep.subr.mxu0 0.0
    %1474 = vmatpush1.msra.mxu0 0.0
    %1475 = vmatprep.subr.mxu0 0.0
    %1476 = vmatpush1.msra.mxu0 0.0
    %1477 = vmatprep.subr.mxu0 0.0
    %1478 = vmatpush1.msra.mxu0 %v263
    %1479 = vmatprep.subr.mxu0 0.0
    %1480 = vmatpush1.msra.mxu0 %v262
    %1481 = vmatprep.subr.mxu0 0.0
    %1482 = vmatpush1.msra.mxu0 %v261
    %1483 = vmatprep.subr.mxu0 0.0
    %1484 = vmatpush1.msra.mxu0 %v260
    %1485 = vmatprep.subr.mxu0 0.0
    %1486 = vmatpush2.msra.mxu0 0.0
    %1487 = vmatprep.subr.mxu0 0.0
    %1488 = vmatpush2.msra.mxu0 0.0
    %1489 = vmatprep.subr.mxu0 0.0
    %1490 = vmatpush2.msra.mxu0 0.0
    %1491 = vmatprep.subr.mxu0 0.0
    %1492 = vmatpush2.msra.mxu0 0.0
    %1493 = vmatprep.subr.mxu0 0.0
    %1494 = vmatpush2.msra.mxu0 0.0
    %1495 = vmatprep.subr.mxu0 0.0
    %1496 = vmatpush2.msra.mxu0 0.0
    %1497 = vmatprep.subr.mxu0 0.0
    %1498 = vmatpush2.msra.mxu0 0.0
    %1499 = vmatprep.subr.mxu0 0.0
    %1500 = vmatpush2.msra.mxu0 0.0
    %1501 = vmatprep.subr.mxu0 0.0
    %1502 = vmatpush2.msra.mxu0 0.0
    %1503 = vmatprep.subr.mxu0 0.0
    %1504 = vmatpush2.msra.mxu0 0.0
    %1505 = vmatprep.subr.mxu0 0.0
    %1506 = vmatpush2.msra.mxu0 0.0
    %1507 = vmatprep.subr.mxu0 0.0
    %1508 = vmatpush2.msra.mxu0 0.0
    %1509 = vmatprep.subr.mxu0 0.0
    %1510 = vmatpush2.msra.mxu0 0.0
    %1511 = vmatprep.subr.mxu0 0.0
    %1512 = vmatpush2.msra.mxu0 0.0
    %1513 = vmatprep.subr.mxu0 0.0
    %1514 = vmatpush2.msra.mxu0 0.0
    %1515 = vmatprep.subr.mxu0 0.0
    %1516 = vmatpush2.msra.mxu0 0.0
    %1517 = vmatprep.mubr.f32.mxu0 0.0
    %1518 = vmatmul.mubr.f32.gmra.mxu0 %v1451
    %v1519 = vpop.f32.mrf.mxu0
    %v1520 = vadd.f32 0.0, %v1519
    %v1521 = vpop.f32.mrf.mxu0
    %1522 = vdwg.mxu0
    %v1531 = vrot.slane %v1441, 7
    %v1532 = vsel %vm609, %v1531, %v1440
    %v1533 = vrot.slane %v1442, 6
    %v1534 = vsel %vm612, %v1533, %v1532
    %v1535 = vrot.slane %v1443, 5
    %v1536 = vsel %vm615, %v1535, %v1534
    %v1537 = vrot.slane %v1444, 4
    %v1538 = vsel %vm618, %v1537, %v1536
    %v1539 = vrot.slane %v1445, 3
    %v1540 = vsel %vm621, %v1539, %v1538
    %v1541 = vrot.slane %v1446, 2
    %v1542 = vsel %vm624, %v1541, %v1540
    %v1543 = vrot.slane %v1447, 1
    %v1544 = vsel %vm627, %v1543, %v1542
    %1545 = vrot.lane.b32.xlu0 %v1544, 32
    %v1546 = vpop.permute.xlu0 %1545
    %v1547 = vsel %vm114, %v1546, 0
    %1549 = vmatprep.subr.mxu0 0.0
    %1550 = vmatpush1.msra.mxu0 0.0
    %1551 = vmatprep.subr.mxu0 0.0
    %1552 = vmatpush1.msra.mxu0 0.0
    %1553 = vmatprep.subr.mxu0 0.0
    %1554 = vmatpush1.msra.mxu0 0.0
    %1555 = vmatprep.subr.mxu0 0.0
    %1556 = vmatpush1.msra.mxu0 0.0
    %1557 = vmatprep.subr.mxu0 0.0
    %1558 = vmatpush1.msra.mxu0 0.0
    %1559 = vmatprep.subr.mxu0 0.0
    %1560 = vmatpush1.msra.mxu0 0.0
    %1561 = vmatprep.subr.mxu0 0.0
    %1562 = vmatpush1.msra.mxu0 0.0
    %1563 = vmatprep.subr.mxu0 0.0
    %1564 = vmatpush1.msra.mxu0 0.0
    %1565 = vmatprep.subr.mxu0 0.0
    %1566 = vmatpush1.msra.mxu0 0.0
    %1567 = vmatprep.subr.mxu0 0.0
    %1568 = vmatpush1.msra.mxu0 0.0
    %1569 = vmatprep.subr.mxu0 0.0
    %1570 = vmatpush1.msra.mxu0 0.0
    %1571 = vmatprep.subr.mxu0 0.0
    %1572 = vmatpush1.msra.mxu0 0.0
    %1573 = vmatprep.subr.mxu0 0.0
    %1574 = vmatpush1.msra.mxu0 %v259
    %1575 = vmatprep.subr.mxu0 0.0
    %1576 = vmatpush1.msra.mxu0 %v258
    %1577 = vmatprep.subr.mxu0 0.0
    %1578 = vmatpush1.msra.mxu0 %v257
    %1579 = vmatprep.subr.mxu0 0.0
    %1580 = vmatpush1.msra.mxu0 %v256
    %1581 = vmatprep.subr.mxu0 0.0
    %1582 = vmatpush2.msra.mxu0 0.0
    %1583 = vmatprep.subr.mxu0 0.0
    %1584 = vmatpush2.msra.mxu0 0.0
    %1585 = vmatprep.subr.mxu0 0.0
    %1586 = vmatpush2.msra.mxu0 0.0
    %1587 = vmatprep.subr.mxu0 0.0
    %1588 = vmatpush2.msra.mxu0 0.0
    %1589 = vmatprep.subr.mxu0 0.0
    %1590 = vmatpush2.msra.mxu0 0.0
    %1591 = vmatprep.subr.mxu0 0.0
    %1592 = vmatpush2.msra.mxu0 0.0
    %1593 = vmatprep.subr.mxu0 0.0
    %1594 = vmatpush2.msra.mxu0 0.0
    %1595 = vmatprep.subr.mxu0 0.0
    %1596 = vmatpush2.msra.mxu0 0.0
    %1597 = vmatprep.subr.mxu0 0.0
    %1598 = vmatpush2.msra.mxu0 0.0
    %1599 = vmatprep.subr.mxu0 0.0
    %1600 = vmatpush2.msra.mxu0 0.0
    %1601 = vmatprep.subr.mxu0 0.0
    %1602 = vmatpush2.msra.mxu0 0.0
    %1603 = vmatprep.subr.mxu0 0.0
    %1604 = vmatpush2.msra.mxu0 0.0
    %1605 = vmatprep.subr.mxu0 0.0
    %1606 = vmatpush2.msra.mxu0 0.0
    %1607 = vmatprep.subr.mxu0 0.0
    %1608 = vmatpush2.msra.mxu0 0.0
    %1609 = vmatprep.subr.mxu0 0.0
    %1610 = vmatpush2.msra.mxu0 0.0
    %1611 = vmatprep.subr.mxu0 0.0
    %1612 = vmatpush2.msra.mxu0 0.0
    %1613 = vmatprep.mubr.f32.mxu0 0.0
    %1614 = vmatmul.mubr.f32.gmra.mxu0 %v1547
    %v1615 = vpop.f32.mrf.mxu0
    %v1616 = vadd.f32 %v1520, %v1615
    %v1617 = vpop.f32.mrf.mxu0
    %1618 = vdwg.mxu0
    %v1619 = vadd.f32 %v1616, %v707
    %v1620 = vtanh.pop %v1619
    %v1621 = vmul.f32 %v1620, 0.5
    %v1622 = vadd.f32 %v1621, 0.5
    %v1623 = vmul.f32 %v1622, %v1178
    %1625 = vrot.lane.b32.xlu0 %v1620, 64
    %v1626 = vpop.permute.xlu0 %1625
    %v1628 = vmul.f32 %v1622, %v1626
    %1630 = vrot.lane.b32.xlu0 %v1628, 32
    %v1631 = vpop.permute.xlu0 %1630
    %v1633 = vadd.f32 %v1623, %v1631
    %v1634 = vtanh.pop %v1633
    %1636 = vrot.lane.b32.xlu0 %v1634, 64
    %v1637 = vpop.permute.xlu0 %1636
    %v1639 = vmul.f32 %v1622, %v1637
    %v1640 = vadd.f32 %v1185, %v1639
    %v1641 = vld [vmem:[#allocation2 + $0x3] sm:$0x1]
    %v1642 = vld [vmem:[#allocation2 + $0xb] sm:$0x1]
    %v1643 = vld [vmem:[#allocation2 + $0x13] sm:$0x1]
    %v1644 = vld [vmem:[#allocation2 + $0x1b] sm:$0x1]
    %v1645 = vld [vmem:[#allocation2 + $0x23] sm:$0x1]
    %v1646 = vld [vmem:[#allocation2 + $0x2b] sm:$0x1]
    %v1647 = vld [vmem:[#allocation2 + $0x33] sm:$0x1]
    %v1648 = vld [vmem:[#allocation2 + $0x3b] sm:$0x1]
    %1649 = vmatprep.subr.mxu0 0.0
    %1650 = vmatpush1.msra.mxu0 0.0
    %1651 = vmatprep.subr.mxu0 0.0
    %1652 = vmatpush1.msra.mxu0 0.0
    %1653 = vmatprep.subr.mxu0 0.0
    %1654 = vmatpush1.msra.mxu0 0.0
    %1655 = vmatprep.subr.mxu0 0.0
    %1656 = vmatpush1.msra.mxu0 0.0
    %1657 = vmatprep.subr.mxu0 0.0
    %1658 = vmatpush1.msra.mxu0 0.0
    %1659 = vmatprep.subr.mxu0 0.0
    %1660 = vmatpush1.msra.mxu0 0.0
    %1661 = vmatprep.subr.mxu0 0.0
    %1662 = vmatpush1.msra.mxu0 0.0
    %1663 = vmatprep.subr.mxu0 0.0
    %1664 = vmatpush1.msra.mxu0 0.0
    %1665 = vmatprep.subr.mxu0 0.0
    %1666 = vmatpush1.msra.mxu0 0.0
    %1667 = vmatprep.subr.mxu0 0.0
    %1668 = vmatpush1.msra.mxu0 0.0
    %1669 = vmatprep.subr.mxu0 0.0
    %1670 = vmatpush1.msra.mxu0 0.0
    %1671 = vmatprep.subr.mxu0 0.0
    %1672 = vmatpush1.msra.mxu0 0.0
    %1673 = vmatprep.subr.mxu0 0.0
    %1674 = vmatpush1.msra.mxu0 %v255
    %1675 = vmatprep.subr.mxu0 0.0
    %1676 = vmatpush1.msra.mxu0 %v254
    %1677 = vmatprep.subr.mxu0 0.0
    %1678 = vmatpush1.msra.mxu0 %v253
    %1679 = vmatprep.subr.mxu0 0.0
    %1680 = vmatpush1.msra.mxu0 %v252
    %1681 = vmatprep.subr.mxu0 0.0
    %1682 = vmatpush2.msra.mxu0 0.0
    %1683 = vmatprep.subr.mxu0 0.0
    %1684 = vmatpush2.msra.mxu0 0.0
    %1685 = vmatprep.subr.mxu0 0.0
    %1686 = vmatpush2.msra.mxu0 0.0
    %1687 = vmatprep.subr.mxu0 0.0
    %1688 = vmatpush2.msra.mxu0 0.0
    %1689 = vmatprep.subr.mxu0 0.0
    %1690 = vmatpush2.msra.mxu0 0.0
    %1691 = vmatprep.subr.mxu0 0.0
    %1692 = vmatpush2.msra.mxu0 0.0
    %1693 = vmatprep.subr.mxu0 0.0
    %1694 = vmatpush2.msra.mxu0 0.0
    %1695 = vmatprep.subr.mxu0 0.0
    %1696 = vmatpush2.msra.mxu0 0.0
    %1697 = vmatprep.subr.mxu0 0.0
    %1698 = vmatpush2.msra.mxu0 0.0
    %1699 = vmatprep.subr.mxu0 0.0
    %1700 = vmatpush2.msra.mxu0 0.0
    %1701 = vmatprep.subr.mxu0 0.0
    %1702 = vmatpush2.msra.mxu0 0.0
    %1703 = vmatprep.subr.mxu0 0.0
    %1704 = vmatpush2.msra.mxu0 0.0
    %1705 = vmatprep.subr.mxu0 0.0
    %1706 = vmatpush2.msra.mxu0 0.0
    %1707 = vmatprep.subr.mxu0 0.0
    %1708 = vmatpush2.msra.mxu0 0.0
    %1709 = vmatprep.subr.mxu0 0.0
    %1710 = vmatpush2.msra.mxu0 0.0
    %1711 = vmatprep.subr.mxu0 0.0
    %1712 = vmatpush2.msra.mxu0 0.0
    %1713 = vmatprep.mubr.f32.mxu0 0.0
    %1714 = vmatmul.mubr.f32.gmra.mxu0 %v1547
    %v1715 = vpop.f32.mrf.mxu0
    %v1716 = vadd.f32 0.0, %v1715
    %v1717 = vpop.f32.mrf.mxu0
    %1718 = vdwg.mxu0
    %v1720 = vrot.slane %v1716, 1
    %v1721 = vrot.slane %v1716, 2
    %v1722 = vrot.slane %v1716, 3
    %v1723 = vrot.slane %v1716, 4
    %v1724 = vrot.slane %v1716, 5
    %v1725 = vrot.slane %v1716, 6
    %v1726 = vrot.slane %v1716, 7
    %v1735 = vadd.f32 %v1641, %v1716
    %v1736 = vadd.f32 %v1642, %v1720
    %v1737 = vadd.f32 %v1643, %v1721
    %v1738 = vadd.f32 %v1644, %v1722
    %v1739 = vadd.f32 %v1645, %v1723
    %v1740 = vadd.f32 %v1646, %v1724
    %v1741 = vadd.f32 %v1647, %v1725
    %v1742 = vadd.f32 %v1648, %v1726
    %v1743 = vtanh.pop %v1735
    %v1744 = vtanh.pop %v1736
    %v1745 = vtanh.pop %v1737
    %v1746 = vtanh.pop %v1738
    %v1747 = vtanh.pop %v1739
    %v1748 = vtanh.pop %v1740
    %v1749 = vtanh.pop %v1741
    %v1750 = vtanh.pop %v1742
    %v1751 = vmul.f32 %v1743, 0.5
    %v1752 = vmul.f32 %v1744, 0.5
    %v1753 = vmul.f32 %v1745, 0.5
    %v1754 = vmul.f32 %v1746, 0.5
    %v1755 = vmul.f32 %v1747, 0.5
    %v1756 = vmul.f32 %v1748, 0.5
    %v1757 = vmul.f32 %v1749, 0.5
    %v1758 = vmul.f32 %v1750, 0.5
    %v1759 = vadd.f32 %v1751, 0.5
    %v1760 = vadd.f32 %v1752, 0.5
    %v1761 = vadd.f32 %v1753, 0.5
    %v1762 = vadd.f32 %v1754, 0.5
    %v1763 = vadd.f32 %v1755, 0.5
    %v1764 = vadd.f32 %v1756, 0.5
    %v1765 = vadd.f32 %v1757, 0.5
    %v1766 = vadd.f32 %v1758, 0.5
    %v1767 = vmul.f32 %v1759, %v1392
    %v1768 = vmul.f32 %v1760, %v1393
    %v1769 = vmul.f32 %v1761, %v1394
    %v1770 = vmul.f32 %v1762, %v1395
    %v1771 = vmul.f32 %v1763, %v1396
    %v1772 = vmul.f32 %v1764, %v1397
    %v1773 = vmul.f32 %v1765, %v1398
    %v1774 = vmul.f32 %v1766, %v1399
    %1783 = vrot.lane.b32.xlu0 %v1743, 64
    %v1784 = vpop.permute.xlu0 %1783
    %1785 = vrot.lane.b32.xlu0 %v1744, 64
    %v1786 = vpop.permute.xlu0 %1785
    %1787 = vrot.lane.b32.xlu0 %v1745, 64
    %v1788 = vpop.permute.xlu0 %1787
    %1789 = vrot.lane.b32.xlu0 %v1746, 64
    %v1790 = vpop.permute.xlu0 %1789
    %1791 = vrot.lane.b32.xlu0 %v1747, 64
    %v1792 = vpop.permute.xlu0 %1791
    %1793 = vrot.lane.b32.xlu0 %v1748, 64
    %v1794 = vpop.permute.xlu0 %1793
    %1795 = vrot.lane.b32.xlu0 %v1749, 64
    %v1796 = vpop.permute.xlu0 %1795
    %1797 = vrot.lane.b32.xlu0 %v1750, 64
    %v1798 = vpop.permute.xlu0 %1797
    %v1807 = vmul.f32 %v1759, %v1784
    %v1808 = vmul.f32 %v1760, %v1786
    %v1809 = vmul.f32 %v1761, %v1788
    %v1810 = vmul.f32 %v1762, %v1790
    %v1811 = vmul.f32 %v1763, %v1792
    %v1812 = vmul.f32 %v1764, %v1794
    %v1813 = vmul.f32 %v1765, %v1796
    %v1814 = vmul.f32 %v1766, %v1798
    %1823 = vrot.lane.b32.xlu0 %v1807, 32
    %v1824 = vpop.permute.xlu0 %1823
    %1825 = vrot.lane.b32.xlu0 %v1808, 32
    %v1826 = vpop.permute.xlu0 %1825
    %1827 = vrot.lane.b32.xlu0 %v1809, 32
    %v1828 = vpop.permute.xlu0 %1827
    %1829 = vrot.lane.b32.xlu0 %v1810, 32
    %v1830 = vpop.permute.xlu0 %1829
    %1831 = vrot.lane.b32.xlu0 %v1811, 32
    %v1832 = vpop.permute.xlu0 %1831
    %1833 = vrot.lane.b32.xlu0 %v1812, 32
    %v1834 = vpop.permute.xlu0 %1833
    %1835 = vrot.lane.b32.xlu0 %v1813, 32
    %v1836 = vpop.permute.xlu0 %1835
    %1837 = vrot.lane.b32.xlu0 %v1814, 32
    %v1838 = vpop.permute.xlu0 %1837
    %v1847 = vadd.f32 %v1767, %v1824
    %v1848 = vadd.f32 %v1768, %v1826
    %v1849 = vadd.f32 %v1769, %v1828
    %v1850 = vadd.f32 %v1770, %v1830
    %v1851 = vadd.f32 %v1771, %v1832
    %v1852 = vadd.f32 %v1772, %v1834
    %v1853 = vadd.f32 %v1773, %v1836
    %v1854 = vadd.f32 %v1774, %v1838
    %v1855 = vtanh.pop %v1847
    %v1856 = vtanh.pop %v1848
    %v1857 = vtanh.pop %v1849
    %v1858 = vtanh.pop %v1850
    %v1859 = vtanh.pop %v1851
    %v1860 = vtanh.pop %v1852
    %v1861 = vtanh.pop %v1853
    %v1862 = vtanh.pop %v1854
    %1871 = vrot.lane.b32.xlu0 %v1855, 64
    %v1872 = vpop.permute.xlu0 %1871
    %1873 = vrot.lane.b32.xlu0 %v1856, 64
    %v1874 = vpop.permute.xlu0 %1873
    %1875 = vrot.lane.b32.xlu0 %v1857, 64
    %v1876 = vpop.permute.xlu0 %1875
    %1877 = vrot.lane.b32.xlu0 %v1858, 64
    %v1878 = vpop.permute.xlu0 %1877
    %1879 = vrot.lane.b32.xlu0 %v1859, 64
    %v1880 = vpop.permute.xlu0 %1879
    %1881 = vrot.lane.b32.xlu0 %v1860, 64
    %v1882 = vpop.permute.xlu0 %1881
    %1883 = vrot.lane.b32.xlu0 %v1861, 64
    %v1884 = vpop.permute.xlu0 %1883
    %1885 = vrot.lane.b32.xlu0 %v1862, 64
    %v1886 = vpop.permute.xlu0 %1885
    %v1895 = vmul.f32 %v1759, %v1872
    %v1896 = vmul.f32 %v1760, %v1874
    %v1897 = vmul.f32 %v1761, %v1876
    %v1898 = vmul.f32 %v1762, %v1878
    %v1899 = vmul.f32 %v1763, %v1880
    %v1900 = vmul.f32 %v1764, %v1882
    %v1901 = vmul.f32 %v1765, %v1884
    %v1902 = vmul.f32 %v1766, %v1886
    %1904 = vrot.lane.b32.xlu0 %v1639, 32
    %v1905 = vpop.permute.xlu0 %1904
    %v1906 = vsel %vm114, %v1905, 0
    %1908 = vmatprep.subr.mxu0 0.0
    %1909 = vmatpush1.msra.mxu0 0.0
    %1910 = vmatprep.subr.mxu0 0.0
    %1911 = vmatpush1.msra.mxu0 0.0
    %1912 = vmatprep.subr.mxu0 0.0
    %1913 = vmatpush1.msra.mxu0 0.0
    %1914 = vmatprep.subr.mxu0 0.0
    %1915 = vmatpush1.msra.mxu0 0.0
    %1916 = vmatprep.subr.mxu0 0.0
    %1917 = vmatpush1.msra.mxu0 0.0
    %1918 = vmatprep.subr.mxu0 0.0
    %1919 = vmatpush1.msra.mxu0 0.0
    %1920 = vmatprep.subr.mxu0 0.0
    %1921 = vmatpush1.msra.mxu0 0.0
    %1922 = vmatprep.subr.mxu0 0.0
    %1923 = vmatpush1.msra.mxu0 0.0
    %1924 = vmatprep.subr.mxu0 0.0
    %1925 = vmatpush1.msra.mxu0 0.0
    %1926 = vmatprep.subr.mxu0 0.0
    %1927 = vmatpush1.msra.mxu0 0.0
    %1928 = vmatprep.subr.mxu0 0.0
    %1929 = vmatpush1.msra.mxu0 0.0
    %1930 = vmatprep.subr.mxu0 0.0
    %1931 = vmatpush1.msra.mxu0 0.0
    %1932 = vmatprep.subr.mxu0 0.0
    %1933 = vmatpush1.msra.mxu0 %v263
    %1934 = vmatprep.subr.mxu0 0.0
    %1935 = vmatpush1.msra.mxu0 %v262
    %1936 = vmatprep.subr.mxu0 0.0
    %1937 = vmatpush1.msra.mxu0 %v261
    %1938 = vmatprep.subr.mxu0 0.0
    %1939 = vmatpush1.msra.mxu0 %v260
    %1940 = vmatprep.subr.mxu0 0.0
    %1941 = vmatpush2.msra.mxu0 0.0
    %1942 = vmatprep.subr.mxu0 0.0
    %1943 = vmatpush2.msra.mxu0 0.0
    %1944 = vmatprep.subr.mxu0 0.0
    %1945 = vmatpush2.msra.mxu0 0.0
    %1946 = vmatprep.subr.mxu0 0.0
    %1947 = vmatpush2.msra.mxu0 0.0
    %1948 = vmatprep.subr.mxu0 0.0
    %1949 = vmatpush2.msra.mxu0 0.0
    %1950 = vmatprep.subr.mxu0 0.0
    %1951 = vmatpush2.msra.mxu0 0.0
    %1952 = vmatprep.subr.mxu0 0.0
    %1953 = vmatpush2.msra.mxu0 0.0
    %1954 = vmatprep.subr.mxu0 0.0
    %1955 = vmatpush2.msra.mxu0 0.0
    %1956 = vmatprep.subr.mxu0 0.0
    %1957 = vmatpush2.msra.mxu0 0.0
    %1958 = vmatprep.subr.mxu0 0.0
    %1959 = vmatpush2.msra.mxu0 0.0
    %1960 = vmatprep.subr.mxu0 0.0
    %1961 = vmatpush2.msra.mxu0 0.0
    %1962 = vmatprep.subr.mxu0 0.0
    %1963 = vmatpush2.msra.mxu0 0.0
    %1964 = vmatprep.subr.mxu0 0.0
    %1965 = vmatpush2.msra.mxu0 0.0
    %1966 = vmatprep.subr.mxu0 0.0
    %1967 = vmatpush2.msra.mxu0 0.0
    %1968 = vmatprep.subr.mxu0 0.0
    %1969 = vmatpush2.msra.mxu0 0.0
    %1970 = vmatprep.subr.mxu0 0.0
    %1971 = vmatpush2.msra.mxu0 0.0
    %1972 = vmatprep.mubr.f32.mxu0 0.0
    %1973 = vmatmul.mubr.f32.gmra.mxu0 %v1906
    %v1974 = vpop.f32.mrf.mxu0
    %v1975 = vadd.f32 0.0, %v1974
    %v1976 = vpop.f32.mrf.mxu0
    %1977 = vdwg.mxu0
    %v1986 = vrot.slane %v1896, 7
    %v1987 = vsel %vm609, %v1986, %v1895
    %v1988 = vrot.slane %v1897, 6
    %v1989 = vsel %vm612, %v1988, %v1987
    %v1990 = vrot.slane %v1898, 5
    %v1991 = vsel %vm615, %v1990, %v1989
    %v1992 = vrot.slane %v1899, 4
    %v1993 = vsel %vm618, %v1992, %v1991
    %v1994 = vrot.slane %v1900, 3
    %v1995 = vsel %vm621, %v1994, %v1993
    %v1996 = vrot.slane %v1901, 2
    %v1997 = vsel %vm624, %v1996, %v1995
    %v1998 = vrot.slane %v1902, 1
    %v1999 = vsel %vm627, %v1998, %v1997
    %2000 = vrot.lane.b32.xlu0 %v1999, 32
    %v2001 = vpop.permute.xlu0 %2000
    %v2002 = vsel %vm114, %v2001, 0
    %2004 = vmatprep.subr.mxu0 0.0
    %2005 = vmatpush1.msra.mxu0 0.0
    %2006 = vmatprep.subr.mxu0 0.0
    %2007 = vmatpush1.msra.mxu0 0.0
    %2008 = vmatprep.subr.mxu0 0.0
    %2009 = vmatpush1.msra.mxu0 0.0
    %2010 = vmatprep.subr.mxu0 0.0
    %2011 = vmatpush1.msra.mxu0 0.0
    %2012 = vmatprep.subr.mxu0 0.0
    %2013 = vmatpush1.msra.mxu0 0.0
    %2014 = vmatprep.subr.mxu0 0.0
    %2015 = vmatpush1.msra.mxu0 0.0
    %2016 = vmatprep.subr.mxu0 0.0
    %2017 = vmatpush1.msra.mxu0 0.0
    %2018 = vmatprep.subr.mxu0 0.0
    %2019 = vmatpush1.msra.mxu0 0.0
    %2020 = vmatprep.subr.mxu0 0.0
    %2021 = vmatpush1.msra.mxu0 0.0
    %2022 = vmatprep.subr.mxu0 0.0
    %2023 = vmatpush1.msra.mxu0 0.0
    %2024 = vmatprep.subr.mxu0 0.0
    %2025 = vmatpush1.msra.mxu0 0.0
    %2026 = vmatprep.subr.mxu0 0.0
    %2027 = vmatpush1.msra.mxu0 0.0
    %2028 = vmatprep.subr.mxu0 0.0
    %2029 = vmatpush1.msra.mxu0 %v259
    %2030 = vmatprep.subr.mxu0 0.0
    %2031 = vmatpush1.msra.mxu0 %v258
    %2032 = vmatprep.subr.mxu0 0.0
    %2033 = vmatpush1.msra.mxu0 %v257
    %2034 = vmatprep.subr.mxu0 0.0
    %2035 = vmatpush1.msra.mxu0 %v256
    %2036 = vmatprep.subr.mxu0 0.0
    %2037 = vmatpush2.msra.mxu0 0.0
    %2038 = vmatprep.subr.mxu0 0.0
    %2039 = vmatpush2.msra.mxu0 0.0
    %2040 = vmatprep.subr.mxu0 0.0
    %2041 = vmatpush2.msra.mxu0 0.0
    %2042 = vmatprep.subr.mxu0 0.0
    %2043 = vmatpush2.msra.mxu0 0.0
    %2044 = vmatprep.subr.mxu0 0.0
    %2045 = vmatpush2.msra.mxu0 0.0
    %2046 = vmatprep.subr.mxu0 0.0
    %2047 = vmatpush2.msra.mxu0 0.0
    %2048 = vmatprep.subr.mxu0 0.0
    %2049 = vmatpush2.msra.mxu0 0.0
    %2050 = vmatprep.subr.mxu0 0.0
    %2051 = vmatpush2.msra.mxu0 0.0
    %2052 = vmatprep.subr.mxu0 0.0
    %2053 = vmatpush2.msra.mxu0 0.0
    %2054 = vmatprep.subr.mxu0 0.0
    %2055 = vmatpush2.msra.mxu0 0.0
    %2056 = vmatprep.subr.mxu0 0.0
    %2057 = vmatpush2.msra.mxu0 0.0
    %2058 = vmatprep.subr.mxu0 0.0
    %2059 = vmatpush2.msra.mxu0 0.0
    %2060 = vmatprep.subr.mxu0 0.0
    %2061 = vmatpush2.msra.mxu0 0.0
    %2062 = vmatprep.subr.mxu0 0.0
    %2063 = vmatpush2.msra.mxu0 0.0
    %2064 = vmatprep.subr.mxu0 0.0
    %2065 = vmatpush2.msra.mxu0 0.0
    %2066 = vmatprep.subr.mxu0 0.0
    %2067 = vmatpush2.msra.mxu0 0.0
    %2068 = vmatprep.mubr.f32.mxu0 0.0
    %2069 = vmatmul.mubr.f32.gmra.mxu0 %v2002
    %v2070 = vpop.f32.mrf.mxu0
    %v2071 = vadd.f32 %v1975, %v2070
    %v2072 = vpop.f32.mrf.mxu0
    %2073 = vdwg.mxu0
    %v2074 = vadd.f32 %v2071, %v707
    %v2075 = vtanh.pop %v2074
    %v2076 = vmul.f32 %v2075, 0.5
    %v2077 = vadd.f32 %v2076, 0.5
    %v2078 = vmul.f32 %v2077, %v1633
    %2080 = vrot.lane.b32.xlu0 %v2075, 64
    %v2081 = vpop.permute.xlu0 %2080
    %v2083 = vmul.f32 %v2077, %v2081
    %2085 = vrot.lane.b32.xlu0 %v2083, 32
    %v2086 = vpop.permute.xlu0 %2085
    %v2088 = vadd.f32 %v2078, %v2086
    %v2089 = vtanh.pop %v2088
    %2091 = vrot.lane.b32.xlu0 %v2089, 64
    %v2092 = vpop.permute.xlu0 %2091
    %v2094 = vmul.f32 %v2077, %v2092
    %v2095 = vadd.f32 %v1640, %v2094
    %v2096 = vld [vmem:[#allocation2 + $0x4] sm:$0x1]
    %v2097 = vld [vmem:[#allocation2 + $0xc] sm:$0x1]
    %v2098 = vld [vmem:[#allocation2 + $0x14] sm:$0x1]
    %v2099 = vld [vmem:[#allocation2 + $0x1c] sm:$0x1]
    %v2100 = vld [vmem:[#allocation2 + $0x24] sm:$0x1]
    %v2101 = vld [vmem:[#allocation2 + $0x2c] sm:$0x1]
    %v2102 = vld [vmem:[#allocation2 + $0x34] sm:$0x1]
    %v2103 = vld [vmem:[#allocation2 + $0x3c] sm:$0x1]
    %2104 = vmatprep.subr.mxu0 0.0
    %2105 = vmatpush1.msra.mxu0 0.0
    %2106 = vmatprep.subr.mxu0 0.0
    %2107 = vmatpush1.msra.mxu0 0.0
    %2108 = vmatprep.subr.mxu0 0.0
    %2109 = vmatpush1.msra.mxu0 0.0
    %2110 = vmatprep.subr.mxu0 0.0
    %2111 = vmatpush1.msra.mxu0 0.0
    %2112 = vmatprep.subr.mxu0 0.0
    %2113 = vmatpush1.msra.mxu0 0.0
    %2114 = vmatprep.subr.mxu0 0.0
    %2115 = vmatpush1.msra.mxu0 0.0
    %2116 = vmatprep.subr.mxu0 0.0
    %2117 = vmatpush1.msra.mxu0 0.0
    %2118 = vmatprep.subr.mxu0 0.0
    %2119 = vmatpush1.msra.mxu0 0.0
    %2120 = vmatprep.subr.mxu0 0.0
    %2121 = vmatpush1.msra.mxu0 0.0
    %2122 = vmatprep.subr.mxu0 0.0
    %2123 = vmatpush1.msra.mxu0 0.0
    %2124 = vmatprep.subr.mxu0 0.0
    %2125 = vmatpush1.msra.mxu0 0.0
    %2126 = vmatprep.subr.mxu0 0.0
    %2127 = vmatpush1.msra.mxu0 0.0
    %2128 = vmatprep.subr.mxu0 0.0
    %2129 = vmatpush1.msra.mxu0 %v255
    %2130 = vmatprep.subr.mxu0 0.0
    %2131 = vmatpush1.msra.mxu0 %v254
    %2132 = vmatprep.subr.mxu0 0.0
    %2133 = vmatpush1.msra.mxu0 %v253
    %2134 = vmatprep.subr.mxu0 0.0
    %2135 = vmatpush1.msra.mxu0 %v252
    %2136 = vmatprep.subr.mxu0 0.0
    %2137 = vmatpush2.msra.mxu0 0.0
    %2138 = vmatprep.subr.mxu0 0.0
    %2139 = vmatpush2.msra.mxu0 0.0
    %2140 = vmatprep.subr.mxu0 0.0
    %2141 = vmatpush2.msra.mxu0 0.0
    %2142 = vmatprep.subr.mxu0 0.0
    %2143 = vmatpush2.msra.mxu0 0.0
    %2144 = vmatprep.subr.mxu0 0.0
    %2145 = vmatpush2.msra.mxu0 0.0
    %2146 = vmatprep.subr.mxu0 0.0
    %2147 = vmatpush2.msra.mxu0 0.0
    %2148 = vmatprep.subr.mxu0 0.0
    %2149 = vmatpush2.msra.mxu0 0.0
    %2150 = vmatprep.subr.mxu0 0.0
    %2151 = vmatpush2.msra.mxu0 0.0
    %2152 = vmatprep.subr.mxu0 0.0
    %2153 = vmatpush2.msra.mxu0 0.0
    %2154 = vmatprep.subr.mxu0 0.0
    %2155 = vmatpush2.msra.mxu0 0.0
    %2156 = vmatprep.subr.mxu0 0.0
    %2157 = vmatpush2.msra.mxu0 0.0
    %2158 = vmatprep.subr.mxu0 0.0
    %2159 = vmatpush2.msra.mxu0 0.0
    %2160 = vmatprep.subr.mxu0 0.0
    %2161 = vmatpush2.msra.mxu0 0.0
    %2162 = vmatprep.subr.mxu0 0.0
    %2163 = vmatpush2.msra.mxu0 0.0
    %2164 = vmatprep.subr.mxu0 0.0
    %2165 = vmatpush2.msra.mxu0 0.0
    %2166 = vmatprep.subr.mxu0 0.0
    %2167 = vmatpush2.msra.mxu0 0.0
    %2168 = vmatprep.mubr.f32.mxu0 0.0
    %2169 = vmatmul.mubr.f32.gmra.mxu0 %v2002
    %v2170 = vpop.f32.mrf.mxu0
    %v2171 = vadd.f32 0.0, %v2170
    %v2172 = vpop.f32.mrf.mxu0
    %2173 = vdwg.mxu0
    %v2175 = vrot.slane %v2171, 1
    %v2176 = vrot.slane %v2171, 2
    %v2177 = vrot.slane %v2171, 3
    %v2178 = vrot.slane %v2171, 4
    %v2179 = vrot.slane %v2171, 5
    %v2180 = vrot.slane %v2171, 6
    %v2181 = vrot.slane %v2171, 7
    %v2190 = vadd.f32 %v2096, %v2171
    %v2191 = vadd.f32 %v2097, %v2175
    %v2192 = vadd.f32 %v2098, %v2176
    %v2193 = vadd.f32 %v2099, %v2177
    %v2194 = vadd.f32 %v2100, %v2178
    %v2195 = vadd.f32 %v2101, %v2179
    %v2196 = vadd.f32 %v2102, %v2180
    %v2197 = vadd.f32 %v2103, %v2181
    %v2198 = vtanh.pop %v2190
    %v2199 = vtanh.pop %v2191
    %v2200 = vtanh.pop %v2192
    %v2201 = vtanh.pop %v2193
    %v2202 = vtanh.pop %v2194
    %v2203 = vtanh.pop %v2195
    %v2204 = vtanh.pop %v2196
    %v2205 = vtanh.pop %v2197
    %v2206 = vmul.f32 %v2198, 0.5
    %v2207 = vmul.f32 %v2199, 0.5
    %v2208 = vmul.f32 %v2200, 0.5
    %v2209 = vmul.f32 %v2201, 0.5
    %v2210 = vmul.f32 %v2202, 0.5
    %v2211 = vmul.f32 %v2203, 0.5
    %v2212 = vmul.f32 %v2204, 0.5
    %v2213 = vmul.f32 %v2205, 0.5
    %v2214 = vadd.f32 %v2206, 0.5
    %v2215 = vadd.f32 %v2207, 0.5
    %v2216 = vadd.f32 %v2208, 0.5
    %v2217 = vadd.f32 %v2209, 0.5
    %v2218 = vadd.f32 %v2210, 0.5
    %v2219 = vadd.f32 %v2211, 0.5
    %v2220 = vadd.f32 %v2212, 0.5
    %v2221 = vadd.f32 %v2213, 0.5
    %v2222 = vmul.f32 %v2214, %v1847
    %v2223 = vmul.f32 %v2215, %v1848
    %v2224 = vmul.f32 %v2216, %v1849
    %v2225 = vmul.f32 %v2217, %v1850
    %v2226 = vmul.f32 %v2218, %v1851
    %v2227 = vmul.f32 %v2219, %v1852
    %v2228 = vmul.f32 %v2220, %v1853
    %v2229 = vmul.f32 %v2221, %v1854
    %2238 = vrot.lane.b32.xlu0 %v2198, 64
    %v2239 = vpop.permute.xlu0 %2238
    %2240 = vrot.lane.b32.xlu0 %v2199, 64
    %v2241 = vpop.permute.xlu0 %2240
    %2242 = vrot.lane.b32.xlu0 %v2200, 64
    %v2243 = vpop.permute.xlu0 %2242
    %2244 = vrot.lane.b32.xlu0 %v2201, 64
    %v2245 = vpop.permute.xlu0 %2244
    %2246 = vrot.lane.b32.xlu0 %v2202, 64
    %v2247 = vpop.permute.xlu0 %2246
    %2248 = vrot.lane.b32.xlu0 %v2203, 64
    %v2249 = vpop.permute.xlu0 %2248
    %2250 = vrot.lane.b32.xlu0 %v2204, 64
    %v2251 = vpop.permute.xlu0 %2250
    %2252 = vrot.lane.b32.xlu0 %v2205, 64
    %v2253 = vpop.permute.xlu0 %2252
    %v2262 = vmul.f32 %v2214, %v2239
    %v2263 = vmul.f32 %v2215, %v2241
    %v2264 = vmul.f32 %v2216, %v2243
    %v2265 = vmul.f32 %v2217, %v2245
    %v2266 = vmul.f32 %v2218, %v2247
    %v2267 = vmul.f32 %v2219, %v2249
    %v2268 = vmul.f32 %v2220, %v2251
    %v2269 = vmul.f32 %v2221, %v2253
    %2278 = vrot.lane.b32.xlu0 %v2262, 32
    %v2279 = vpop.permute.xlu0 %2278
    %2280 = vrot.lane.b32.xlu0 %v2263, 32
    %v2281 = vpop.permute.xlu0 %2280
    %2282 = vrot.lane.b32.xlu0 %v2264, 32
    %v2283 = vpop.permute.xlu0 %2282
    %2284 = vrot.lane.b32.xlu0 %v2265, 32
    %v2285 = vpop.permute.xlu0 %2284
    %2286 = vrot.lane.b32.xlu0 %v2266, 32
    %v2287 = vpop.permute.xlu0 %2286
    %2288 = vrot.lane.b32.xlu0 %v2267, 32
    %v2289 = vpop.permute.xlu0 %2288
    %2290 = vrot.lane.b32.xlu0 %v2268, 32
    %v2291 = vpop.permute.xlu0 %2290
    %2292 = vrot.lane.b32.xlu0 %v2269, 32
    %v2293 = vpop.permute.xlu0 %2292
    %v2302 = vadd.f32 %v2222, %v2279
    %v2303 = vadd.f32 %v2223, %v2281
    %v2304 = vadd.f32 %v2224, %v2283
    %v2305 = vadd.f32 %v2225, %v2285
    %v2306 = vadd.f32 %v2226, %v2287
    %v2307 = vadd.f32 %v2227, %v2289
    %v2308 = vadd.f32 %v2228, %v2291
    %v2309 = vadd.f32 %v2229, %v2293
    %v2310 = vtanh.pop %v2302
    %v2311 = vtanh.pop %v2303
    %v2312 = vtanh.pop %v2304
    %v2313 = vtanh.pop %v2305
    %v2314 = vtanh.pop %v2306
    %v2315 = vtanh.pop %v2307
    %v2316 = vtanh.pop %v2308
    %v2317 = vtanh.pop %v2309
    %2326 = vrot.lane.b32.xlu0 %v2310, 64
    %v2327 = vpop.permute.xlu0 %2326
    %2328 = vrot.lane.b32.xlu0 %v2311, 64
    %v2329 = vpop.permute.xlu0 %2328
    %2330 = vrot.lane.b32.xlu0 %v2312, 64
    %v2331 = vpop.permute.xlu0 %2330
    %2332 = vrot.lane.b32.xlu0 %v2313, 64
    %v2333 = vpop.permute.xlu0 %2332
    %2334 = vrot.lane.b32.xlu0 %v2314, 64
    %v2335 = vpop.permute.xlu0 %2334
    %2336 = vrot.lane.b32.xlu0 %v2315, 64
    %v2337 = vpop.permute.xlu0 %2336
    %2338 = vrot.lane.b32.xlu0 %v2316, 64
    %v2339 = vpop.permute.xlu0 %2338
    %2340 = vrot.lane.b32.xlu0 %v2317, 64
    %v2341 = vpop.permute.xlu0 %2340
    %v2350 = vmul.f32 %v2214, %v2327
    %v2351 = vmul.f32 %v2215, %v2329
    %v2352 = vmul.f32 %v2216, %v2331
    %v2353 = vmul.f32 %v2217, %v2333
    %v2354 = vmul.f32 %v2218, %v2335
    %v2355 = vmul.f32 %v2219, %v2337
    %v2356 = vmul.f32 %v2220, %v2339
    %v2357 = vmul.f32 %v2221, %v2341
    %2359 = vrot.lane.b32.xlu0 %v2094, 32
    %v2360 = vpop.permute.xlu0 %2359
    %v2361 = vsel %vm114, %v2360, 0
    %2363 = vmatprep.subr.mxu0 0.0
    %2364 = vmatpush1.msra.mxu0 0.0
    %2365 = vmatprep.subr.mxu0 0.0
    %2366 = vmatpush1.msra.mxu0 0.0
    %2367 = vmatprep.subr.mxu0 0.0
    %2368 = vmatpush1.msra.mxu0 0.0
    %2369 = vmatprep.subr.mxu0 0.0
    %2370 = vmatpush1.msra.mxu0 0.0
    %2371 = vmatprep.subr.mxu0 0.0
    %2372 = vmatpush1.msra.mxu0 0.0
    %2373 = vmatprep.subr.mxu0 0.0
    %2374 = vmatpush1.msra.mxu0 0.0
    %2375 = vmatprep.subr.mxu0 0.0
    %2376 = vmatpush1.msra.mxu0 0.0
    %2377 = vmatprep.subr.mxu0 0.0
    %2378 = vmatpush1.msra.mxu0 0.0
    %2379 = vmatprep.subr.mxu0 0.0
    %2380 = vmatpush1.msra.mxu0 0.0
    %2381 = vmatprep.subr.mxu0 0.0
    %2382 = vmatpush1.msra.mxu0 0.0
    %2383 = vmatprep.subr.mxu0 0.0
    %2384 = vmatpush1.msra.mxu0 0.0
    %2385 = vmatprep.subr.mxu0 0.0
    %2386 = vmatpush1.msra.mxu0 0.0
    %2387 = vmatprep.subr.mxu0 0.0
    %2388 = vmatpush1.msra.mxu0 %v263
    %2389 = vmatprep.subr.mxu0 0.0
    %2390 = vmatpush1.msra.mxu0 %v262
    %2391 = vmatprep.subr.mxu0 0.0
    %2392 = vmatpush1.msra.mxu0 %v261
    %2393 = vmatprep.subr.mxu0 0.0
    %2394 = vmatpush1.msra.mxu0 %v260
    %2395 = vmatprep.subr.mxu0 0.0
    %2396 = vmatpush2.msra.mxu0 0.0
    %2397 = vmatprep.subr.mxu0 0.0
    %2398 = vmatpush2.msra.mxu0 0.0
    %2399 = vmatprep.subr.mxu0 0.0
    %2400 = vmatpush2.msra.mxu0 0.0
    %2401 = vmatprep.subr.mxu0 0.0
    %2402 = vmatpush2.msra.mxu0 0.0
    %2403 = vmatprep.subr.mxu0 0.0
    %2404 = vmatpush2.msra.mxu0 0.0
    %2405 = vmatprep.subr.mxu0 0.0
    %2406 = vmatpush2.msra.mxu0 0.0
    %2407 = vmatprep.subr.mxu0 0.0
    %2408 = vmatpush2.msra.mxu0 0.0
    %2409 = vmatprep.subr.mxu0 0.0
    %2410 = vmatpush2.msra.mxu0 0.0
    %2411 = vmatprep.subr.mxu0 0.0
    %2412 = vmatpush2.msra.mxu0 0.0
    %2413 = vmatprep.subr.mxu0 0.0
    %2414 = vmatpush2.msra.mxu0 0.0
    %2415 = vmatprep.subr.mxu0 0.0
    %2416 = vmatpush2.msra.mxu0 0.0
    %2417 = vmatprep.subr.mxu0 0.0
    %2418 = vmatpush2.msra.mxu0 0.0
    %2419 = vmatprep.subr.mxu0 0.0
    %2420 = vmatpush2.msra.mxu0 0.0
    %2421 = vmatprep.subr.mxu0 0.0
    %2422 = vmatpush2.msra.mxu0 0.0
    %2423 = vmatprep.subr.mxu0 0.0
    %2424 = vmatpush2.msra.mxu0 0.0
    %2425 = vmatprep.subr.mxu0 0.0
    %2426 = vmatpush2.msra.mxu0 0.0
    %2427 = vmatprep.mubr.f32.mxu0 0.0
    %2428 = vmatmul.mubr.f32.gmra.mxu0 %v2361
    %v2429 = vpop.f32.mrf.mxu0
    %v2430 = vadd.f32 0.0, %v2429
    %v2431 = vpop.f32.mrf.mxu0
    %2432 = vdwg.mxu0
    %v2441 = vrot.slane %v2351, 7
    %v2442 = vsel %vm609, %v2441, %v2350
    %v2443 = vrot.slane %v2352, 6
    %v2444 = vsel %vm612, %v2443, %v2442
    %v2445 = vrot.slane %v2353, 5
    %v2446 = vsel %vm615, %v2445, %v2444
    %v2447 = vrot.slane %v2354, 4
    %v2448 = vsel %vm618, %v2447, %v2446
    %v2449 = vrot.slane %v2355, 3
    %v2450 = vsel %vm621, %v2449, %v2448
    %v2451 = vrot.slane %v2356, 2
    %v2452 = vsel %vm624, %v2451, %v2450
    %v2453 = vrot.slane %v2357, 1
    %v2454 = vsel %vm627, %v2453, %v2452
    %2455 = vrot.lane.b32.xlu0 %v2454, 32
    %v2456 = vpop.permute.xlu0 %2455
    %v2457 = vsel %vm114, %v2456, 0
    %2459 = vmatprep.subr.mxu0 0.0
    %2460 = vmatpush1.msra.mxu0 0.0
    %2461 = vmatprep.subr.mxu0 0.0
    %2462 = vmatpush1.msra.mxu0 0.0
    %2463 = vmatprep.subr.mxu0 0.0
    %2464 = vmatpush1.msra.mxu0 0.0
    %2465 = vmatprep.subr.mxu0 0.0
    %2466 = vmatpush1.msra.mxu0 0.0
    %2467 = vmatprep.subr.mxu0 0.0
    %2468 = vmatpush1.msra.mxu0 0.0
    %2469 = vmatprep.subr.mxu0 0.0
    %2470 = vmatpush1.msra.mxu0 0.0
    %2471 = vmatprep.subr.mxu0 0.0
    %2472 = vmatpush1.msra.mxu0 0.0
    %2473 = vmatprep.subr.mxu0 0.0
    %2474 = vmatpush1.msra.mxu0 0.0
    %2475 = vmatprep.subr.mxu0 0.0
    %2476 = vmatpush1.msra.mxu0 0.0
    %2477 = vmatprep.subr.mxu0 0.0
    %2478 = vmatpush1.msra.mxu0 0.0
    %2479 = vmatprep.subr.mxu0 0.0
    %2480 = vmatpush1.msra.mxu0 0.0
    %2481 = vmatprep.subr.mxu0 0.0
    %2482 = vmatpush1.msra.mxu0 0.0
    %2483 = vmatprep.subr.mxu0 0.0
    %2484 = vmatpush1.msra.mxu0 %v259
    %2485 = vmatprep.subr.mxu0 0.0
    %2486 = vmatpush1.msra.mxu0 %v258
    %2487 = vmatprep.subr.mxu0 0.0
    %2488 = vmatpush1.msra.mxu0 %v257
    %2489 = vmatprep.subr.mxu0 0.0
    %2490 = vmatpush1.msra.mxu0 %v256
    %2491 = vmatprep.subr.mxu0 0.0
    %2492 = vmatpush2.msra.mxu0 0.0
    %2493 = vmatprep.subr.mxu0 0.0
    %2494 = vmatpush2.msra.mxu0 0.0
    %2495 = vmatprep.subr.mxu0 0.0
    %2496 = vmatpush2.msra.mxu0 0.0
    %2497 = vmatprep.subr.mxu0 0.0
    %2498 = vmatpush2.msra.mxu0 0.0
    %2499 = vmatprep.subr.mxu0 0.0
    %2500 = vmatpush2.msra.mxu0 0.0
    %2501 = vmatprep.subr.mxu0 0.0
    %2502 = vmatpush2.msra.mxu0 0.0
    %2503 = vmatprep.subr.mxu0 0.0
    %2504 = vmatpush2.msra.mxu0 0.0
    %2505 = vmatprep.subr.mxu0 0.0
    %2506 = vmatpush2.msra.mxu0 0.0
    %2507 = vmatprep.subr.mxu0 0.0
    %2508 = vmatpush2.msra.mxu0 0.0
    %2509 = vmatprep.subr.mxu0 0.0
    %2510 = vmatpush2.msra.mxu0 0.0
    %2511 = vmatprep.subr.mxu0 0.0
    %2512 = vmatpush2.msra.mxu0 0.0
    %2513 = vmatprep.subr.mxu0 0.0
    %2514 = vmatpush2.msra.mxu0 0.0
    %2515 = vmatprep.subr.mxu0 0.0
    %2516 = vmatpush2.msra.mxu0 0.0
    %2517 = vmatprep.subr.mxu0 0.0
    %2518 = vmatpush2.msra.mxu0 0.0
    %2519 = vmatprep.subr.mxu0 0.0
    %2520 = vmatpush2.msra.mxu0 0.0
    %2521 = vmatprep.subr.mxu0 0.0
    %2522 = vmatpush2.msra.mxu0 0.0
    %2523 = vmatprep.mubr.f32.mxu0 0.0
    %2524 = vmatmul.mubr.f32.gmra.mxu0 %v2457
    %v2525 = vpop.f32.mrf.mxu0
    %v2526 = vadd.f32 %v2430, %v2525
    %v2527 = vpop.f32.mrf.mxu0
    %2528 = vdwg.mxu0
    %v2529 = vadd.f32 %v2526, %v707
    %v2530 = vtanh.pop %v2529
    %v2531 = vmul.f32 %v2530, 0.5
    %v2532 = vadd.f32 %v2531, 0.5
    %v2533 = vmul.f32 %v2532, %v2088
    %2535 = vrot.lane.b32.xlu0 %v2530, 64
    %v2536 = vpop.permute.xlu0 %2535
    %v2538 = vmul.f32 %v2532, %v2536
    %2540 = vrot.lane.b32.xlu0 %v2538, 32
    %v2541 = vpop.permute.xlu0 %2540
    %v2543 = vadd.f32 %v2533, %v2541
    %v2544 = vtanh.pop %v2543
    %2546 = vrot.lane.b32.xlu0 %v2544, 64
    %v2547 = vpop.permute.xlu0 %2546
    %v2549 = vmul.f32 %v2532, %v2547
    %v2550 = vadd.f32 %v2095, %v2549
    %v2551 = vld [vmem:[#allocation2 + $0x5] sm:$0x1]
    %v2552 = vld [vmem:[#allocation2 + $0xd] sm:$0x1]
    %v2553 = vld [vmem:[#allocation2 + $0x15] sm:$0x1]
    %v2554 = vld [vmem:[#allocation2 + $0x1d] sm:$0x1]
    %v2555 = vld [vmem:[#allocation2 + $0x25] sm:$0x1]
    %v2556 = vld [vmem:[#allocation2 + $0x2d] sm:$0x1]
    %v2557 = vld [vmem:[#allocation2 + $0x35] sm:$0x1]
    %v2558 = vld [vmem:[#allocation2 + $0x3d] sm:$0x1]
    %2559 = vmatprep.subr.mxu0 0.0
    %2560 = vmatpush1.msra.mxu0 0.0
    %2561 = vmatprep.subr.mxu0 0.0
    %2562 = vmatpush1.msra.mxu0 0.0
    %2563 = vmatprep.subr.mxu0 0.0
    %2564 = vmatpush1.msra.mxu0 0.0
    %2565 = vmatprep.subr.mxu0 0.0
    %2566 = vmatpush1.msra.mxu0 0.0
    %2567 = vmatprep.subr.mxu0 0.0
    %2568 = vmatpush1.msra.mxu0 0.0
    %2569 = vmatprep.subr.mxu0 0.0
    %2570 = vmatpush1.msra.mxu0 0.0
    %2571 = vmatprep.subr.mxu0 0.0
    %2572 = vmatpush1.msra.mxu0 0.0
    %2573 = vmatprep.subr.mxu0 0.0
    %2574 = vmatpush1.msra.mxu0 0.0
    %2575 = vmatprep.subr.mxu0 0.0
    %2576 = vmatpush1.msra.mxu0 0.0
    %2577 = vmatprep.subr.mxu0 0.0
    %2578 = vmatpush1.msra.mxu0 0.0
    %2579 = vmatprep.subr.mxu0 0.0
    %2580 = vmatpush1.msra.mxu0 0.0
    %2581 = vmatprep.subr.mxu0 0.0
    %2582 = vmatpush1.msra.mxu0 0.0
    %2583 = vmatprep.subr.mxu0 0.0
    %2584 = vmatpush1.msra.mxu0 %v255
    %2585 = vmatprep.subr.mxu0 0.0
    %2586 = vmatpush1.msra.mxu0 %v254
    %2587 = vmatprep.subr.mxu0 0.0
    %2588 = vmatpush1.msra.mxu0 %v253
    %2589 = vmatprep.subr.mxu0 0.0
    %2590 = vmatpush1.msra.mxu0 %v252
    %2591 = vmatprep.subr.mxu0 0.0
    %2592 = vmatpush2.msra.mxu0 0.0
    %2593 = vmatprep.subr.mxu0 0.0
    %2594 = vmatpush2.msra.mxu0 0.0
    %2595 = vmatprep.subr.mxu0 0.0
    %2596 = vmatpush2.msra.mxu0 0.0
    %2597 = vmatprep.subr.mxu0 0.0
    %2598 = vmatpush2.msra.mxu0 0.0
    %2599 = vmatprep.subr.mxu0 0.0
    %2600 = vmatpush2.msra.mxu0 0.0
    %2601 = vmatprep.subr.mxu0 0.0
    %2602 = vmatpush2.msra.mxu0 0.0
    %2603 = vmatprep.subr.mxu0 0.0
    %2604 = vmatpush2.msra.mxu0 0.0
    %2605 = vmatprep.subr.mxu0 0.0
    %2606 = vmatpush2.msra.mxu0 0.0
    %2607 = vmatprep.subr.mxu0 0.0
    %2608 = vmatpush2.msra.mxu0 0.0
    %2609 = vmatprep.subr.mxu0 0.0
    %2610 = vmatpush2.msra.mxu0 0.0
    %2611 = vmatprep.subr.mxu0 0.0
    %2612 = vmatpush2.msra.mxu0 0.0
    %2613 = vmatprep.subr.mxu0 0.0
    %2614 = vmatpush2.msra.mxu0 0.0
    %2615 = vmatprep.subr.mxu0 0.0
    %2616 = vmatpush2.msra.mxu0 0.0
    %2617 = vmatprep.subr.mxu0 0.0
    %2618 = vmatpush2.msra.mxu0 0.0
    %2619 = vmatprep.subr.mxu0 0.0
    %2620 = vmatpush2.msra.mxu0 0.0
    %2621 = vmatprep.subr.mxu0 0.0
    %2622 = vmatpush2.msra.mxu0 0.0
    %2623 = vmatprep.mubr.f32.mxu0 0.0
    %2624 = vmatmul.mubr.f32.gmra.mxu0 %v2457
    %v2625 = vpop.f32.mrf.mxu0
    %v2626 = vadd.f32 0.0, %v2625
    %v2627 = vpop.f32.mrf.mxu0
    %2628 = vdwg.mxu0
    %v2630 = vrot.slane %v2626, 1
    %v2631 = vrot.slane %v2626, 2
    %v2632 = vrot.slane %v2626, 3
    %v2633 = vrot.slane %v2626, 4
    %v2634 = vrot.slane %v2626, 5
    %v2635 = vrot.slane %v2626, 6
    %v2636 = vrot.slane %v2626, 7
    %v2645 = vadd.f32 %v2551, %v2626
    %v2646 = vadd.f32 %v2552, %v2630
    %v2647 = vadd.f32 %v2553, %v2631
    %v2648 = vadd.f32 %v2554, %v2632
    %v2649 = vadd.f32 %v2555, %v2633
    %v2650 = vadd.f32 %v2556, %v2634
    %v2651 = vadd.f32 %v2557, %v2635
    %v2652 = vadd.f32 %v2558, %v2636
    %v2653 = vtanh.pop %v2645
    %v2654 = vtanh.pop %v2646
    %v2655 = vtanh.pop %v2647
    %v2656 = vtanh.pop %v2648
    %v2657 = vtanh.pop %v2649
    %v2658 = vtanh.pop %v2650
    %v2659 = vtanh.pop %v2651
    %v2660 = vtanh.pop %v2652
    %v2661 = vmul.f32 %v2653, 0.5
    %v2662 = vmul.f32 %v2654, 0.5
    %v2663 = vmul.f32 %v2655, 0.5
    %v2664 = vmul.f32 %v2656, 0.5
    %v2665 = vmul.f32 %v2657, 0.5
    %v2666 = vmul.f32 %v2658, 0.5
    %v2667 = vmul.f32 %v2659, 0.5
    %v2668 = vmul.f32 %v2660, 0.5
    %v2669 = vadd.f32 %v2661, 0.5
    %v2670 = vadd.f32 %v2662, 0.5
    %v2671 = vadd.f32 %v2663, 0.5
    %v2672 = vadd.f32 %v2664, 0.5
    %v2673 = vadd.f32 %v2665, 0.5
    %v2674 = vadd.f32 %v2666, 0.5
    %v2675 = vadd.f32 %v2667, 0.5
    %v2676 = vadd.f32 %v2668, 0.5
    %v2677 = vmul.f32 %v2669, %v2302
    %v2678 = vmul.f32 %v2670, %v2303
    %v2679 = vmul.f32 %v2671, %v2304
    %v2680 = vmul.f32 %v2672, %v2305
    %v2681 = vmul.f32 %v2673, %v2306
    %v2682 = vmul.f32 %v2674, %v2307
    %v2683 = vmul.f32 %v2675, %v2308
    %v2684 = vmul.f32 %v2676, %v2309
    %2693 = vrot.lane.b32.xlu0 %v2653, 64
    %v2694 = vpop.permute.xlu0 %2693
    %2695 = vrot.lane.b32.xlu0 %v2654, 64
    %v2696 = vpop.permute.xlu0 %2695
    %2697 = vrot.lane.b32.xlu0 %v2655, 64
    %v2698 = vpop.permute.xlu0 %2697
    %2699 = vrot.lane.b32.xlu0 %v2656, 64
    %v2700 = vpop.permute.xlu0 %2699
    %2701 = vrot.lane.b32.xlu0 %v2657, 64
    %v2702 = vpop.permute.xlu0 %2701
    %2703 = vrot.lane.b32.xlu0 %v2658, 64
    %v2704 = vpop.permute.xlu0 %2703
    %2705 = vrot.lane.b32.xlu0 %v2659, 64
    %v2706 = vpop.permute.xlu0 %2705
    %2707 = vrot.lane.b32.xlu0 %v2660, 64
    %v2708 = vpop.permute.xlu0 %2707
    %v2717 = vmul.f32 %v2669, %v2694
    %v2718 = vmul.f32 %v2670, %v2696
    %v2719 = vmul.f32 %v2671, %v2698
    %v2720 = vmul.f32 %v2672, %v2700
    %v2721 = vmul.f32 %v2673, %v2702
    %v2722 = vmul.f32 %v2674, %v2704
    %v2723 = vmul.f32 %v2675, %v2706
    %v2724 = vmul.f32 %v2676, %v2708
    %2733 = vrot.lane.b32.xlu0 %v2717, 32
    %v2734 = vpop.permute.xlu0 %2733
    %2735 = vrot.lane.b32.xlu0 %v2718, 32
    %v2736 = vpop.permute.xlu0 %2735
    %2737 = vrot.lane.b32.xlu0 %v2719, 32
    %v2738 = vpop.permute.xlu0 %2737
    %2739 = vrot.lane.b32.xlu0 %v2720, 32
    %v2740 = vpop.permute.xlu0 %2739
    %2741 = vrot.lane.b32.xlu0 %v2721, 32
    %v2742 = vpop.permute.xlu0 %2741
    %2743 = vrot.lane.b32.xlu0 %v2722, 32
    %v2744 = vpop.permute.xlu0 %2743
    %2745 = vrot.lane.b32.xlu0 %v2723, 32
    %v2746 = vpop.permute.xlu0 %2745
    %2747 = vrot.lane.b32.xlu0 %v2724, 32
    %v2748 = vpop.permute.xlu0 %2747
    %v2757 = vadd.f32 %v2677, %v2734
    %v2758 = vadd.f32 %v2678, %v2736
    %v2759 = vadd.f32 %v2679, %v2738
    %v2760 = vadd.f32 %v2680, %v2740
    %v2761 = vadd.f32 %v2681, %v2742
    %v2762 = vadd.f32 %v2682, %v2744
    %v2763 = vadd.f32 %v2683, %v2746
    %v2764 = vadd.f32 %v2684, %v2748
    %v2765 = vtanh.pop %v2757
    %v2766 = vtanh.pop %v2758
    %v2767 = vtanh.pop %v2759
    %v2768 = vtanh.pop %v2760
    %v2769 = vtanh.pop %v2761
    %v2770 = vtanh.pop %v2762
    %v2771 = vtanh.pop %v2763
    %v2772 = vtanh.pop %v2764
    %2781 = vrot.lane.b32.xlu0 %v2765, 64
    %v2782 = vpop.permute.xlu0 %2781
    %2783 = vrot.lane.b32.xlu0 %v2766, 64
    %v2784 = vpop.permute.xlu0 %2783
    %2785 = vrot.lane.b32.xlu0 %v2767, 64
    %v2786 = vpop.permute.xlu0 %2785
    %2787 = vrot.lane.b32.xlu0 %v2768, 64
    %v2788 = vpop.permute.xlu0 %2787
    %2789 = vrot.lane.b32.xlu0 %v2769, 64
    %v2790 = vpop.permute.xlu0 %2789
    %2791 = vrot.lane.b32.xlu0 %v2770, 64
    %v2792 = vpop.permute.xlu0 %2791
    %2793 = vrot.lane.b32.xlu0 %v2771, 64
    %v2794 = vpop.permute.xlu0 %2793
    %2795 = vrot.lane.b32.xlu0 %v2772, 64
    %v2796 = vpop.permute.xlu0 %2795
    %v2805 = vmul.f32 %v2669, %v2782
    %v2806 = vmul.f32 %v2670, %v2784
    %v2807 = vmul.f32 %v2671, %v2786
    %v2808 = vmul.f32 %v2672, %v2788
    %v2809 = vmul.f32 %v2673, %v2790
    %v2810 = vmul.f32 %v2674, %v2792
    %v2811 = vmul.f32 %v2675, %v2794
    %v2812 = vmul.f32 %v2676, %v2796
    %2814 = vrot.lane.b32.xlu0 %v2549, 32
    %v2815 = vpop.permute.xlu0 %2814
    %v2816 = vsel %vm114, %v2815, 0
    %2818 = vmatprep.subr.mxu0 0.0
    %2819 = vmatpush1.msra.mxu0 0.0
    %2820 = vmatprep.subr.mxu0 0.0
    %2821 = vmatpush1.msra.mxu0 0.0
    %2822 = vmatprep.subr.mxu0 0.0
    %2823 = vmatpush1.msra.mxu0 0.0
    %2824 = vmatprep.subr.mxu0 0.0
    %2825 = vmatpush1.msra.mxu0 0.0
    %2826 = vmatprep.subr.mxu0 0.0
    %2827 = vmatpush1.msra.mxu0 0.0
    %2828 = vmatprep.subr.mxu0 0.0
    %2829 = vmatpush1.msra.mxu0 0.0
    %2830 = vmatprep.subr.mxu0 0.0
    %2831 = vmatpush1.msra.mxu0 0.0
    %2832 = vmatprep.subr.mxu0 0.0
    %2833 = vmatpush1.msra.mxu0 0.0
    %2834 = vmatprep.subr.mxu0 0.0
    %2835 = vmatpush1.msra.mxu0 0.0
    %2836 = vmatprep.subr.mxu0 0.0
    %2837 = vmatpush1.msra.mxu0 0.0
    %2838 = vmatprep.subr.mxu0 0.0
    %2839 = vmatpush1.msra.mxu0 0.0
    %2840 = vmatprep.subr.mxu0 0.0
    %2841 = vmatpush1.msra.mxu0 0.0
    %2842 = vmatprep.subr.mxu0 0.0
    %2843 = vmatpush1.msra.mxu0 %v263
    %2844 = vmatprep.subr.mxu0 0.0
    %2845 = vmatpush1.msra.mxu0 %v262
    %2846 = vmatprep.subr.mxu0 0.0
    %2847 = vmatpush1.msra.mxu0 %v261
    %2848 = vmatprep.subr.mxu0 0.0
    %2849 = vmatpush1.msra.mxu0 %v260
    %2850 = vmatprep.subr.mxu0 0.0
    %2851 = vmatpush2.msra.mxu0 0.0
    %2852 = vmatprep.subr.mxu0 0.0
    %2853 = vmatpush2.msra.mxu0 0.0
    %2854 = vmatprep.subr.mxu0 0.0
    %2855 = vmatpush2.msra.mxu0 0.0
    %2856 = vmatprep.subr.mxu0 0.0
    %2857 = vmatpush2.msra.mxu0 0.0
    %2858 = vmatprep.subr.mxu0 0.0
    %2859 = vmatpush2.msra.mxu0 0.0
    %2860 = vmatprep.subr.mxu0 0.0
    %2861 = vmatpush2.msra.mxu0 0.0
    %2862 = vmatprep.subr.mxu0 0.0
    %2863 = vmatpush2.msra.mxu0 0.0
    %2864 = vmatprep.subr.mxu0 0.0
    %2865 = vmatpush2.msra.mxu0 0.0
    %2866 = vmatprep.subr.mxu0 0.0
    %2867 = vmatpush2.msra.mxu0 0.0
    %2868 = vmatprep.subr.mxu0 0.0
    %2869 = vmatpush2.msra.mxu0 0.0
    %2870 = vmatprep.subr.mxu0 0.0
    %2871 = vmatpush2.msra.mxu0 0.0
    %2872 = vmatprep.subr.mxu0 0.0
    %2873 = vmatpush2.msra.mxu0 0.0
    %2874 = vmatprep.subr.mxu0 0.0
    %2875 = vmatpush2.msra.mxu0 0.0
    %2876 = vmatprep.subr.mxu0 0.0
    %2877 = vmatpush2.msra.mxu0 0.0
    %2878 = vmatprep.subr.mxu0 0.0
    %2879 = vmatpush2.msra.mxu0 0.0
    %2880 = vmatprep.subr.mxu0 0.0
    %2881 = vmatpush2.msra.mxu0 0.0
    %2882 = vmatprep.mubr.f32.mxu0 0.0
    %2883 = vmatmul.mubr.f32.gmra.mxu0 %v2816
    %v2884 = vpop.f32.mrf.mxu0
    %v2885 = vadd.f32 0.0, %v2884
    %v2886 = vpop.f32.mrf.mxu0
    %2887 = vdwg.mxu0
    %v2896 = vrot.slane %v2806, 7
    %v2897 = vsel %vm609, %v2896, %v2805
    %v2898 = vrot.slane %v2807, 6
    %v2899 = vsel %vm612, %v2898, %v2897
    %v2900 = vrot.slane %v2808, 5
    %v2901 = vsel %vm615, %v2900, %v2899
    %v2902 = vrot.slane %v2809, 4
    %v2903 = vsel %vm618, %v2902, %v2901
    %v2904 = vrot.slane %v2810, 3
    %v2905 = vsel %vm621, %v2904, %v2903
    %v2906 = vrot.slane %v2811, 2
    %v2907 = vsel %vm624, %v2906, %v2905
    %v2908 = vrot.slane %v2812, 1
    %v2909 = vsel %vm627, %v2908, %v2907
    %2910 = vrot.lane.b32.xlu0 %v2909, 32
    %v2911 = vpop.permute.xlu0 %2910
    %v2912 = vsel %vm114, %v2911, 0
    %2914 = vmatprep.subr.mxu0 0.0
    %2915 = vmatpush1.msra.mxu0 0.0
    %2916 = vmatprep.subr.mxu0 0.0
    %2917 = vmatpush1.msra.mxu0 0.0
    %2918 = vmatprep.subr.mxu0 0.0
    %2919 = vmatpush1.msra.mxu0 0.0
    %2920 = vmatprep.subr.mxu0 0.0
    %2921 = vmatpush1.msra.mxu0 0.0
    %2922 = vmatprep.subr.mxu0 0.0
    %2923 = vmatpush1.msra.mxu0 0.0
    %2924 = vmatprep.subr.mxu0 0.0
    %2925 = vmatpush1.msra.mxu0 0.0
    %2926 = vmatprep.subr.mxu0 0.0
    %2927 = vmatpush1.msra.mxu0 0.0
    %2928 = vmatprep.subr.mxu0 0.0
    %2929 = vmatpush1.msra.mxu0 0.0
    %2930 = vmatprep.subr.mxu0 0.0
    %2931 = vmatpush1.msra.mxu0 0.0
    %2932 = vmatprep.subr.mxu0 0.0
    %2933 = vmatpush1.msra.mxu0 0.0
    %2934 = vmatprep.subr.mxu0 0.0
    %2935 = vmatpush1.msra.mxu0 0.0
    %2936 = vmatprep.subr.mxu0 0.0
    %2937 = vmatpush1.msra.mxu0 0.0
    %2938 = vmatprep.subr.mxu0 0.0
    %2939 = vmatpush1.msra.mxu0 %v259
    %2940 = vmatprep.subr.mxu0 0.0
    %2941 = vmatpush1.msra.mxu0 %v258
    %2942 = vmatprep.subr.mxu0 0.0
    %2943 = vmatpush1.msra.mxu0 %v257
    %2944 = vmatprep.subr.mxu0 0.0
    %2945 = vmatpush1.msra.mxu0 %v256
    %2946 = vmatprep.subr.mxu0 0.0
    %2947 = vmatpush2.msra.mxu0 0.0
    %2948 = vmatprep.subr.mxu0 0.0
    %2949 = vmatpush2.msra.mxu0 0.0
    %2950 = vmatprep.subr.mxu0 0.0
    %2951 = vmatpush2.msra.mxu0 0.0
    %2952 = vmatprep.subr.mxu0 0.0
    %2953 = vmatpush2.msra.mxu0 0.0
    %2954 = vmatprep.subr.mxu0 0.0
    %2955 = vmatpush2.msra.mxu0 0.0
    %2956 = vmatprep.subr.mxu0 0.0
    %2957 = vmatpush2.msra.mxu0 0.0
    %2958 = vmatprep.subr.mxu0 0.0
    %2959 = vmatpush2.msra.mxu0 0.0
    %2960 = vmatprep.subr.mxu0 0.0
    %2961 = vmatpush2.msra.mxu0 0.0
    %2962 = vmatprep.subr.mxu0 0.0
    %2963 = vmatpush2.msra.mxu0 0.0
    %2964 = vmatprep.subr.mxu0 0.0
    %2965 = vmatpush2.msra.mxu0 0.0
    %2966 = vmatprep.subr.mxu0 0.0
    %2967 = vmatpush2.msra.mxu0 0.0
    %2968 = vmatprep.subr.mxu0 0.0
    %2969 = vmatpush2.msra.mxu0 0.0
    %2970 = vmatprep.subr.mxu0 0.0
    %2971 = vmatpush2.msra.mxu0 0.0
    %2972 = vmatprep.subr.mxu0 0.0
    %2973 = vmatpush2.msra.mxu0 0.0
    %2974 = vmatprep.subr.mxu0 0.0
    %2975 = vmatpush2.msra.mxu0 0.0
    %2976 = vmatprep.subr.mxu0 0.0
    %2977 = vmatpush2.msra.mxu0 0.0
    %2978 = vmatprep.mubr.f32.mxu0 0.0
    %2979 = vmatmul.mubr.f32.gmra.mxu0 %v2912
    %v2980 = vpop.f32.mrf.mxu0
    %v2981 = vadd.f32 %v2885, %v2980
    %v2982 = vpop.f32.mrf.mxu0
    %2983 = vdwg.mxu0
    %v2984 = vadd.f32 %v2981, %v707
    %v2985 = vtanh.pop %v2984
    %v2986 = vmul.f32 %v2985, 0.5
    %v2987 = vadd.f32 %v2986, 0.5
    %v2988 = vmul.f32 %v2987, %v2543
    %2990 = vrot.lane.b32.xlu0 %v2985, 64
    %v2991 = vpop.permute.xlu0 %2990
    %v2993 = vmul.f32 %v2987, %v2991
    %2995 = vrot.lane.b32.xlu0 %v2993, 32
    %v2996 = vpop.permute.xlu0 %2995
    %v2998 = vadd.f32 %v2988, %v2996
    %v2999 = vtanh.pop %v2998
    %3001 = vrot.lane.b32.xlu0 %v2999, 64
    %v3002 = vpop.permute.xlu0 %3001
    %v3004 = vmul.f32 %v2987, %v3002
    %v3005 = vadd.f32 %v2550, %v3004
    %v3006 = vld [vmem:[#allocation2 + $0x6] sm:$0x1]
    %v3007 = vld [vmem:[#allocation2 + $0xe] sm:$0x1]
    %v3008 = vld [vmem:[#allocation2 + $0x16] sm:$0x1]
    %v3009 = vld [vmem:[#allocation2 + $0x1e] sm:$0x1]
    %v3010 = vld [vmem:[#allocation2 + $0x26] sm:$0x1]
    %v3011 = vld [vmem:[#allocation2 + $0x2e] sm:$0x1]
    %v3012 = vld [vmem:[#allocation2 + $0x36] sm:$0x1]
    %v3013 = vld [vmem:[#allocation2 + $0x3e] sm:$0x1]
    %3014 = vmatprep.subr.mxu0 0.0
    %3015 = vmatpush1.msra.mxu0 0.0
    %3016 = vmatprep.subr.mxu0 0.0
    %3017 = vmatpush1.msra.mxu0 0.0
    %3018 = vmatprep.subr.mxu0 0.0
    %3019 = vmatpush1.msra.mxu0 0.0
    %3020 = vmatprep.subr.mxu0 0.0
    %3021 = vmatpush1.msra.mxu0 0.0
    %3022 = vmatprep.subr.mxu0 0.0
    %3023 = vmatpush1.msra.mxu0 0.0
    %3024 = vmatprep.subr.mxu0 0.0
    %3025 = vmatpush1.msra.mxu0 0.0
    %3026 = vmatprep.subr.mxu0 0.0
    %3027 = vmatpush1.msra.mxu0 0.0
    %3028 = vmatprep.subr.mxu0 0.0
    %3029 = vmatpush1.msra.mxu0 0.0
    %3030 = vmatprep.subr.mxu0 0.0
    %3031 = vmatpush1.msra.mxu0 0.0
    %3032 = vmatprep.subr.mxu0 0.0
    %3033 = vmatpush1.msra.mxu0 0.0
    %3034 = vmatprep.subr.mxu0 0.0
    %3035 = vmatpush1.msra.mxu0 0.0
    %3036 = vmatprep.subr.mxu0 0.0
    %3037 = vmatpush1.msra.mxu0 0.0
    %3038 = vmatprep.subr.mxu0 0.0
    %3039 = vmatpush1.msra.mxu0 %v255
    %3040 = vmatprep.subr.mxu0 0.0
    %3041 = vmatpush1.msra.mxu0 %v254
    %3042 = vmatprep.subr.mxu0 0.0
    %3043 = vmatpush1.msra.mxu0 %v253
    %3044 = vmatprep.subr.mxu0 0.0
    %3045 = vmatpush1.msra.mxu0 %v252
    %3046 = vmatprep.subr.mxu0 0.0
    %3047 = vmatpush2.msra.mxu0 0.0
    %3048 = vmatprep.subr.mxu0 0.0
    %3049 = vmatpush2.msra.mxu0 0.0
    %3050 = vmatprep.subr.mxu0 0.0
    %3051 = vmatpush2.msra.mxu0 0.0
    %3052 = vmatprep.subr.mxu0 0.0
    %3053 = vmatpush2.msra.mxu0 0.0
    %3054 = vmatprep.subr.mxu0 0.0
    %3055 = vmatpush2.msra.mxu0 0.0
    %3056 = vmatprep.subr.mxu0 0.0
    %3057 = vmatpush2.msra.mxu0 0.0
    %3058 = vmatprep.subr.mxu0 0.0
    %3059 = vmatpush2.msra.mxu0 0.0
    %3060 = vmatprep.subr.mxu0 0.0
    %3061 = vmatpush2.msra.mxu0 0.0
    %3062 = vmatprep.subr.mxu0 0.0
    %3063 = vmatpush2.msra.mxu0 0.0
    %3064 = vmatprep.subr.mxu0 0.0
    %3065 = vmatpush2.msra.mxu0 0.0
    %3066 = vmatprep.subr.mxu0 0.0
    %3067 = vmatpush2.msra.mxu0 0.0
    %3068 = vmatprep.subr.mxu0 0.0
    %3069 = vmatpush2.msra.mxu0 0.0
    %3070 = vmatprep.subr.mxu0 0.0
    %3071 = vmatpush2.msra.mxu0 0.0
    %3072 = vmatprep.subr.mxu0 0.0
    %3073 = vmatpush2.msra.mxu0 0.0
    %3074 = vmatprep.subr.mxu0 0.0
    %3075 = vmatpush2.msra.mxu0 0.0
    %3076 = vmatprep.subr.mxu0 0.0
    %3077 = vmatpush2.msra.mxu0 0.0
    %3078 = vmatprep.mubr.f32.mxu0 0.0
    %3079 = vmatmul.mubr.f32.gmra.mxu0 %v2912
    %v3080 = vpop.f32.mrf.mxu0
    %v3081 = vadd.f32 0.0, %v3080
    %v3082 = vpop.f32.mrf.mxu0
    %3083 = vdwg.mxu0
    %v3085 = vrot.slane %v3081, 1
    %v3086 = vrot.slane %v3081, 2
    %v3087 = vrot.slane %v3081, 3
    %v3088 = vrot.slane %v3081, 4
    %v3089 = vrot.slane %v3081, 5
    %v3090 = vrot.slane %v3081, 6
    %v3091 = vrot.slane %v3081, 7
    %v3100 = vadd.f32 %v3006, %v3081
    %v3101 = vadd.f32 %v3007, %v3085
    %v3102 = vadd.f32 %v3008, %v3086
    %v3103 = vadd.f32 %v3009, %v3087
    %v3104 = vadd.f32 %v3010, %v3088
    %v3105 = vadd.f32 %v3011, %v3089
    %v3106 = vadd.f32 %v3012, %v3090
    %v3107 = vadd.f32 %v3013, %v3091
    %v3108 = vtanh.pop %v3100
    %v3109 = vtanh.pop %v3101
    %v3110 = vtanh.pop %v3102
    %v3111 = vtanh.pop %v3103
    %v3112 = vtanh.pop %v3104
    %v3113 = vtanh.pop %v3105
    %v3114 = vtanh.pop %v3106
    %v3115 = vtanh.pop %v3107
    %v3116 = vmul.f32 %v3108, 0.5
    %v3117 = vmul.f32 %v3109, 0.5
    %v3118 = vmul.f32 %v3110, 0.5
    %v3119 = vmul.f32 %v3111, 0.5
    %v3120 = vmul.f32 %v3112, 0.5
    %v3121 = vmul.f32 %v3113, 0.5
    %v3122 = vmul.f32 %v3114, 0.5
    %v3123 = vmul.f32 %v3115, 0.5
    %v3124 = vadd.f32 %v3116, 0.5
    %v3125 = vadd.f32 %v3117, 0.5
    %v3126 = vadd.f32 %v3118, 0.5
    %v3127 = vadd.f32 %v3119, 0.5
    %v3128 = vadd.f32 %v3120, 0.5
    %v3129 = vadd.f32 %v3121, 0.5
    %v3130 = vadd.f32 %v3122, 0.5
    %v3131 = vadd.f32 %v3123, 0.5
    %v3132 = vmul.f32 %v3124, %v2757
    %v3133 = vmul.f32 %v3125, %v2758
    %v3134 = vmul.f32 %v3126, %v2759
    %v3135 = vmul.f32 %v3127, %v2760
    %v3136 = vmul.f32 %v3128, %v2761
    %v3137 = vmul.f32 %v3129, %v2762
    %v3138 = vmul.f32 %v3130, %v2763
    %v3139 = vmul.f32 %v3131, %v2764
    %3148 = vrot.lane.b32.xlu0 %v3108, 64
    %v3149 = vpop.permute.xlu0 %3148
    %3150 = vrot.lane.b32.xlu0 %v3109, 64
    %v3151 = vpop.permute.xlu0 %3150
    %3152 = vrot.lane.b32.xlu0 %v3110, 64
    %v3153 = vpop.permute.xlu0 %3152
    %3154 = vrot.lane.b32.xlu0 %v3111, 64
    %v3155 = vpop.permute.xlu0 %3154
    %3156 = vrot.lane.b32.xlu0 %v3112, 64
    %v3157 = vpop.permute.xlu0 %3156
    %3158 = vrot.lane.b32.xlu0 %v3113, 64
    %v3159 = vpop.permute.xlu0 %3158
    %3160 = vrot.lane.b32.xlu0 %v3114, 64
    %v3161 = vpop.permute.xlu0 %3160
    %3162 = vrot.lane.b32.xlu0 %v3115, 64
    %v3163 = vpop.permute.xlu0 %3162
    %v3172 = vmul.f32 %v3124, %v3149
    %v3173 = vmul.f32 %v3125, %v3151
    %v3174 = vmul.f32 %v3126, %v3153
    %v3175 = vmul.f32 %v3127, %v3155
    %v3176 = vmul.f32 %v3128, %v3157
    %v3177 = vmul.f32 %v3129, %v3159
    %v3178 = vmul.f32 %v3130, %v3161
    %v3179 = vmul.f32 %v3131, %v3163
    %3188 = vrot.lane.b32.xlu0 %v3172, 32
    %v3189 = vpop.permute.xlu0 %3188
    %3190 = vrot.lane.b32.xlu0 %v3173, 32
    %v3191 = vpop.permute.xlu0 %3190
    %3192 = vrot.lane.b32.xlu0 %v3174, 32
    %v3193 = vpop.permute.xlu0 %3192
    %3194 = vrot.lane.b32.xlu0 %v3175, 32
    %v3195 = vpop.permute.xlu0 %3194
    %3196 = vrot.lane.b32.xlu0 %v3176, 32
    %v3197 = vpop.permute.xlu0 %3196
    %3198 = vrot.lane.b32.xlu0 %v3177, 32
    %v3199 = vpop.permute.xlu0 %3198
    %3200 = vrot.lane.b32.xlu0 %v3178, 32
    %v3201 = vpop.permute.xlu0 %3200
    %3202 = vrot.lane.b32.xlu0 %v3179, 32
    %v3203 = vpop.permute.xlu0 %3202
    %v3212 = vadd.f32 %v3132, %v3189
    %v3213 = vadd.f32 %v3133, %v3191
    %v3214 = vadd.f32 %v3134, %v3193
    %v3215 = vadd.f32 %v3135, %v3195
    %v3216 = vadd.f32 %v3136, %v3197
    %v3217 = vadd.f32 %v3137, %v3199
    %v3218 = vadd.f32 %v3138, %v3201
    %v3219 = vadd.f32 %v3139, %v3203
    %v3220 = vtanh.pop %v3212
    %v3221 = vtanh.pop %v3213
    %v3222 = vtanh.pop %v3214
    %v3223 = vtanh.pop %v3215
    %v3224 = vtanh.pop %v3216
    %v3225 = vtanh.pop %v3217
    %v3226 = vtanh.pop %v3218
    %v3227 = vtanh.pop %v3219
    %3236 = vrot.lane.b32.xlu0 %v3220, 64
    %v3237 = vpop.permute.xlu0 %3236
    %3238 = vrot.lane.b32.xlu0 %v3221, 64
    %v3239 = vpop.permute.xlu0 %3238
    %3240 = vrot.lane.b32.xlu0 %v3222, 64
    %v3241 = vpop.permute.xlu0 %3240
    %3242 = vrot.lane.b32.xlu0 %v3223, 64
    %v3243 = vpop.permute.xlu0 %3242
    %3244 = vrot.lane.b32.xlu0 %v3224, 64
    %v3245 = vpop.permute.xlu0 %3244
    %3246 = vrot.lane.b32.xlu0 %v3225, 64
    %v3247 = vpop.permute.xlu0 %3246
    %3248 = vrot.lane.b32.xlu0 %v3226, 64
    %v3249 = vpop.permute.xlu0 %3248
    %3250 = vrot.lane.b32.xlu0 %v3227, 64
    %v3251 = vpop.permute.xlu0 %3250
    %v3260 = vmul.f32 %v3124, %v3237
    %v3261 = vmul.f32 %v3125, %v3239
    %v3262 = vmul.f32 %v3126, %v3241
    %v3263 = vmul.f32 %v3127, %v3243
    %v3264 = vmul.f32 %v3128, %v3245
    %v3265 = vmul.f32 %v3129, %v3247
    %v3266 = vmul.f32 %v3130, %v3249
    %v3267 = vmul.f32 %v3131, %v3251
    %3269 = vrot.lane.b32.xlu0 %v3004, 32
    %v3270 = vpop.permute.xlu0 %3269
    %v3271 = vsel %vm114, %v3270, 0
    %3273 = vmatprep.subr.mxu0 0.0
    %3274 = vmatpush1.msra.mxu0 0.0
    %3275 = vmatprep.subr.mxu0 0.0
    %3276 = vmatpush1.msra.mxu0 0.0
    %3277 = vmatprep.subr.mxu0 0.0
    %3278 = vmatpush1.msra.mxu0 0.0
    %3279 = vmatprep.subr.mxu0 0.0
    %3280 = vmatpush1.msra.mxu0 0.0
    %3281 = vmatprep.subr.mxu0 0.0
    %3282 = vmatpush1.msra.mxu0 0.0
    %3283 = vmatprep.subr.mxu0 0.0
    %3284 = vmatpush1.msra.mxu0 0.0
    %3285 = vmatprep.subr.mxu0 0.0
    %3286 = vmatpush1.msra.mxu0 0.0
    %3287 = vmatprep.subr.mxu0 0.0
    %3288 = vmatpush1.msra.mxu0 0.0
    %3289 = vmatprep.subr.mxu0 0.0
    %3290 = vmatpush1.msra.mxu0 0.0
    %3291 = vmatprep.subr.mxu0 0.0
    %3292 = vmatpush1.msra.mxu0 0.0
    %3293 = vmatprep.subr.mxu0 0.0
    %3294 = vmatpush1.msra.mxu0 0.0
    %3295 = vmatprep.subr.mxu0 0.0
    %3296 = vmatpush1.msra.mxu0 0.0
    %3297 = vmatprep.subr.mxu0 0.0
    %3298 = vmatpush1.msra.mxu0 %v263
    %3299 = vmatprep.subr.mxu0 0.0
    %3300 = vmatpush1.msra.mxu0 %v262
    %3301 = vmatprep.subr.mxu0 0.0
    %3302 = vmatpush1.msra.mxu0 %v261
    %3303 = vmatprep.subr.mxu0 0.0
    %3304 = vmatpush1.msra.mxu0 %v260
    %3305 = vmatprep.subr.mxu0 0.0
    %3306 = vmatpush2.msra.mxu0 0.0
    %3307 = vmatprep.subr.mxu0 0.0
    %3308 = vmatpush2.msra.mxu0 0.0
    %3309 = vmatprep.subr.mxu0 0.0
    %3310 = vmatpush2.msra.mxu0 0.0
    %3311 = vmatprep.subr.mxu0 0.0
    %3312 = vmatpush2.msra.mxu0 0.0
    %3313 = vmatprep.subr.mxu0 0.0
    %3314 = vmatpush2.msra.mxu0 0.0
    %3315 = vmatprep.subr.mxu0 0.0
    %3316 = vmatpush2.msra.mxu0 0.0
    %3317 = vmatprep.subr.mxu0 0.0
    %3318 = vmatpush2.msra.mxu0 0.0
    %3319 = vmatprep.subr.mxu0 0.0
    %3320 = vmatpush2.msra.mxu0 0.0
    %3321 = vmatprep.subr.mxu0 0.0
    %3322 = vmatpush2.msra.mxu0 0.0
    %3323 = vmatprep.subr.mxu0 0.0
    %3324 = vmatpush2.msra.mxu0 0.0
    %3325 = vmatprep.subr.mxu0 0.0
    %3326 = vmatpush2.msra.mxu0 0.0
    %3327 = vmatprep.subr.mxu0 0.0
    %3328 = vmatpush2.msra.mxu0 0.0
    %3329 = vmatprep.subr.mxu0 0.0
    %3330 = vmatpush2.msra.mxu0 0.0
    %3331 = vmatprep.subr.mxu0 0.0
    %3332 = vmatpush2.msra.mxu0 0.0
    %3333 = vmatprep.subr.mxu0 0.0
    %3334 = vmatpush2.msra.mxu0 0.0
    %3335 = vmatprep.subr.mxu0 0.0
    %3336 = vmatpush2.msra.mxu0 0.0
    %3337 = vmatprep.mubr.f32.mxu0 0.0
    %3338 = vmatmul.mubr.f32.gmra.mxu0 %v3271
    %v3339 = vpop.f32.mrf.mxu0
    %v3340 = vadd.f32 0.0, %v3339
    %v3341 = vpop.f32.mrf.mxu0
    %3342 = vdwg.mxu0
    %v3351 = vrot.slane %v3261, 7
    %v3352 = vsel %vm609, %v3351, %v3260
    %v3353 = vrot.slane %v3262, 6
    %v3354 = vsel %vm612, %v3353, %v3352
    %v3355 = vrot.slane %v3263, 5
    %v3356 = vsel %vm615, %v3355, %v3354
    %v3357 = vrot.slane %v3264, 4
    %v3358 = vsel %vm618, %v3357, %v3356
    %v3359 = vrot.slane %v3265, 3
    %v3360 = vsel %vm621, %v3359, %v3358
    %v3361 = vrot.slane %v3266, 2
    %v3362 = vsel %vm624, %v3361, %v3360
    %v3363 = vrot.slane %v3267, 1
    %v3364 = vsel %vm627, %v3363, %v3362
    %3365 = vrot.lane.b32.xlu0 %v3364, 32
    %v3366 = vpop.permute.xlu0 %3365
    %v3367 = vsel %vm114, %v3366, 0
    %3369 = vmatprep.subr.mxu0 0.0
    %3370 = vmatpush1.msra.mxu0 0.0
    %3371 = vmatprep.subr.mxu0 0.0
    %3372 = vmatpush1.msra.mxu0 0.0
    %3373 = vmatprep.subr.mxu0 0.0
    %3374 = vmatpush1.msra.mxu0 0.0
    %3375 = vmatprep.subr.mxu0 0.0
    %3376 = vmatpush1.msra.mxu0 0.0
    %3377 = vmatprep.subr.mxu0 0.0
    %3378 = vmatpush1.msra.mxu0 0.0
    %3379 = vmatprep.subr.mxu0 0.0
    %3380 = vmatpush1.msra.mxu0 0.0
    %3381 = vmatprep.subr.mxu0 0.0
    %3382 = vmatpush1.msra.mxu0 0.0
    %3383 = vmatprep.subr.mxu0 0.0
    %3384 = vmatpush1.msra.mxu0 0.0
    %3385 = vmatprep.subr.mxu0 0.0
    %3386 = vmatpush1.msra.mxu0 0.0
    %3387 = vmatprep.subr.mxu0 0.0
    %3388 = vmatpush1.msra.mxu0 0.0
    %3389 = vmatprep.subr.mxu0 0.0
    %3390 = vmatpush1.msra.mxu0 0.0
    %3391 = vmatprep.subr.mxu0 0.0
    %3392 = vmatpush1.msra.mxu0 0.0
    %3393 = vmatprep.subr.mxu0 0.0
    %3394 = vmatpush1.msra.mxu0 %v259
    %3395 = vmatprep.subr.mxu0 0.0
    %3396 = vmatpush1.msra.mxu0 %v258
    %3397 = vmatprep.subr.mxu0 0.0
    %3398 = vmatpush1.msra.mxu0 %v257
    %3399 = vmatprep.subr.mxu0 0.0
    %3400 = vmatpush1.msra.mxu0 %v256
    %3401 = vmatprep.subr.mxu0 0.0
    %3402 = vmatpush2.msra.mxu0 0.0
    %3403 = vmatprep.subr.mxu0 0.0
    %3404 = vmatpush2.msra.mxu0 0.0
    %3405 = vmatprep.subr.mxu0 0.0
    %3406 = vmatpush2.msra.mxu0 0.0
    %3407 = vmatprep.subr.mxu0 0.0
    %3408 = vmatpush2.msra.mxu0 0.0
    %3409 = vmatprep.subr.mxu0 0.0
    %3410 = vmatpush2.msra.mxu0 0.0
    %3411 = vmatprep.subr.mxu0 0.0
    %3412 = vmatpush2.msra.mxu0 0.0
    %3413 = vmatprep.subr.mxu0 0.0
    %3414 = vmatpush2.msra.mxu0 0.0
    %3415 = vmatprep.subr.mxu0 0.0
    %3416 = vmatpush2.msra.mxu0 0.0
    %3417 = vmatprep.subr.mxu0 0.0
    %3418 = vmatpush2.msra.mxu0 0.0
    %3419 = vmatprep.subr.mxu0 0.0
    %3420 = vmatpush2.msra.mxu0 0.0
    %3421 = vmatprep.subr.mxu0 0.0
    %3422 = vmatpush2.msra.mxu0 0.0
    %3423 = vmatprep.subr.mxu0 0.0
    %3424 = vmatpush2.msra.mxu0 0.0
    %3425 = vmatprep.subr.mxu0 0.0
    %3426 = vmatpush2.msra.mxu0 0.0
    %3427 = vmatprep.subr.mxu0 0.0
    %3428 = vmatpush2.msra.mxu0 0.0
    %3429 = vmatprep.subr.mxu0 0.0
    %3430 = vmatpush2.msra.mxu0 0.0
    %3431 = vmatprep.subr.mxu0 0.0
    %3432 = vmatpush2.msra.mxu0 0.0
    %3433 = vmatprep.mubr.f32.mxu0 0.0
    %3434 = vmatmul.mubr.f32.gmra.mxu0 %v3367
    %v3435 = vpop.f32.mrf.mxu0
    %v3436 = vadd.f32 %v3340, %v3435
    %v3437 = vpop.f32.mrf.mxu0
    %3438 = vdwg.mxu0
    %v3439 = vadd.f32 %v3436, %v707
    %v3440 = vtanh.pop %v3439
    %v3441 = vmul.f32 %v3440, 0.5
    %v3442 = vadd.f32 %v3441, 0.5
    %v3443 = vmul.f32 %v3442, %v2998
    %3445 = vrot.lane.b32.xlu0 %v3440, 64
    %v3446 = vpop.permute.xlu0 %3445
    %v3448 = vmul.f32 %v3442, %v3446
    %3450 = vrot.lane.b32.xlu0 %v3448, 32
    %v3451 = vpop.permute.xlu0 %3450
    %v3453 = vadd.f32 %v3443, %v3451
    %v3454 = vtanh.pop %v3453
    %3456 = vrot.lane.b32.xlu0 %v3454, 64
    %v3457 = vpop.permute.xlu0 %3456
    %v3459 = vmul.f32 %v3442, %v3457
    %v3460 = vadd.f32 %v3005, %v3459
    %v3461 = vld [vmem:[#allocation2 + $0x7] sm:$0x1]
    %v3462 = vld [vmem:[#allocation2 + $0xf] sm:$0x1]
    %v3463 = vld [vmem:[#allocation2 + $0x17] sm:$0x1]
    %v3464 = vld [vmem:[#allocation2 + $0x1f] sm:$0x1]
    %v3465 = vld [vmem:[#allocation2 + $0x27] sm:$0x1]
    %v3466 = vld [vmem:[#allocation2 + $0x2f] sm:$0x1]
    %v3467 = vld [vmem:[#allocation2 + $0x37] sm:$0x1]
    %v3468 = vld [vmem:[#allocation2 + $0x3f] sm:$0x1]
    %3469 = vmatprep.subr.mxu0 0.0
    %3470 = vmatpush1.msra.mxu0 0.0
    %3471 = vmatprep.subr.mxu0 0.0
    %3472 = vmatpush1.msra.mxu0 0.0
    %3473 = vmatprep.subr.mxu0 0.0
    %3474 = vmatpush1.msra.mxu0 0.0
    %3475 = vmatprep.subr.mxu0 0.0
    %3476 = vmatpush1.msra.mxu0 0.0
    %3477 = vmatprep.subr.mxu0 0.0
    %3478 = vmatpush1.msra.mxu0 0.0
    %3479 = vmatprep.subr.mxu0 0.0
    %3480 = vmatpush1.msra.mxu0 0.0
    %3481 = vmatprep.subr.mxu0 0.0
    %3482 = vmatpush1.msra.mxu0 0.0
    %3483 = vmatprep.subr.mxu0 0.0
    %3484 = vmatpush1.msra.mxu0 0.0
    %3485 = vmatprep.subr.mxu0 0.0
    %3486 = vmatpush1.msra.mxu0 0.0
    %3487 = vmatprep.subr.mxu0 0.0
    %3488 = vmatpush1.msra.mxu0 0.0
    %3489 = vmatprep.subr.mxu0 0.0
    %3490 = vmatpush1.msra.mxu0 0.0
    %3491 = vmatprep.subr.mxu0 0.0
    %3492 = vmatpush1.msra.mxu0 0.0
    %3493 = vmatprep.subr.mxu0 0.0
    %3494 = vmatpush1.msra.mxu0 %v255
    %3495 = vmatprep.subr.mxu0 0.0
    %3496 = vmatpush1.msra.mxu0 %v254
    %3497 = vmatprep.subr.mxu0 0.0
    %3498 = vmatpush1.msra.mxu0 %v253
    %3499 = vmatprep.subr.mxu0 0.0
    %3500 = vmatpush1.msra.mxu0 %v252
    %3501 = vmatprep.subr.mxu0 0.0
    %3502 = vmatpush2.msra.mxu0 0.0
    %3503 = vmatprep.subr.mxu0 0.0
    %3504 = vmatpush2.msra.mxu0 0.0
    %3505 = vmatprep.subr.mxu0 0.0
    %3506 = vmatpush2.msra.mxu0 0.0
    %3507 = vmatprep.subr.mxu0 0.0
    %3508 = vmatpush2.msra.mxu0 0.0
    %3509 = vmatprep.subr.mxu0 0.0
    %3510 = vmatpush2.msra.mxu0 0.0
    %3511 = vmatprep.subr.mxu0 0.0
    %3512 = vmatpush2.msra.mxu0 0.0
    %3513 = vmatprep.subr.mxu0 0.0
    %3514 = vmatpush2.msra.mxu0 0.0
    %3515 = vmatprep.subr.mxu0 0.0
    %3516 = vmatpush2.msra.mxu0 0.0
    %3517 = vmatprep.subr.mxu0 0.0
    %3518 = vmatpush2.msra.mxu0 0.0
    %3519 = vmatprep.subr.mxu0 0.0
    %3520 = vmatpush2.msra.mxu0 0.0
    %3521 = vmatprep.subr.mxu0 0.0
    %3522 = vmatpush2.msra.mxu0 0.0
    %3523 = vmatprep.subr.mxu0 0.0
    %3524 = vmatpush2.msra.mxu0 0.0
    %3525 = vmatprep.subr.mxu0 0.0
    %3526 = vmatpush2.msra.mxu0 0.0
    %3527 = vmatprep.subr.mxu0 0.0
    %3528 = vmatpush2.msra.mxu0 0.0
    %3529 = vmatprep.subr.mxu0 0.0
    %3530 = vmatpush2.msra.mxu0 0.0
    %3531 = vmatprep.subr.mxu0 0.0
    %3532 = vmatpush2.msra.mxu0 0.0
    %3533 = vmatprep.mubr.f32.mxu0 0.0
    %3534 = vmatmul.mubr.f32.gmra.mxu0 %v3367
    %v3535 = vpop.f32.mrf.mxu0
    %v3536 = vadd.f32 0.0, %v3535
    %v3537 = vpop.f32.mrf.mxu0
    %3538 = vdwg.mxu0
    %v3540 = vrot.slane %v3536, 1
    %v3541 = vrot.slane %v3536, 2
    %v3542 = vrot.slane %v3536, 3
    %v3543 = vrot.slane %v3536, 4
    %v3544 = vrot.slane %v3536, 5
    %v3545 = vrot.slane %v3536, 6
    %v3546 = vrot.slane %v3536, 7
    %v3555 = vadd.f32 %v3461, %v3536
    %v3556 = vadd.f32 %v3462, %v3540
    %v3557 = vadd.f32 %v3463, %v3541
    %v3558 = vadd.f32 %v3464, %v3542
    %v3559 = vadd.f32 %v3465, %v3543
    %v3560 = vadd.f32 %v3466, %v3544
    %v3561 = vadd.f32 %v3467, %v3545
    %v3562 = vadd.f32 %v3468, %v3546
    %v3563 = vtanh.pop %v3555
    %v3564 = vtanh.pop %v3556
    %v3565 = vtanh.pop %v3557
    %v3566 = vtanh.pop %v3558
    %v3567 = vtanh.pop %v3559
    %v3568 = vtanh.pop %v3560
    %v3569 = vtanh.pop %v3561
    %v3570 = vtanh.pop %v3562
    %v3571 = vmul.f32 %v3563, 0.5
    %v3572 = vmul.f32 %v3564, 0.5
    %v3573 = vmul.f32 %v3565, 0.5
    %v3574 = vmul.f32 %v3566, 0.5
    %v3575 = vmul.f32 %v3567, 0.5
    %v3576 = vmul.f32 %v3568, 0.5
    %v3577 = vmul.f32 %v3569, 0.5
    %v3578 = vmul.f32 %v3570, 0.5
    %v3579 = vadd.f32 %v3571, 0.5
    %v3580 = vadd.f32 %v3572, 0.5
    %v3581 = vadd.f32 %v3573, 0.5
    %v3582 = vadd.f32 %v3574, 0.5
    %v3583 = vadd.f32 %v3575, 0.5
    %v3584 = vadd.f32 %v3576, 0.5
    %v3585 = vadd.f32 %v3577, 0.5
    %v3586 = vadd.f32 %v3578, 0.5
    %v3587 = vmul.f32 %v3579, %v3212
    %v3588 = vmul.f32 %v3580, %v3213
    %v3589 = vmul.f32 %v3581, %v3214
    %v3590 = vmul.f32 %v3582, %v3215
    %v3591 = vmul.f32 %v3583, %v3216
    %v3592 = vmul.f32 %v3584, %v3217
    %v3593 = vmul.f32 %v3585, %v3218
    %v3594 = vmul.f32 %v3586, %v3219
    %3603 = vrot.lane.b32.xlu0 %v3563, 64
    %v3604 = vpop.permute.xlu0 %3603
    %3605 = vrot.lane.b32.xlu0 %v3564, 64
    %v3606 = vpop.permute.xlu0 %3605
    %3607 = vrot.lane.b32.xlu0 %v3565, 64
    %v3608 = vpop.permute.xlu0 %3607
    %3609 = vrot.lane.b32.xlu0 %v3566, 64
    %v3610 = vpop.permute.xlu0 %3609
    %3611 = vrot.lane.b32.xlu0 %v3567, 64
    %v3612 = vpop.permute.xlu0 %3611
    %3613 = vrot.lane.b32.xlu0 %v3568, 64
    %v3614 = vpop.permute.xlu0 %3613
    %3615 = vrot.lane.b32.xlu0 %v3569, 64
    %v3616 = vpop.permute.xlu0 %3615
    %3617 = vrot.lane.b32.xlu0 %v3570, 64
    %v3618 = vpop.permute.xlu0 %3617
    %v3627 = vmul.f32 %v3579, %v3604
    %v3628 = vmul.f32 %v3580, %v3606
    %v3629 = vmul.f32 %v3581, %v3608
    %v3630 = vmul.f32 %v3582, %v3610
    %v3631 = vmul.f32 %v3583, %v3612
    %v3632 = vmul.f32 %v3584, %v3614
    %v3633 = vmul.f32 %v3585, %v3616
    %v3634 = vmul.f32 %v3586, %v3618
    %3643 = vrot.lane.b32.xlu0 %v3627, 32
    %v3644 = vpop.permute.xlu0 %3643
    %3645 = vrot.lane.b32.xlu0 %v3628, 32
    %v3646 = vpop.permute.xlu0 %3645
    %3647 = vrot.lane.b32.xlu0 %v3629, 32
    %v3648 = vpop.permute.xlu0 %3647
    %3649 = vrot.lane.b32.xlu0 %v3630, 32
    %v3650 = vpop.permute.xlu0 %3649
    %3651 = vrot.lane.b32.xlu0 %v3631, 32
    %v3652 = vpop.permute.xlu0 %3651
    %3653 = vrot.lane.b32.xlu0 %v3632, 32
    %v3654 = vpop.permute.xlu0 %3653
    %3655 = vrot.lane.b32.xlu0 %v3633, 32
    %v3656 = vpop.permute.xlu0 %3655
    %3657 = vrot.lane.b32.xlu0 %v3634, 32
    %v3658 = vpop.permute.xlu0 %3657
    %v3667 = vadd.f32 %v3587, %v3644
    %v3668 = vadd.f32 %v3588, %v3646
    %v3669 = vadd.f32 %v3589, %v3648
    %v3670 = vadd.f32 %v3590, %v3650
    %v3671 = vadd.f32 %v3591, %v3652
    %v3672 = vadd.f32 %v3592, %v3654
    %v3673 = vadd.f32 %v3593, %v3656
    %v3674 = vadd.f32 %v3594, %v3658
    %v3675 = vtanh.pop %v3667
    %v3676 = vtanh.pop %v3668
    %v3677 = vtanh.pop %v3669
    %v3678 = vtanh.pop %v3670
    %v3679 = vtanh.pop %v3671
    %v3680 = vtanh.pop %v3672
    %v3681 = vtanh.pop %v3673
    %v3682 = vtanh.pop %v3674
    %3691 = vrot.lane.b32.xlu0 %v3675, 64
    %v3692 = vpop.permute.xlu0 %3691
    %3693 = vrot.lane.b32.xlu0 %v3676, 64
    %v3694 = vpop.permute.xlu0 %3693
    %3695 = vrot.lane.b32.xlu0 %v3677, 64
    %v3696 = vpop.permute.xlu0 %3695
    %3697 = vrot.lane.b32.xlu0 %v3678, 64
    %v3698 = vpop.permute.xlu0 %3697
    %3699 = vrot.lane.b32.xlu0 %v3679, 64
    %v3700 = vpop.permute.xlu0 %3699
    %3701 = vrot.lane.b32.xlu0 %v3680, 64
    %v3702 = vpop.permute.xlu0 %3701
    %3703 = vrot.lane.b32.xlu0 %v3681, 64
    %v3704 = vpop.permute.xlu0 %3703
    %3705 = vrot.lane.b32.xlu0 %v3682, 64
    %v3706 = vpop.permute.xlu0 %3705
    %v3715 = vmul.f32 %v3579, %v3692
    %v3716 = vmul.f32 %v3580, %v3694
    %v3717 = vmul.f32 %v3581, %v3696
    %v3718 = vmul.f32 %v3582, %v3698
    %v3719 = vmul.f32 %v3583, %v3700
    %v3720 = vmul.f32 %v3584, %v3702
    %v3721 = vmul.f32 %v3585, %v3704
    %v3722 = vmul.f32 %v3586, %v3706
    %3724 = vrot.lane.b32.xlu0 %v3459, 32
    %v3725 = vpop.permute.xlu0 %3724
    %v3726 = vsel %vm114, %v3725, 0
    %3728 = vmatprep.subr.mxu0 0.0
    %3729 = vmatpush1.msra.mxu0 0.0
    %3730 = vmatprep.subr.mxu0 0.0
    %3731 = vmatpush1.msra.mxu0 0.0
    %3732 = vmatprep.subr.mxu0 0.0
    %3733 = vmatpush1.msra.mxu0 0.0
    %3734 = vmatprep.subr.mxu0 0.0
    %3735 = vmatpush1.msra.mxu0 0.0
    %3736 = vmatprep.subr.mxu0 0.0
    %3737 = vmatpush1.msra.mxu0 0.0
    %3738 = vmatprep.subr.mxu0 0.0
    %3739 = vmatpush1.msra.mxu0 0.0
    %3740 = vmatprep.subr.mxu0 0.0
    %3741 = vmatpush1.msra.mxu0 0.0
    %3742 = vmatprep.subr.mxu0 0.0
    %3743 = vmatpush1.msra.mxu0 0.0
    %3744 = vmatprep.subr.mxu0 0.0
    %3745 = vmatpush1.msra.mxu0 0.0
    %3746 = vmatprep.subr.mxu0 0.0
    %3747 = vmatpush1.msra.mxu0 0.0
    %3748 = vmatprep.subr.mxu0 0.0
    %3749 = vmatpush1.msra.mxu0 0.0
    %3750 = vmatprep.subr.mxu0 0.0
    %3751 = vmatpush1.msra.mxu0 0.0
    %3752 = vmatprep.subr.mxu0 0.0
    %3753 = vmatpush1.msra.mxu0 %v263
    %3754 = vmatprep.subr.mxu0 0.0
    %3755 = vmatpush1.msra.mxu0 %v262
    %3756 = vmatprep.subr.mxu0 0.0
    %3757 = vmatpush1.msra.mxu0 %v261
    %3758 = vmatprep.subr.mxu0 0.0
    %3759 = vmatpush1.msra.mxu0 %v260
    %3760 = vmatprep.subr.mxu0 0.0
    %3761 = vmatpush2.msra.mxu0 0.0
    %3762 = vmatprep.subr.mxu0 0.0
    %3763 = vmatpush2.msra.mxu0 0.0
    %3764 = vmatprep.subr.mxu0 0.0
    %3765 = vmatpush2.msra.mxu0 0.0
    %3766 = vmatprep.subr.mxu0 0.0
    %3767 = vmatpush2.msra.mxu0 0.0
    %3768 = vmatprep.subr.mxu0 0.0
    %3769 = vmatpush2.msra.mxu0 0.0
    %3770 = vmatprep.subr.mxu0 0.0
    %3771 = vmatpush2.msra.mxu0 0.0
    %3772 = vmatprep.subr.mxu0 0.0
    %3773 = vmatpush2.msra.mxu0 0.0
    %3774 = vmatprep.subr.mxu0 0.0
    %3775 = vmatpush2.msra.mxu0 0.0
    %3776 = vmatprep.subr.mxu0 0.0
    %3777 = vmatpush2.msra.mxu0 0.0
    %3778 = vmatprep.subr.mxu0 0.0
    %3779 = vmatpush2.msra.mxu0 0.0
    %3780 = vmatprep.subr.mxu0 0.0
    %3781 = vmatpush2.msra.mxu0 0.0
    %3782 = vmatprep.subr.mxu0 0.0
    %3783 = vmatpush2.msra.mxu0 0.0
    %3784 = vmatprep.subr.mxu0 0.0
    %3785 = vmatpush2.msra.mxu0 0.0
    %3786 = vmatprep.subr.mxu0 0.0
    %3787 = vmatpush2.msra.mxu0 0.0
    %3788 = vmatprep.subr.mxu0 0.0
    %3789 = vmatpush2.msra.mxu0 0.0
    %3790 = vmatprep.subr.mxu0 0.0
    %3791 = vmatpush2.msra.mxu0 0.0
    %3792 = vmatprep.mubr.f32.mxu0 0.0
    %3793 = vmatmul.mubr.f32.gmra.mxu0 %v3726
    %v3794 = vpop.f32.mrf.mxu0
    %v3795 = vadd.f32 0.0, %v3794
    %v3796 = vpop.f32.mrf.mxu0
    %3797 = vdwg.mxu0
    %v3806 = vrot.slane %v3716, 7
    %v3807 = vsel %vm609, %v3806, %v3715
    %v3808 = vrot.slane %v3717, 6
    %v3809 = vsel %vm612, %v3808, %v3807
    %v3810 = vrot.slane %v3718, 5
    %v3811 = vsel %vm615, %v3810, %v3809
    %v3812 = vrot.slane %v3719, 4
    %v3813 = vsel %vm618, %v3812, %v3811
    %v3814 = vrot.slane %v3720, 3
    %v3815 = vsel %vm621, %v3814, %v3813
    %v3816 = vrot.slane %v3721, 2
    %v3817 = vsel %vm624, %v3816, %v3815
    %v3818 = vrot.slane %v3722, 1
    %v3819 = vsel %vm627, %v3818, %v3817
    %3820 = vrot.lane.b32.xlu0 %v3819, 32
    %v3821 = vpop.permute.xlu0 %3820
    %v3822 = vsel %vm114, %v3821, 0
    %3824 = vmatprep.subr.mxu0 0.0
    %3825 = vmatpush1.msra.mxu0 0.0
    %3826 = vmatprep.subr.mxu0 0.0
    %3827 = vmatpush1.msra.mxu0 0.0
    %3828 = vmatprep.subr.mxu0 0.0
    %3829 = vmatpush1.msra.mxu0 0.0
    %3830 = vmatprep.subr.mxu0 0.0
    %3831 = vmatpush1.msra.mxu0 0.0
    %3832 = vmatprep.subr.mxu0 0.0
    %3833 = vmatpush1.msra.mxu0 0.0
    %3834 = vmatprep.subr.mxu0 0.0
    %3835 = vmatpush1.msra.mxu0 0.0
    %3836 = vmatprep.subr.mxu0 0.0
    %3837 = vmatpush1.msra.mxu0 0.0
    %3838 = vmatprep.subr.mxu0 0.0
    %3839 = vmatpush1.msra.mxu0 0.0
    %3840 = vmatprep.subr.mxu0 0.0
    %3841 = vmatpush1.msra.mxu0 0.0
    %3842 = vmatprep.subr.mxu0 0.0
    %3843 = vmatpush1.msra.mxu0 0.0
    %3844 = vmatprep.subr.mxu0 0.0
    %3845 = vmatpush1.msra.mxu0 0.0
    %3846 = vmatprep.subr.mxu0 0.0
    %3847 = vmatpush1.msra.mxu0 0.0
    %3848 = vmatprep.subr.mxu0 0.0
    %3849 = vmatpush1.msra.mxu0 %v259
    %3850 = vmatprep.subr.mxu0 0.0
    %3851 = vmatpush1.msra.mxu0 %v258
    %3852 = vmatprep.subr.mxu0 0.0
    %3853 = vmatpush1.msra.mxu0 %v257
    %3854 = vmatprep.subr.mxu0 0.0
    %3855 = vmatpush1.msra.mxu0 %v256
    %3856 = vmatprep.subr.mxu0 0.0
    %3857 = vmatpush2.msra.mxu0 0.0
    %3858 = vmatprep.subr.mxu0 0.0
    %3859 = vmatpush2.msra.mxu0 0.0
    %3860 = vmatprep.subr.mxu0 0.0
    %3861 = vmatpush2.msra.mxu0 0.0
    %3862 = vmatprep.subr.mxu0 0.0
    %3863 = vmatpush2.msra.mxu0 0.0
    %3864 = vmatprep.subr.mxu0 0.0
    %3865 = vmatpush2.msra.mxu0 0.0
    %3866 = vmatprep.subr.mxu0 0.0
    %3867 = vmatpush2.msra.mxu0 0.0
    %3868 = vmatprep.subr.mxu0 0.0
    %3869 = vmatpush2.msra.mxu0 0.0
    %3870 = vmatprep.subr.mxu0 0.0
    %3871 = vmatpush2.msra.mxu0 0.0
    %3872 = vmatprep.subr.mxu0 0.0
    %3873 = vmatpush2.msra.mxu0 0.0
    %3874 = vmatprep.subr.mxu0 0.0
    %3875 = vmatpush2.msra.mxu0 0.0
    %3876 = vmatprep.subr.mxu0 0.0
    %3877 = vmatpush2.msra.mxu0 0.0
    %3878 = vmatprep.subr.mxu0 0.0
    %3879 = vmatpush2.msra.mxu0 0.0
    %3880 = vmatprep.subr.mxu0 0.0
    %3881 = vmatpush2.msra.mxu0 0.0
    %3882 = vmatprep.subr.mxu0 0.0
    %3883 = vmatpush2.msra.mxu0 0.0
    %3884 = vmatprep.subr.mxu0 0.0
    %3885 = vmatpush2.msra.mxu0 0.0
    %3886 = vmatprep.subr.mxu0 0.0
    %3887 = vmatpush2.msra.mxu0 0.0
    %3888 = vmatprep.mubr.f32.mxu0 0.0
    %3889 = vmatmul.mubr.f32.gmra.mxu0 %v3822
    %v3890 = vpop.f32.mrf.mxu0
    %v3891 = vadd.f32 %v3795, %v3890
    %v3892 = vpop.f32.mrf.mxu0
    %3893 = vdwg.mxu0
    %v3894 = vadd.f32 %v3891, %v707
    %v3895 = vtanh.pop %v3894
    %v3896 = vmul.f32 %v3895, 0.5
    %v3897 = vadd.f32 %v3896, 0.5
    %v3898 = vmul.f32 %v3897, %v3453
    %3900 = vrot.lane.b32.xlu0 %v3895, 64
    %v3901 = vpop.permute.xlu0 %3900
    %v3903 = vmul.f32 %v3897, %v3901
    %3905 = vrot.lane.b32.xlu0 %v3903, 32
    %v3906 = vpop.permute.xlu0 %3905
    %v3908 = vadd.f32 %v3898, %v3906
    %v3909 = vtanh.pop %v3908
    %3911 = vrot.lane.b32.xlu0 %v3909, 64
    %v3912 = vpop.permute.xlu0 %3911
    %v3914 = vmul.f32 %v3897, %v3912
    %v3915 = vadd.f32 %v3460, %v3914
    %3917 = vrot.lane.b32.xlu0 %v3915, 32
    %v3918 = vpop.permute.xlu0 %3917
    %3920 = vst.msk [vmem:[#allocation12] sm:$0xff] %vm114, %v3918
    // Predicated region
    $region50: #{tpu_custom_call.1} parent=1 // pred_check
      _
    $region51: #{tpu_custom_call.1} parent=1 // pred_check_branch
      %3922 = sbr.rel (0) target = $region53
    $region52: #{tpu_custom_call.1} parent=1 // pred_region
      %s3924 = ssub.s32 128, 128
      %3925 = vsyncadd [#allocation5], %s3924
      %s3927 = sshll.u32 [#allocation12], 4
      %s3928 = int_to_ptr.vmem [resolvable:$true] %s3927
      %3930 = dma.vmem_to_hbm [thread:$0]  %s3928, 128, %s7, [#allocation5]
    $region53: #{tpu_custom_call.1} parent=1 // pred_fallthru
      _
    // Predicated region
    $region54: #{tpu_custom_call.1} parent=1 // pred_check
      _
    $region55: #{tpu_custom_call.1} parent=1 // pred_check_branch
      %3932 = sbr.rel (0) target = $region57
    $region56: #{tpu_custom_call.1} parent=1 // pred_region
      %3933 = dma.done [#allocation5], 128
    $region57: #{tpu_custom_call.1} parent=1 // pred_fallthru
      _
    %3934 = vsyncpa [#allocation4], 1
    %3935 = vsyncpa [#allocation7], 1
    %3936 = vsyncpa [#allocation10], 1
    %3937 = vsyncpa [#allocation5], 1

</llo_original>
